<compile_context>
chip_gen: v7x
topology: tpu7x:2x2x1
jax: 0.10.0
libtpu: 0.0.40
codegen_flags: <defaults>
</compile_context>

<pallas_src>
import jax
import jax.numpy as jnp
from jax.experimental import pallas as pl
from jax.experimental.pallas import tpu as pltpu


def bottleneck_kernel(x_ref, w1_ref, b1_ref, w2_ref, b2_ref, w3_ref, b3_ref,
                      o_ref, pad_ref, slab_ref):
    """Fused conv1x1-bn-relu -> conv3x3-bn-relu -> conv1x1-bn + residual -> relu.

    x_ref   : (NB, H, W, Cin)                 batch tile, NHWC
    w1_ref  : (Cin, width)       bf16 (BN1 scale folded in) ; b1: (1, width) f32
    w2_ref  : (9*width, width)   bf16 (BN2 scale folded in) ; b2: (1, width) f32
              3x3 taps flattened (ky, kx, cin) row-major.
    w3_ref  : (width, Cout)      bf16 (BN3 scale folded in) ; b3: (1, Cout) f32
    o_ref   : (NB, H, W, Cout)
    pad_ref : (NB, H+2, W+2, width) bf16  persistent VMEM scratch (padded y1)
    slab_ref: (NB*H*W, 9*width)     bf16  persistent VMEM scratch (im2col slab)
    """
    NB, H, W, Cin = x_ref.shape
    width = w1_ref.shape[1]
    Cout = w3_ref.shape[1]
    M = NB * H * W

    # ---- conv1 (1x1, BN1 scale pre-folded) + bias + relu ------------------
    # bf16 MXU operands, f32 accumulate.  x is NOT kept live as f32 here; it
    # is re-read from VMEM right before the residual add.
    x_bf = x_ref[...].reshape(M, Cin).astype(jnp.bfloat16)
    y1 = jnp.dot(x_bf, w1_ref[...], preferred_element_type=jnp.float32)
    y1 = jnp.maximum(y1 + b1_ref[...], 0.0)                      # (M, width)

    # ---- conv2 (3x3, stride=1, pad=1, BN2 scale pre-folded) + bias + relu -
    # bf16 padded scratch: zero only the 1-pixel border, plain interior store.
    zrow = jnp.zeros((NB, 1, W + 2, width), jnp.bfloat16)
    zcol = jnp.zeros((NB, H, 1, width), jnp.bfloat16)
    pad_ref[:, 0:1, :, :] = zrow
    pad_ref[:, H + 1:H + 2, :, :] = zrow
    pad_ref[:, 1:H + 1, 0:1, :] = zcol
    pad_ref[:, 1:H + 1, W + 1:W + 2, :] = zcol
    pad_ref[:, 1:H + 1, 1:W + 1, :] = (
        y1.astype(jnp.bfloat16).reshape(NB, H, W, width))

    # im2col: 9 shifted taps stored directly into the bf16 slab scratch (no
    # jnp.concatenate copy), then ONE K = 9*width MXU contraction.
    t = 0
    for ky in range(3):
        for kx in range(3):
            slab_ref[:, t * width:(t + 1) * width] = (
                pad_ref[:, ky:ky + H, kx:kx + W, :].reshape(M, width))
            t += 1
    y2 = jnp.dot(slab_ref[...], w2_ref[...],
                 preferred_element_type=jnp.float32)
    y2 = jnp.maximum(y2 + b2_ref[...], 0.0)                      # (M, width)

    # ---- conv3 (1x1, BN3 scale pre-folded) + bias + residual + relu -------
    y3 = jnp.dot(y2.astype(jnp.bfloat16), w3_ref[...],
                 preferred_element_type=jnp.float32)
    resid = x_ref[...].reshape(M, Cout).astype(jnp.float32)      # re-read x
    y3 = jnp.maximum(y3 + b3_ref[...] + resid, 0.0)              # (M, Cout)

    # Cout is a multiple of 128 in this config -> unmasked lane-dense stores.
    o_ref[...] = y3.reshape(NB, H, W, Cout).astype(o_ref.dtype)


def bottleneck_forward_nhwc(x, w1, s1, b1, w2, s2, b2, w3, s3, b3):
    """NHWC-native fused bottleneck. x: (N, H, W, Cin) -> (N, H, W, Cout)."""
    N, H, W, Cin = x.shape
    width = w1.shape[1]
    Cout = w3.shape[1]
    assert Cin == Cout, "identity residual needs inplanes == planes*expansion"

    # Fewer, fatter grid steps: keep M = batch_tile*H*W >= 256 rows per step
    # (fills the 256-wide MXU rows on v6e/v7x); split the grid in two only
    # when each half still reaches 256 rows (gives v7x's two TCs work).
    if N % 2 == 0 and (N // 2) * H * W >= 256:
        batch_tile = N // 2
    else:
        batch_tile = N
    grid = (N // batch_tile,)
    M = batch_tile * H * W

    # Fold BN scale into the weights in f32, THEN cast to bf16 for the MXU
    # (mathematically exact; cast-last keeps the fold full-precision).
    w1b = (w1 * s1[0][None, :]).astype(jnp.bfloat16)
    w2b = (w2 * s2[0][None, None, None, :]
           ).reshape(9 * width, width).astype(jnp.bfloat16)
    w3b = (w3 * s3[0][None, :]).astype(jnp.bfloat16)

    return pl.pallas_call(
        bottleneck_kernel,
        out_shape=jax.ShapeDtypeStruct((N, H, W, Cout), x.dtype),
        grid=grid,
        in_specs=[
            pl.BlockSpec((batch_tile, H, W, Cin), lambda n: (n, 0, 0, 0)),
            pl.BlockSpec((Cin, width), lambda n: (0, 0)),
            pl.BlockSpec((1, width), lambda n: (0, 0)),
            pl.BlockSpec((9 * width, width), lambda n: (0, 0)),
            pl.BlockSpec((1, width), lambda n: (0, 0)),
            pl.BlockSpec((width, Cout), lambda n: (0, 0)),
            pl.BlockSpec((1, Cout), lambda n: (0, 0)),
        ],
        out_specs=pl.BlockSpec((batch_tile, H, W, Cout),
                               lambda n: (n, 0, 0, 0)),
        scratch_shapes=[
            pltpu.VMEM((batch_tile, H + 2, W + 2, width), jnp.bfloat16),
            pltpu.VMEM((M, 9 * width), jnp.bfloat16),
        ],
        compiler_params=pltpu.CompilerParams(
            dimension_semantics=("parallel",),
            # Well under every generation's physical VMEM; this config uses
            # ~0.5 MiB.  For real ResNet activations re-derive the tiling
            # (H-tiles with a 1-row halo) against v7x's 64 MiB per-TC budget.
            vmem_limit_bytes=32 * 1024 * 1024,
        ),
    )(x, w1b, b1, w2b, b2, w3b, b3)


@jax.jit
def bottleneck_forward(x_nchw, w1, s1, b1, w2, s2, b2, w3, s3, b3):
    """NCHW wrapper (PyTorch convention).

    In a full ResNet keep activations NHWC (and ideally bf16) end-to-end and
    call bottleneck_forward_nhwc directly; these transposes exist only for the
    PyTorch-layout boundary of this standalone example.
    """
    x = jnp.transpose(x_nchw, (0, 2, 3, 1))                      # -> NHWC
    y = bottleneck_forward_nhwc(x, w1, s1, b1, w2, s2, b2, w3, s3, b3)
    return jnp.transpose(y, (0, 3, 1, 2))                        # -> NCHW


def fold_bn(gamma, beta, mean, var, eps=1e-5):
    """Eval-mode BatchNorm folded into per-channel scale/bias, shape (1, C)."""
    scale = gamma / jnp.sqrt(var + eps)
    bias = beta - mean * scale
    return scale[None, :], bias[None, :]


def make_params(key, inplanes, planes, expansion=4):
    width = planes                      # base_width=64, groups=1
    cout = planes * expansion
    ks = jax.random.split(key, 15)
    w1 = jax.random.normal(ks[0], (inplanes, width), jnp.float32) * 0.1
    w2 = jax.random.normal(ks[1], (3, 3, width, width), jnp.float32) * 0.1
    w3 = jax.random.normal(ks[2], (width, cout), jnp.float32) * 0.1

    def bn(k0, k1, k2, k3, c):
        gamma = 1.0 + 0.1 * jax.random.normal(k0, (c,), jnp.float32)
        beta = 0.1 * jax.random.normal(k1, (c,), jnp.float32)
        mean = 0.1 * jax.random.normal(k2, (c,), jnp.float32)
        var = jnp.abs(jax.random.normal(k3, (c,), jnp.float32)) + 0.5
        return fold_bn(gamma, beta, mean, var)

    s1, b1 = bn(ks[3], ks[4], ks[5], ks[6], width)
    s2, b2 = bn(ks[7], ks[8], ks[9], ks[10], width)
    s3, b3 = bn(ks[11], ks[12], ks[13], ks[14], cout)
    return (w1, s1, b1, w2, s2, b2, w3, s3, b3)


def ref_forward(x_nchw, w1, s1, b1, w2, s2, b2, w3, s3, b3):
    """Pure-JAX f32 reference (lax.conv, unfused BN) for correctness checking."""
    dn = ("NHWC", "HWIO", "NHWC")
    x = jnp.transpose(x_nchw, (0, 2, 3, 1))
    y = jax.lax.conv_general_dilated(x, w1[None, None], (1, 1), "VALID",
                                     dimension_numbers=dn)
    y = jnp.maximum(y * s1[0] + b1[0], 0.0)
    y = jax.lax.conv_general_dilated(y, w2, (1, 1), ((1, 1), (1, 1)),
                                     dimension_numbers=dn)
    y = jnp.maximum(y * s2[0] + b2[0], 0.0)
    y = jax.lax.conv_general_dilated(y, w3[None, None], (1, 1), "VALID",
                                     dimension_numbers=dn)
    y = jnp.maximum(y * s3[0] + b3[0] + x, 0.0)
    return jnp.transpose(y, (0, 3, 1, 2))


if __name__ == "__main__":
    # Small-but-lane-dense config: inplanes = planes*expansion = 128 channels
    # (fills the 128-lane axis so loads/stores are unmasked), width = 32,
    # 8x8 spatial, batch 4 -> one grid step with M = 4*8*8 = 256 matmul rows.
    N, planes, H, W = 4, 32, 8, 8
    expansion = 4
    inplanes = planes * expansion                      # 128

    key = jax.random.PRNGKey(0)
    kx, kp = jax.random.split(key)
    x = jax.random.normal(kx, (N, inplanes, H, W), jnp.float32)  # NCHW
    params = make_params(kp, inplanes, planes, expansion)

    out = jax.block_until_ready(bottleneck_forward(x, *params))
    ref = ref_forward(x, *params)

    assert out.shape == (N, inplanes, H, W), out.shape
    max_err = float(jnp.max(jnp.abs(out - ref)))
    # bf16 MXU operands (f32 accumulation, BN scale folded into bf16 weights)
    # vs the pure-f32 reference set the tolerance; bias add, residual add and
    # ReLU are kept in f32 inside the kernel.
    assert jnp.allclose(out, ref, atol=5e-2, rtol=5e-2), max_err
    print("KERNEL_OK")
</pallas_src>

<mosaic_0001>
module attributes {stable_mosaic.version = 11 : i64} {
  func.func @bottleneck_kernel(%arg0: i32, %arg1: memref<4x8x8x128xf32, #tpu.memory_space<vmem>>, %arg2: memref<128x32xbf16, #tpu.memory_space<vmem>>, %arg3: memref<1x32xf32, #tpu.memory_space<vmem>>, %arg4: memref<288x32xbf16, #tpu.memory_space<vmem>>, %arg5: memref<1x32xf32, #tpu.memory_space<vmem>>, %arg6: memref<32x128xbf16, #tpu.memory_space<vmem>>, %arg7: memref<1x128xf32, #tpu.memory_space<vmem>>, %arg8: memref<4x8x8x128xf32, #tpu.memory_space<vmem>>, %arg9: memref<4x10x10x32xbf16, #tpu.memory_space<vmem>>, %arg10: memref<256x288xbf16, #tpu.memory_space<vmem>>) attributes {dimension_semantics = [#tpu.dimension_semantics<parallel>], iteration_bounds = array<i64: 1>, scalar_prefetch = 0 : i64, scratch_operands = 2 : i64, tpu.core_type = #tpu.core_type<tc>, window_params = [{transform_indices = @transform_0, window_bounds = array<i64: 4, 8, 8, 128>}, {pipeline_mode = #tpu.pipeline_mode<synchronous>, transform_indices = @transform_1, window_bounds = array<i64: 128, 32>}, {pipeline_mode = #tpu.pipeline_mode<synchronous>, transform_indices = @transform_2, window_bounds = array<i64: 1, 32>}, {pipeline_mode = #tpu.pipeline_mode<synchronous>, transform_indices = @transform_3, window_bounds = array<i64: 288, 32>}, {pipeline_mode = #tpu.pipeline_mode<synchronous>, transform_indices = @transform_4, window_bounds = array<i64: 1, 32>}, {pipeline_mode = #tpu.pipeline_mode<synchronous>, transform_indices = @transform_5, window_bounds = array<i64: 32, 128>}, {pipeline_mode = #tpu.pipeline_mode<synchronous>, transform_indices = @transform_6, window_bounds = array<i64: 1, 128>}, {transform_indices = @transform_7, window_bounds = array<i64: 4, 8, 8, 128>}]} {
    %c0 = arith.constant 0 : index
    %c0_0 = arith.constant 0 : index
    %c0_1 = arith.constant 0 : index
    %c0_2 = arith.constant 0 : index
    %0 = vector.load %arg1[%c0, %c0_0, %c0_1, %c0_2] : memref<4x8x8x128xf32, #tpu.memory_space<vmem>>, vector<4x8x8x128xf32>
    %1 = vector.shape_cast %0 : vector<4x8x8x128xf32> to vector<256x128xf32>
    %2 = arith.truncf %1 : vector<256x128xf32> to vector<256x128xbf16>
    %c0_3 = arith.constant 0 : index
    %c0_4 = arith.constant 0 : index
    %3 = vector.load %arg2[%c0_3, %c0_4] : memref<128x32xbf16, #tpu.memory_space<vmem>>, vector<128x32xbf16>
    %cst = arith.constant dense<0.000000e+00> : vector<256x32xf32>
    %4 = tpu.matmul %2, %3, %cst {dimension_numbers = #tpu.dot_dimension_numbers<[1], [0], [0], [1], [0, 0, 1, 1], [], []>} : vector<256x128xbf16>, vector<128x32xbf16>, vector<256x32xf32> -> vector<256x32xf32>
    %c0_5 = arith.constant 0 : index
    %c0_6 = arith.constant 0 : index
    %5 = vector.load %arg3[%c0_5, %c0_6] : memref<1x32xf32, #tpu.memory_space<vmem>>, vector<1x32xf32>
    %6 = vector.broadcast %5 : vector<1x32xf32> to vector<256x32xf32>
    %7 = arith.addf %4, %6 : vector<256x32xf32>
    %cst_7 = arith.constant 0.000000e+00 : f32
    %8 = vector.broadcast %cst_7 : f32 to vector<256x32xf32>
    %9 = arith.maximumf %7, %8 : vector<256x32xf32>
    %cst_8 = arith.constant 0.000000e+00 : bf16
    %10 = vector.broadcast %cst_8 : bf16 to vector<4x1x10x32xbf16>
    %cst_9 = arith.constant 0.000000e+00 : bf16
    %11 = vector.broadcast %cst_9 : bf16 to vector<4x8x1x32xbf16>
    %c0_10 = arith.constant 0 : index
    %c0_11 = arith.constant 0 : index
    %c0_12 = arith.constant 0 : index
    %c0_13 = arith.constant 0 : index
    %12 = vector.load %arg9[%c0_10, %c0_11, %c0_12, %c0_13] : memref<4x10x10x32xbf16, #tpu.memory_space<vmem>>, vector<4x1x10x32xbf16>
    tpu.vector_store %arg9[%c0_10, %c0_11, %c0_12, %c0_13], %10 {strides = array<i32>} : memref<4x10x10x32xbf16, #tpu.memory_space<vmem>>, vector<4x1x10x32xbf16>,
    %c0_14 = arith.constant 0 : index
    %c9 = arith.constant 9 : index
    %c0_15 = arith.constant 0 : index
    %c0_16 = arith.constant 0 : index
    %13 = vector.load %arg9[%c0_14, %c9, %c0_15, %c0_16] : memref<4x10x10x32xbf16, #tpu.memory_space<vmem>>, vector<4x1x10x32xbf16>
    tpu.vector_store %arg9[%c0_14, %c9, %c0_15, %c0_16], %10 {strides = array<i32>} : memref<4x10x10x32xbf16, #tpu.memory_space<vmem>>, vector<4x1x10x32xbf16>,
    %c0_17 = arith.constant 0 : index
    %c1 = arith.constant 1 : index
    %c0_18 = arith.constant 0 : index
    %c0_19 = arith.constant 0 : index
    %14 = vector.load %arg9[%c0_17, %c1, %c0_18, %c0_19] : memref<4x10x10x32xbf16, #tpu.memory_space<vmem>>, vector<4x8x1x32xbf16>
    tpu.vector_store %arg9[%c0_17, %c1, %c0_18, %c0_19], %11 {strides = array<i32>} : memref<4x10x10x32xbf16, #tpu.memory_space<vmem>>, vector<4x8x1x32xbf16>,
    %c0_20 = arith.constant 0 : index
    %c1_21 = arith.constant 1 : index
    %c9_22 = arith.constant 9 : index
    %c0_23 = arith.constant 0 : index
    %15 = vector.load %arg9[%c0_20, %c1_21, %c9_22, %c0_23] : memref<4x10x10x32xbf16, #tpu.memory_space<vmem>>, vector<4x8x1x32xbf16>
    tpu.vector_store %arg9[%c0_20, %c1_21, %c9_22, %c0_23], %11 {strides = array<i32>} : memref<4x10x10x32xbf16, #tpu.memory_space<vmem>>, vector<4x8x1x32xbf16>,
    %16 = arith.truncf %9 : vector<256x32xf32> to vector<256x32xbf16>
    %17 = vector.shape_cast %16 : vector<256x32xbf16> to vector<4x8x8x32xbf16>
    %c0_24 = arith.constant 0 : index
    %c1_25 = arith.constant 1 : index
    %c1_26 = arith.constant 1 : index
    %c0_27 = arith.constant 0 : index
    %18 = vector.load %arg9[%c0_24, %c1_25, %c1_26, %c0_27] : memref<4x10x10x32xbf16, #tpu.memory_space<vmem>>, vector<4x8x8x32xbf16>
    tpu.vector_store %arg9[%c0_24, %c1_25, %c1_26, %c0_27], %17 {strides = array<i32>} : memref<4x10x10x32xbf16, #tpu.memory_space<vmem>>, vector<4x8x8x32xbf16>,
    %c0_28 = arith.constant 0 : index
    %c0_29 = arith.constant 0 : index
    %c0_30 = arith.constant 0 : index
    %c0_31 = arith.constant 0 : index
    %19 = vector.load %arg9[%c0_28, %c0_29, %c0_30, %c0_31] : memref<4x10x10x32xbf16, #tpu.memory_space<vmem>>, vector<4x8x8x32xbf16>
    %20 = vector.shape_cast %19 : vector<4x8x8x32xbf16> to vector<256x32xbf16>
    %c0_32 = arith.constant 0 : index
    %c0_33 = arith.constant 0 : index
    %21 = vector.load %arg10[%c0_32, %c0_33] : memref<256x288xbf16, #tpu.memory_space<vmem>>, vector<256x32xbf16>
    tpu.vector_store %arg10[%c0_32, %c0_33], %20 {strides = array<i32>} : memref<256x288xbf16, #tpu.memory_space<vmem>>, vector<256x32xbf16>,
    %c0_34 = arith.constant 0 : index
    %c0_35 = arith.constant 0 : index
    %c1_36 = arith.constant 1 : index
    %c0_37 = arith.constant 0 : index
    %22 = vector.load %arg9[%c0_34, %c0_35, %c1_36, %c0_37] : memref<4x10x10x32xbf16, #tpu.memory_space<vmem>>, vector<4x8x8x32xbf16>
    %23 = vector.shape_cast %22 : vector<4x8x8x32xbf16> to vector<256x32xbf16>
    %c0_38 = arith.constant 0 : index
    %c32 = arith.constant 32 : index
    %24 = vector.load %arg10[%c0_38, %c32] : memref<256x288xbf16, #tpu.memory_space<vmem>>, vector<256x32xbf16>
    tpu.vector_store %arg10[%c0_38, %c32], %23 {strides = array<i32>} : memref<256x288xbf16, #tpu.memory_space<vmem>>, vector<256x32xbf16>,
    %c0_39 = arith.constant 0 : index
    %c0_40 = arith.constant 0 : index
    %c2 = arith.constant 2 : index
    %c0_41 = arith.constant 0 : index
    %25 = vector.load %arg9[%c0_39, %c0_40, %c2, %c0_41] : memref<4x10x10x32xbf16, #tpu.memory_space<vmem>>, vector<4x8x8x32xbf16>
    %26 = vector.shape_cast %25 : vector<4x8x8x32xbf16> to vector<256x32xbf16>
    %c0_42 = arith.constant 0 : index
    %c64 = arith.constant 64 : index
    %27 = vector.load %arg10[%c0_42, %c64] : memref<256x288xbf16, #tpu.memory_space<vmem>>, vector<256x32xbf16>
    tpu.vector_store %arg10[%c0_42, %c64], %26 {strides = array<i32>} : memref<256x288xbf16, #tpu.memory_space<vmem>>, vector<256x32xbf16>,
    %c0_43 = arith.constant 0 : index
    %c1_44 = arith.constant 1 : index
    %c0_45 = arith.constant 0 : index
    %c0_46 = arith.constant 0 : index
    %28 = vector.load %arg9[%c0_43, %c1_44, %c0_45, %c0_46] : memref<4x10x10x32xbf16, #tpu.memory_space<vmem>>, vector<4x8x8x32xbf16>
    %29 = vector.shape_cast %28 : vector<4x8x8x32xbf16> to vector<256x32xbf16>
    %c0_47 = arith.constant 0 : index
    %c96 = arith.constant 96 : index
    %30 = vector.load %arg10[%c0_47, %c96] : memref<256x288xbf16, #tpu.memory_space<vmem>>, vector<256x32xbf16>
    tpu.vector_store %arg10[%c0_47, %c96], %29 {strides = array<i32>} : memref<256x288xbf16, #tpu.memory_space<vmem>>, vector<256x32xbf16>,
    %c0_48 = arith.constant 0 : index
    %c1_49 = arith.constant 1 : index
    %c1_50 = arith.constant 1 : index
    %c0_51 = arith.constant 0 : index
    %31 = vector.load %arg9[%c0_48, %c1_49, %c1_50, %c0_51] : memref<4x10x10x32xbf16, #tpu.memory_space<vmem>>, vector<4x8x8x32xbf16>
    %32 = vector.shape_cast %31 : vector<4x8x8x32xbf16> to vector<256x32xbf16>
    %c0_52 = arith.constant 0 : index
    %c128 = arith.constant 128 : index
    %33 = vector.load %arg10[%c0_52, %c128] : memref<256x288xbf16, #tpu.memory_space<vmem>>, vector<256x32xbf16>
    tpu.vector_store %arg10[%c0_52, %c128], %32 {strides = array<i32>} : memref<256x288xbf16, #tpu.memory_space<vmem>>, vector<256x32xbf16>,
    %c0_53 = arith.constant 0 : index
    %c1_54 = arith.constant 1 : index
    %c2_55 = arith.constant 2 : index
    %c0_56 = arith.constant 0 : index
    %34 = vector.load %arg9[%c0_53, %c1_54, %c2_55, %c0_56] : memref<4x10x10x32xbf16, #tpu.memory_space<vmem>>, vector<4x8x8x32xbf16>
    %35 = vector.shape_cast %34 : vector<4x8x8x32xbf16> to vector<256x32xbf16>
    %c0_57 = arith.constant 0 : index
    %c160 = arith.constant 160 : index
    %36 = vector.load %arg10[%c0_57, %c160] : memref<256x288xbf16, #tpu.memory_space<vmem>>, vector<256x32xbf16>
    tpu.vector_store %arg10[%c0_57, %c160], %35 {strides = array<i32>} : memref<256x288xbf16, #tpu.memory_space<vmem>>, vector<256x32xbf16>,
    %c0_58 = arith.constant 0 : index
    %c2_59 = arith.constant 2 : index
    %c0_60 = arith.constant 0 : index
    %c0_61 = arith.constant 0 : index
    %37 = vector.load %arg9[%c0_58, %c2_59, %c0_60, %c0_61] : memref<4x10x10x32xbf16, #tpu.memory_space<vmem>>, vector<4x8x8x32xbf16>
    %38 = vector.shape_cast %37 : vector<4x8x8x32xbf16> to vector<256x32xbf16>
    %c0_62 = arith.constant 0 : index
    %c192 = arith.constant 192 : index
    %39 = vector.load %arg10[%c0_62, %c192] : memref<256x288xbf16, #tpu.memory_space<vmem>>, vector<256x32xbf16>
    tpu.vector_store %arg10[%c0_62, %c192], %38 {strides = array<i32>} : memref<256x288xbf16, #tpu.memory_space<vmem>>, vector<256x32xbf16>,
    %c0_63 = arith.constant 0 : index
    %c2_64 = arith.constant 2 : index
    %c1_65 = arith.constant 1 : index
    %c0_66 = arith.constant 0 : index
    %40 = vector.load %arg9[%c0_63, %c2_64, %c1_65, %c0_66] : memref<4x10x10x32xbf16, #tpu.memory_space<vmem>>, vector<4x8x8x32xbf16>
    %41 = vector.shape_cast %40 : vector<4x8x8x32xbf16> to vector<256x32xbf16>
    %c0_67 = arith.constant 0 : index
    %c224 = arith.constant 224 : index
    %42 = vector.load %arg10[%c0_67, %c224] : memref<256x288xbf16, #tpu.memory_space<vmem>>, vector<256x32xbf16>
    tpu.vector_store %arg10[%c0_67, %c224], %41 {strides = array<i32>} : memref<256x288xbf16, #tpu.memory_space<vmem>>, vector<256x32xbf16>,
    %c0_68 = arith.constant 0 : index
    %c2_69 = arith.constant 2 : index
    %c2_70 = arith.constant 2 : index
    %c0_71 = arith.constant 0 : index
    %43 = vector.load %arg9[%c0_68, %c2_69, %c2_70, %c0_71] : memref<4x10x10x32xbf16, #tpu.memory_space<vmem>>, vector<4x8x8x32xbf16>
    %44 = vector.shape_cast %43 : vector<4x8x8x32xbf16> to vector<256x32xbf16>
    %c0_72 = arith.constant 0 : index
    %c256 = arith.constant 256 : index
    %45 = vector.load %arg10[%c0_72, %c256] : memref<256x288xbf16, #tpu.memory_space<vmem>>, vector<256x32xbf16>
    tpu.vector_store %arg10[%c0_72, %c256], %44 {strides = array<i32>} : memref<256x288xbf16, #tpu.memory_space<vmem>>, vector<256x32xbf16>,
    %c0_73 = arith.constant 0 : index
    %c0_74 = arith.constant 0 : index
    %46 = vector.load %arg10[%c0_73, %c0_74] : memref<256x288xbf16, #tpu.memory_space<vmem>>, vector<256x288xbf16>
    %c0_75 = arith.constant 0 : index
    %c0_76 = arith.constant 0 : index
    %47 = vector.load %arg4[%c0_75, %c0_76] : memref<288x32xbf16, #tpu.memory_space<vmem>>, vector<288x32xbf16>
    %cst_77 = arith.constant dense<0.000000e+00> : vector<256x32xf32>
    %48 = tpu.matmul %46, %47, %cst_77 {dimension_numbers = #tpu.dot_dimension_numbers<[1], [0], [0], [1], [0, 0, 1, 1], [], []>} : vector<256x288xbf16>, vector<288x32xbf16>, vector<256x32xf32> -> vector<256x32xf32>
    %c0_78 = arith.constant 0 : index
    %c0_79 = arith.constant 0 : index
    %49 = vector.load %arg5[%c0_78, %c0_79] : memref<1x32xf32, #tpu.memory_space<vmem>>, vector<1x32xf32>
    %50 = vector.broadcast %49 : vector<1x32xf32> to vector<256x32xf32>
    %51 = arith.addf %48, %50 : vector<256x32xf32>
    %cst_80 = arith.constant 0.000000e+00 : f32
    %52 = vector.broadcast %cst_80 : f32 to vector<256x32xf32>
    %53 = arith.maximumf %51, %52 : vector<256x32xf32>
    %54 = arith.truncf %53 : vector<256x32xf32> to vector<256x32xbf16>
    %c0_81 = arith.constant 0 : index
    %c0_82 = arith.constant 0 : index
    %55 = vector.load %arg6[%c0_81, %c0_82] : memref<32x128xbf16, #tpu.memory_space<vmem>>, vector<32x128xbf16>
    %cst_83 = arith.constant dense<0.000000e+00> : vector<256x128xf32>
    %56 = tpu.matmul %54, %55, %cst_83 {dimension_numbers = #tpu.dot_dimension_numbers<[1], [0], [0], [1], [0, 0, 1, 1], [], []>} : vector<256x32xbf16>, vector<32x128xbf16>, vector<256x128xf32> -> vector<256x128xf32>
    %c0_84 = arith.constant 0 : index
    %c0_85 = arith.constant 0 : index
    %c0_86 = arith.constant 0 : index
    %c0_87 = arith.constant 0 : index
    %57 = vector.load %arg1[%c0_84, %c0_85, %c0_86, %c0_87] : memref<4x8x8x128xf32, #tpu.memory_space<vmem>>, vector<4x8x8x128xf32>
    %58 = vector.shape_cast %57 : vector<4x8x8x128xf32> to vector<256x128xf32>
    %c0_88 = arith.constant 0 : index
    %c0_89 = arith.constant 0 : index
    %59 = vector.load %arg7[%c0_88, %c0_89] : memref<1x128xf32, #tpu.memory_space<vmem>>, vector<1x128xf32>
    %60 = vector.broadcast %59 : vector<1x128xf32> to vector<256x128xf32>
    %61 = arith.addf %56, %60 : vector<256x128xf32>
    %62 = arith.addf %61, %58 : vector<256x128xf32>
    %cst_90 = arith.constant 0.000000e+00 : f32
    %63 = vector.broadcast %cst_90 : f32 to vector<256x128xf32>
    %64 = arith.maximumf %62, %63 : vector<256x128xf32>
    %65 = vector.shape_cast %64 : vector<256x128xf32> to vector<4x8x8x128xf32>
    %c0_91 = arith.constant 0 : index
    %c0_92 = arith.constant 0 : index
    %c0_93 = arith.constant 0 : index
    %c0_94 = arith.constant 0 : index
    %66 = vector.load %arg8[%c0_91, %c0_92, %c0_93, %c0_94] : memref<4x8x8x128xf32, #tpu.memory_space<vmem>>, vector<4x8x8x128xf32>
    tpu.vector_store %arg8[%c0_91, %c0_92, %c0_93, %c0_94], %65 {strides = array<i32>} : memref<4x8x8x128xf32, #tpu.memory_space<vmem>>, vector<4x8x8x128xf32>,
    return
  }
  func.func @transform_0(%arg0: i32) -> (i32, i32, i32, i32) {
    %c0_i32 = arith.constant 0 : i32
    %c0_i32_0 = arith.constant 0 : i32
    %c0_i32_1 = arith.constant 0 : i32
    %c0_i32_2 = arith.constant 0 : i32
    return %arg0, %c0_i32, %c0_i32_0, %c0_i32_1 : i32, i32, i32, i32
  }
  func.func @transform_1(%arg0: i32) -> (i32, i32) {
    %c0_i32 = arith.constant 0 : i32
    %c0_i32_0 = arith.constant 0 : i32
    %c0_i32_1 = arith.constant 0 : i32
    return %c0_i32, %c0_i32_0 : i32, i32
  }
  func.func @transform_2(%arg0: i32) -> (i32, i32) {
    %c0_i32 = arith.constant 0 : i32
    %c0_i32_0 = arith.constant 0 : i32
    %c0_i32_1 = arith.constant 0 : i32
    return %c0_i32, %c0_i32_0 : i32, i32
  }
  func.func @transform_3(%arg0: i32) -> (i32, i32) {
    %c0_i32 = arith.constant 0 : i32
    %c0_i32_0 = arith.constant 0 : i32
    %c0_i32_1 = arith.constant 0 : i32
    return %c0_i32, %c0_i32_0 : i32, i32
  }
  func.func @transform_4(%arg0: i32) -> (i32, i32) {
    %c0_i32 = arith.constant 0 : i32
    %c0_i32_0 = arith.constant 0 : i32
    %c0_i32_1 = arith.constant 0 : i32
    return %c0_i32, %c0_i32_0 : i32, i32
  }
  func.func @transform_5(%arg0: i32) -> (i32, i32) {
    %c0_i32 = arith.constant 0 : i32
    %c0_i32_0 = arith.constant 0 : i32
    %c0_i32_1 = arith.constant 0 : i32
    return %c0_i32, %c0_i32_0 : i32, i32
  }
  func.func @transform_6(%arg0: i32) -> (i32, i32) {
    %c0_i32 = arith.constant 0 : i32
    %c0_i32_0 = arith.constant 0 : i32
    %c0_i32_1 = arith.constant 0 : i32
    return %c0_i32, %c0_i32_0 : i32, i32
  }
  func.func @transform_7(%arg0: i32) -> (i32, i32, i32, i32) {
    %c0_i32 = arith.constant 0 : i32
    %c0_i32_0 = arith.constant 0 : i32
    %c0_i32_1 = arith.constant 0 : i32
    %c0_i32_2 = arith.constant 0 : i32
    return %arg0, %c0_i32, %c0_i32_0, %c0_i32_1 : i32, i32, i32, i32
  }
}

</mosaic_0001>

<llo_original>
// kernel: bottleneck_forward.1
$region0: #{bottleneck_forward.1}
  #allocation0 [shape = 'u32[]', space=smem, size = 0x4, offset = 0x4, fixed_abs, tag = 'smem constant byte address 0x4 - core index']
  #allocation1 [shape = 'u32[144,128]{1,0:T(1,128)}', space=vmem, size = 0x12000, scoped, tag = 'internal scratch']
  #allocation2 [shape = 'bf16[4,10,10,32]{3,2,1,0:T(8,128)(2,1)}', space=vmem, size = 0x28000, scoped, tag = 'scratch operand']
  #allocation3 [shape = 'bf16[256,288]{1,0:T(16,128)(2,1)}', space=vmem, size = 0x30000, scoped, tag = 'scratch operand']
  %s0 = inlined_call_operand.vmem [shape: f32[4,8,8,128], index: 0, kind: input, shape index: {}]
  %s1 = inlined_call_operand.vmem [shape: bf16[128,32], index: 1, kind: input, shape index: {}]
  %s2 = inlined_call_operand.vmem [shape: f32[1,32], index: 2, kind: input, shape index: {}]
  %s3 = inlined_call_operand.vmem [shape: bf16[288,32], index: 3, kind: input, shape index: {}]
  %s4 = inlined_call_operand.vmem [shape: f32[1,32], index: 4, kind: input, shape index: {}]
  %s5 = inlined_call_operand.vmem [shape: bf16[32,128], index: 5, kind: input, shape index: {}]
  %s6 = inlined_call_operand.vmem [shape: f32[1,128], index: 6, kind: input, shape index: {}]
  %s7 = inlined_call_operand.hbm [shape: f32[4,8,8,128], index: 7, kind: output, shape index: {}]
  %s8 = sld [smem:[#allocation0]]
  $region38: #{bottleneck_forward.1} parent=0
    _
  %s10 = ssub.s32 1, %s8
  %s11 = scalar_select 0, %s10, %s8
  $region1: #{bottleneck_forward.1} parent=0
    #allocation4 [shape = 'u8[131072]{0}', space=vmem, size = 0x20000, scoped, tag = 'output window, operand 0, single buffered']
    #allocation5 [shape = 's32[1]{0}', space=sflag, size = 0x4, scoped, tag = 'scoped memory for bottleneck_forward.1']
    %12 = vsyncpa [#allocation5], 0
    // Predicated region
    $region2: #{bottleneck_forward.1} parent=1 // pred_check
      _
    $region3: #{bottleneck_forward.1} parent=1 // pred_check_branch
      %14 = sbr.rel (0) target = $region5
    $region4: #{bottleneck_forward.1} parent=1 // pred_region
      _
    $region5: #{bottleneck_forward.1} parent=1 // pred_fallthru
      _
    // Predicated region
    $region6: #{bottleneck_forward.1} parent=1 // pred_check
      _
    $region7: #{bottleneck_forward.1} parent=1 // pred_check_branch
      %16 = sbr.rel (0) target = $region9
    $region8: #{bottleneck_forward.1} parent=1 // pred_region
      _
    $region9: #{bottleneck_forward.1} parent=1 // pred_fallthru
      _
    // Predicated region
    $region10: #{bottleneck_forward.1} parent=1 // pred_check
      _
    $region11: #{bottleneck_forward.1} parent=1 // pred_check_branch
      %18 = sbr.rel (0) target = $region13
    $region12: #{bottleneck_forward.1} parent=1 // pred_region
      _
    $region13: #{bottleneck_forward.1} parent=1 // pred_fallthru
      _
    // Predicated region
    $region14: #{bottleneck_forward.1} parent=1 // pred_check
      _
    $region15: #{bottleneck_forward.1} parent=1 // pred_check_branch
      %20 = sbr.rel (0) target = $region17
    $region16: #{bottleneck_forward.1} parent=1 // pred_region
      _
    $region17: #{bottleneck_forward.1} parent=1 // pred_fallthru
      _
    // Predicated region
    $region18: #{bottleneck_forward.1} parent=1 // pred_check
      _
    $region19: #{bottleneck_forward.1} parent=1 // pred_check_branch
      %22 = sbr.rel (0) target = $region21
    $region20: #{bottleneck_forward.1} parent=1 // pred_region
      _
    $region21: #{bottleneck_forward.1} parent=1 // pred_fallthru
      _
    // Predicated region
    $region22: #{bottleneck_forward.1} parent=1 // pred_check
      _
    $region23: #{bottleneck_forward.1} parent=1 // pred_check_branch
      %24 = sbr.rel (0) target = $region25
    $region24: #{bottleneck_forward.1} parent=1 // pred_region
      _
    $region25: #{bottleneck_forward.1} parent=1 // pred_fallthru
      _
    // Predicated region
    $region26: #{bottleneck_forward.1} parent=1 // pred_check
      _
    $region27: #{bottleneck_forward.1} parent=1 // pred_check_branch
      %26 = sbr.rel (0) target = $region29
    $region28: #{bottleneck_forward.1} parent=1 // pred_region
      _
    $region29: #{bottleneck_forward.1} parent=1 // pred_fallthru
      _
    %v28 = vld [vmem:[%s0] sm:$0xff]
    %v29 = vld [vmem:[%s0 + $0x8] sm:$0xff]
    %v30 = vld [vmem:[%s0 + $0x10] sm:$0xff]
    %v31 = vld [vmem:[%s0 + $0x18] sm:$0xff]
    %v32 = vld [vmem:[%s0 + $0x20] sm:$0xff]
    %v33 = vld [vmem:[%s0 + $0x28] sm:$0xff]
    %v34 = vld [vmem:[%s0 + $0x30] sm:$0xff]
    %v35 = vld [vmem:[%s0 + $0x38] sm:$0xff]
    %v36 = vld [vmem:[%s0 + $0x40] sm:$0xff]
    %v37 = vld [vmem:[%s0 + $0x48] sm:$0xff]
    %v38 = vld [vmem:[%s0 + $0x50] sm:$0xff]
    %v39 = vld [vmem:[%s0 + $0x58] sm:$0xff]
    %v40 = vld [vmem:[%s0 + $0x60] sm:$0xff]
    %v41 = vld [vmem:[%s0 + $0x68] sm:$0xff]
    %v42 = vld [vmem:[%s0 + $0x70] sm:$0xff]
    %v43 = vld [vmem:[%s0 + $0x78] sm:$0xff]
    %v44 = vld [vmem:[%s0 + $0x80] sm:$0xff]
    %v45 = vld [vmem:[%s0 + $0x88] sm:$0xff]
    %v46 = vld [vmem:[%s0 + $0x90] sm:$0xff]
    %v47 = vld [vmem:[%s0 + $0x98] sm:$0xff]
    %v48 = vld [vmem:[%s0 + $0xa0] sm:$0xff]
    %v49 = vld [vmem:[%s0 + $0xa8] sm:$0xff]
    %v50 = vld [vmem:[%s0 + $0xb0] sm:$0xff]
    %v51 = vld [vmem:[%s0 + $0xb8] sm:$0xff]
    %v52 = vld [vmem:[%s0 + $0xc0] sm:$0xff]
    %v53 = vld [vmem:[%s0 + $0xc8] sm:$0xff]
    %v54 = vld [vmem:[%s0 + $0xd0] sm:$0xff]
    %v55 = vld [vmem:[%s0 + $0xd8] sm:$0xff]
    %v56 = vld [vmem:[%s0 + $0xe0] sm:$0xff]
    %v57 = vld [vmem:[%s0 + $0xe8] sm:$0xff]
    %v58 = vld [vmem:[%s0 + $0xf0] sm:$0xff]
    %v59 = vld [vmem:[%s0 + $0xf8] sm:$0xff]
    %v60 = vpack.c.bf16 %v29, %v28
    %v61 = vpack.c.bf16 %v31, %v30
    %v62 = vpack.c.bf16 %v33, %v32
    %v63 = vpack.c.bf16 %v35, %v34
    %v64 = vpack.c.bf16 %v37, %v36
    %v65 = vpack.c.bf16 %v39, %v38
    %v66 = vpack.c.bf16 %v41, %v40
    %v67 = vpack.c.bf16 %v43, %v42
    %v68 = vpack.c.bf16 %v45, %v44
    %v69 = vpack.c.bf16 %v47, %v46
    %v70 = vpack.c.bf16 %v49, %v48
    %v71 = vpack.c.bf16 %v51, %v50
    %v72 = vpack.c.bf16 %v53, %v52
    %v73 = vpack.c.bf16 %v55, %v54
    %v74 = vpack.c.bf16 %v57, %v56
    %v75 = vpack.c.bf16 %v59, %v58
    %v76 = vld [vmem:[%s1] sm:$0xf]
    %v77 = vld [vmem:[%s1 + $0x4] sm:$0xf]
    %v78 = vld [vmem:[%s1 + $0x8] sm:$0xf]
    %v79 = vld [vmem:[%s1 + $0xc] sm:$0xf]
    %v80 = vld [vmem:[%s1 + $0x10] sm:$0xf]
    %v81 = vld [vmem:[%s1 + $0x14] sm:$0xf]
    %v82 = vld [vmem:[%s1 + $0x18] sm:$0xf]
    %v83 = vld [vmem:[%s1 + $0x1c] sm:$0xf]
    %v84 = vld [vmem:[%s1 + $0x20] sm:$0xf]
    %v85 = vld [vmem:[%s1 + $0x24] sm:$0xf]
    %v86 = vld [vmem:[%s1 + $0x28] sm:$0xf]
    %v87 = vld [vmem:[%s1 + $0x2c] sm:$0xf]
    %v88 = vld [vmem:[%s1 + $0x30] sm:$0xf]
    %v89 = vld [vmem:[%s1 + $0x34] sm:$0xf]
    %v90 = vld [vmem:[%s1 + $0x38] sm:$0xf]
    %v91 = vld [vmem:[%s1 + $0x3c] sm:$0xf]
    %v92 = vld [vmem:[%s2] sm:$0x1]
    %v94 = vlaneseq
    %v95 = vshrl.u32 %v94, 7
    %v96 = vsub.s32 0, %v95
    %v97 = vrot.slane %v92, %v96
    %v115 = vunpack.c.l.b16 %v76
    %v116 = vunpack.c.l.b16 %v77
    %v117 = vunpack.c.l.b16 %v78
    %v118 = vunpack.c.l.b16 %v79
    %v119 = vunpack.c.l.b16 %v80
    %v120 = vunpack.c.l.b16 %v81
    %v121 = vunpack.c.l.b16 %v82
    %v122 = vunpack.c.l.b16 %v83
    %v123 = vunpack.c.l.b16 %v84
    %v124 = vunpack.c.l.b16 %v85
    %v125 = vunpack.c.l.b16 %v86
    %v126 = vunpack.c.l.b16 %v87
    %v127 = vunpack.c.l.b16 %v88
    %v128 = vunpack.c.l.b16 %v89
    %v129 = vunpack.c.l.b16 %v90
    %v130 = vunpack.c.l.b16 %v91
    %v131 = vpack.c.b16 %v116, %v115
    %v132 = vpack.c.b16 %v118, %v117
    %v133 = vpack.c.b16 %v120, %v119
    %v134 = vpack.c.b16 %v122, %v121
    %v135 = vpack.c.b16 %v124, %v123
    %v136 = vpack.c.b16 %v126, %v125
    %v137 = vpack.c.b16 %v128, %v127
    %v138 = vpack.c.b16 %v130, %v129
    %147 = vmatprep.subr.bf16.mxu0 0
    %148 = vmatpush1.bf16.msra.mxu0 %v131
    %149 = vmatprep.subr.bf16.mxu0 0
    %150 = vmatpush1.bf16.msra.mxu0 %v132
    %151 = vmatprep.subr.bf16.mxu0 0
    %152 = vmatpush1.bf16.msra.mxu0 %v133
    %153 = vmatprep.subr.bf16.mxu0 0
    %154 = vmatpush1.bf16.msra.mxu0 %v134
    %155 = vmatprep.subr.bf16.mxu0 0
    %156 = vmatpush1.bf16.msra.mxu0 %v135
    %157 = vmatprep.subr.bf16.mxu0 0
    %158 = vmatpush1.bf16.msra.mxu0 %v136
    %159 = vmatprep.subr.bf16.mxu0 0
    %160 = vmatpush1.bf16.msra.mxu0 %v137
    %161 = vmatprep.subr.bf16.mxu0 0
    %162 = vmatpush1.bf16.msra.mxu0 %v138
    %163 = vmatprep.subr.bf16.mxu0 0
    %164 = vmatpush1.bf16.msra.mxu0 0
    %165 = vmatprep.subr.bf16.mxu0 0
    %166 = vmatpush1.bf16.msra.mxu0 0
    %167 = vmatprep.subr.bf16.mxu0 0
    %168 = vmatpush1.bf16.msra.mxu0 0
    %169 = vmatprep.subr.bf16.mxu0 0
    %170 = vmatpush1.bf16.msra.mxu0 0
    %171 = vmatprep.subr.bf16.mxu0 0
    %172 = vmatpush1.bf16.msra.mxu0 0
    %173 = vmatprep.subr.bf16.mxu0 0
    %174 = vmatpush1.bf16.msra.mxu0 0
    %175 = vmatprep.subr.bf16.mxu0 0
    %176 = vmatpush1.bf16.msra.mxu0 0
    %177 = vmatprep.subr.bf16.mxu0 0
    %178 = vmatpush1.bf16.msra.mxu0 0
    %179 = vmatprep.mubr.bf16.mxu0 0
    %180 = vmatmul.mubr.bf16.gmra.mrb[0].mxu0 %v60
    %v181 = vpop.f32.mrb[0].mxu0
    %v182 = vadd.f32 %v97, %v181
    %v183 = vpop.f32.mrb[0].mxu0
    %v184 = vpop.f32.mrb[0].mxu0
    %v185 = vadd.f32 %v97, %v184
    %v186 = vpop.f32.mrb[0].mxu0
    %187 = vmatprep.mubr.bf16.mxu0 0
    %188 = vmatmul.mubr.bf16.gmra.mrb[0].mxu0 %v61
    %v189 = vpop.f32.mrb[0].mxu0
    %v190 = vadd.f32 %v97, %v189
    %v191 = vpop.f32.mrb[0].mxu0
    %v192 = vpop.f32.mrb[0].mxu0
    %v193 = vadd.f32 %v97, %v192
    %v194 = vpop.f32.mrb[0].mxu0
    %195 = vmatprep.mubr.bf16.mxu0 0
    %196 = vmatmul.mubr.bf16.gmra.mrb[0].mxu0 %v62
    %v197 = vpop.f32.mrb[0].mxu0
    %v198 = vadd.f32 %v97, %v197
    %v199 = vpop.f32.mrb[0].mxu0
    %v200 = vpop.f32.mrb[0].mxu0
    %v201 = vadd.f32 %v97, %v200
    %v202 = vpop.f32.mrb[0].mxu0
    %203 = vmatprep.mubr.bf16.mxu0 0
    %204 = vmatmul.mubr.bf16.gmra.mrb[0].mxu0 %v63
    %v205 = vpop.f32.mrb[0].mxu0
    %v206 = vadd.f32 %v97, %v205
    %v207 = vpop.f32.mrb[0].mxu0
    %v208 = vpop.f32.mrb[0].mxu0
    %v209 = vadd.f32 %v97, %v208
    %v210 = vpop.f32.mrb[0].mxu0
    %211 = vmatprep.mubr.bf16.mxu0 0
    %212 = vmatmul.mubr.bf16.gmra.mrb[0].mxu0 %v64
    %v213 = vpop.f32.mrb[0].mxu0
    %v214 = vadd.f32 %v97, %v213
    %v215 = vpop.f32.mrb[0].mxu0
    %v216 = vpop.f32.mrb[0].mxu0
    %v217 = vadd.f32 %v97, %v216
    %v218 = vpop.f32.mrb[0].mxu0
    %219 = vmatprep.mubr.bf16.mxu0 0
    %220 = vmatmul.mubr.bf16.gmra.mrb[0].mxu0 %v65
    %v221 = vpop.f32.mrb[0].mxu0
    %v222 = vadd.f32 %v97, %v221
    %v223 = vpop.f32.mrb[0].mxu0
    %v224 = vpop.f32.mrb[0].mxu0
    %v225 = vadd.f32 %v97, %v224
    %v226 = vpop.f32.mrb[0].mxu0
    %227 = vmatprep.mubr.bf16.mxu0 0
    %228 = vmatmul.mubr.bf16.gmra.mrb[0].mxu0 %v66
    %v229 = vpop.f32.mrb[0].mxu0
    %v230 = vadd.f32 %v97, %v229
    %v231 = vpop.f32.mrb[0].mxu0
    %v232 = vpop.f32.mrb[0].mxu0
    %v233 = vadd.f32 %v97, %v232
    %v234 = vpop.f32.mrb[0].mxu0
    %235 = vmatprep.mubr.bf16.mxu0 0
    %236 = vmatmul.mubr.bf16.gmra.mrb[0].mxu0 %v67
    %v237 = vpop.f32.mrb[0].mxu0
    %v238 = vadd.f32 %v97, %v237
    %v239 = vpop.f32.mrb[0].mxu0
    %v240 = vpop.f32.mrb[0].mxu0
    %v241 = vadd.f32 %v97, %v240
    %v242 = vpop.f32.mrb[0].mxu0
    %243 = vmatprep.mubr.bf16.mxu0 0
    %244 = vmatmul.mubr.bf16.gmra.mrb[0].mxu0 %v68
    %v245 = vpop.f32.mrb[0].mxu0
    %v246 = vadd.f32 %v97, %v245
    %v247 = vpop.f32.mrb[0].mxu0
    %v248 = vpop.f32.mrb[0].mxu0
    %v249 = vadd.f32 %v97, %v248
    %v250 = vpop.f32.mrb[0].mxu0
    %251 = vmatprep.mubr.bf16.mxu0 0
    %252 = vmatmul.mubr.bf16.gmra.mrb[0].mxu0 %v69
    %v253 = vpop.f32.mrb[0].mxu0
    %v254 = vadd.f32 %v97, %v253
    %v255 = vpop.f32.mrb[0].mxu0
    %v256 = vpop.f32.mrb[0].mxu0
    %v257 = vadd.f32 %v97, %v256
    %v258 = vpop.f32.mrb[0].mxu0
    %259 = vmatprep.mubr.bf16.mxu0 0
    %260 = vmatmul.mubr.bf16.gmra.mrb[0].mxu0 %v70
    %v261 = vpop.f32.mrb[0].mxu0
    %v262 = vadd.f32 %v97, %v261
    %v263 = vpop.f32.mrb[0].mxu0
    %v264 = vpop.f32.mrb[0].mxu0
    %v265 = vadd.f32 %v97, %v264
    %v266 = vpop.f32.mrb[0].mxu0
    %267 = vmatprep.mubr.bf16.mxu0 0
    %268 = vmatmul.mubr.bf16.gmra.mrb[0].mxu0 %v71
    %v269 = vpop.f32.mrb[0].mxu0
    %v270 = vadd.f32 %v97, %v269
    %v271 = vpop.f32.mrb[0].mxu0
    %v272 = vpop.f32.mrb[0].mxu0
    %v273 = vadd.f32 %v97, %v272
    %v274 = vpop.f32.mrb[0].mxu0
    %275 = vmatprep.mubr.bf16.mxu0 0
    %276 = vmatmul.mubr.bf16.gmra.mrb[0].mxu0 %v72
    %v277 = vpop.f32.mrb[0].mxu0
    %v278 = vadd.f32 %v97, %v277
    %v279 = vpop.f32.mrb[0].mxu0
    %v280 = vpop.f32.mrb[0].mxu0
    %v281 = vadd.f32 %v97, %v280
    %v282 = vpop.f32.mrb[0].mxu0
    %283 = vmatprep.mubr.bf16.mxu0 0
    %284 = vmatmul.mubr.bf16.gmra.mrb[0].mxu0 %v73
    %v285 = vpop.f32.mrb[0].mxu0
    %v286 = vadd.f32 %v97, %v285
    %v287 = vpop.f32.mrb[0].mxu0
    %v288 = vpop.f32.mrb[0].mxu0
    %v289 = vadd.f32 %v97, %v288
    %v290 = vpop.f32.mrb[0].mxu0
    %291 = vmatprep.mubr.bf16.mxu0 0
    %292 = vmatmul.mubr.bf16.gmra.mrb[0].mxu0 %v74
    %v293 = vpop.f32.mrb[0].mxu0
    %v294 = vadd.f32 %v97, %v293
    %v295 = vpop.f32.mrb[0].mxu0
    %v296 = vpop.f32.mrb[0].mxu0
    %v297 = vadd.f32 %v97, %v296
    %v298 = vpop.f32.mrb[0].mxu0
    %299 = vmatprep.mubr.bf16.mxu0 0
    %300 = vmatmul.mubr.bf16.gmra.mrb[0].mxu0 %v75
    %v301 = vpop.f32.mrb[0].mxu0
    %v302 = vadd.f32 %v97, %v301
    %v303 = vpop.f32.mrb[0].mxu0
    %v304 = vpop.f32.mrb[0].mxu0
    %v305 = vadd.f32 %v97, %v304
    %v306 = vpop.f32.mrb[0].mxu0
    %307 = vdwg.mxu0
    %v308 = vmax.f32 %v182, 0.0
    %v309 = vmax.f32 %v185, 0.0
    %v310 = vmax.f32 %v190, 0.0
    %v311 = vmax.f32 %v193, 0.0
    %v312 = vmax.f32 %v198, 0.0
    %v313 = vmax.f32 %v201, 0.0
    %v314 = vmax.f32 %v206, 0.0
    %v315 = vmax.f32 %v209, 0.0
    %v316 = vmax.f32 %v214, 0.0
    %v317 = vmax.f32 %v217, 0.0
    %v318 = vmax.f32 %v222, 0.0
    %v319 = vmax.f32 %v225, 0.0
    %v320 = vmax.f32 %v230, 0.0
    %v321 = vmax.f32 %v233, 0.0
    %v322 = vmax.f32 %v238, 0.0
    %v323 = vmax.f32 %v241, 0.0
    %v324 = vmax.f32 %v246, 0.0
    %v325 = vmax.f32 %v249, 0.0
    %v326 = vmax.f32 %v254, 0.0
    %v327 = vmax.f32 %v257, 0.0
    %v328 = vmax.f32 %v262, 0.0
    %v329 = vmax.f32 %v265, 0.0
    %v330 = vmax.f32 %v270, 0.0
    %v331 = vmax.f32 %v273, 0.0
    %v332 = vmax.f32 %v278, 0.0
    %v333 = vmax.f32 %v281, 0.0
    %v334 = vmax.f32 %v286, 0.0
    %v335 = vmax.f32 %v289, 0.0
    %v336 = vmax.f32 %v294, 0.0
    %v337 = vmax.f32 %v297, 0.0
    %v338 = vmax.f32 %v302, 0.0
    %v339 = vmax.f32 %v305, 0.0
    %vm340 = vcmask 257024
    %341 = vst.msk [vmem:[#allocation2] sm:$0xf] %vm340, 0
    %vm342 = vcmask 253952
    %343 = vst.msk [vmem:[#allocation2 + $0x4] sm:$0x1] %vm342, 0
    %344 = vst.msk [vmem:[#allocation2 + $0x50] sm:$0xf] %vm340, 0
    %345 = vst.msk [vmem:[#allocation2 + $0x54] sm:$0x1] %vm342, 0
    %346 = vst.msk [vmem:[#allocation2 + $0xa0] sm:$0xf] %vm340, 0
    %347 = vst.msk [vmem:[#allocation2 + $0xa4] sm:$0x1] %vm342, 0
    %348 = vst.msk [vmem:[#allocation2 + $0xf0] sm:$0xf] %vm340, 0
    %349 = vst.msk [vmem:[#allocation2 + $0xf4] sm:$0x1] %vm342, 0
    %s350 = scalar_lea.vmem [#allocation2], 72
    %351 = vst.msk [vmem:[%s350] sm:$0xf] %vm340, 0
    %352 = vst.msk [vmem:[%s350 + $0x4] sm:$0x1] %vm342, 0
    %353 = vst.msk [vmem:[%s350 + $0x50] sm:$0xf] %vm340, 0
    %354 = vst.msk [vmem:[%s350 + $0x54] sm:$0x1] %vm342, 0
    %355 = vst.msk [vmem:[%s350 + $0xa0] sm:$0xf] %vm340, 0
    %356 = vst.msk [vmem:[%s350 + $0xa4] sm:$0x1] %vm342, 0
    %357 = vst.msk [vmem:[%s350 + $0xf0] sm:$0xf] %vm340, 0
    %358 = vst.msk [vmem:[%s350 + $0xf4] sm:$0x1] %vm342, 0
    %s359 = scalar_lea.vmem [#allocation2], 8
    %vm360 = vcmask 253952
    %vm361 = vsmask.f32 256
    %vm362 = vmand %vm360, %vm361
    %v363 = vld [vmem:[%s359] sm:$0x1]
    %v364 = vsel %vm362, 0, %v363
    %365 = vst [vmem:[%s359] sm:$0x1] %v364
    %v366 = vld [vmem:[%s359 + $0x8] sm:$0x1]
    %v367 = vsel %vm362, 0, %v366
    %368 = vst [vmem:[%s359 + $0x8] sm:$0x1] %v367
    %v369 = vld [vmem:[%s359 + $0x10] sm:$0x1]
    %v370 = vsel %vm362, 0, %v369
    %371 = vst [vmem:[%s359 + $0x10] sm:$0x1] %v370
    %v372 = vld [vmem:[%s359 + $0x18] sm:$0x1]
    %v373 = vsel %vm362, 0, %v372
    %374 = vst [vmem:[%s359 + $0x18] sm:$0x1] %v373
    %v375 = vld [vmem:[%s359 + $0x20] sm:$0x1]
    %v376 = vsel %vm362, 0, %v375
    %377 = vst [vmem:[%s359 + $0x20] sm:$0x1] %v376
    %v378 = vld [vmem:[%s359 + $0x28] sm:$0x1]
    %v379 = vsel %vm362, 0, %v378
    %380 = vst [vmem:[%s359 + $0x28] sm:$0x1] %v379
    %v381 = vld [vmem:[%s359 + $0x30] sm:$0x1]
    %v382 = vsel %vm362, 0, %v381
    %383 = vst [vmem:[%s359 + $0x30] sm:$0x1] %v382
    %v384 = vld [vmem:[%s359 + $0x38] sm:$0x1]
    %v385 = vsel %vm362, 0, %v384
    %386 = vst [vmem:[%s359 + $0x38] sm:$0x1] %v385
    %v387 = vld [vmem:[%s359 + $0x50] sm:$0x1]
    %v388 = vsel %vm362, 0, %v387
    %389 = vst [vmem:[%s359 + $0x50] sm:$0x1] %v388
    %v390 = vld [vmem:[%s359 + $0x58] sm:$0x1]
    %v391 = vsel %vm362, 0, %v390
    %392 = vst [vmem:[%s359 + $0x58] sm:$0x1] %v391
    %v393 = vld [vmem:[%s359 + $0x60] sm:$0x1]
    %v394 = vsel %vm362, 0, %v393
    %395 = vst [vmem:[%s359 + $0x60] sm:$0x1] %v394
    %v396 = vld [vmem:[%s359 + $0x68] sm:$0x1]
    %v397 = vsel %vm362, 0, %v396
    %398 = vst [vmem:[%s359 + $0x68] sm:$0x1] %v397
    %v399 = vld [vmem:[%s359 + $0x70] sm:$0x1]
    %v400 = vsel %vm362, 0, %v399
    %401 = vst [vmem:[%s359 + $0x70] sm:$0x1] %v400
    %v402 = vld [vmem:[%s359 + $0x78] sm:$0x1]
    %v403 = vsel %vm362, 0, %v402
    %404 = vst [vmem:[%s359 + $0x78] sm:$0x1] %v403
    %v405 = vld [vmem:[%s359 + $0x80] sm:$0x1]
    %v406 = vsel %vm362, 0, %v405
    %407 = vst [vmem:[%s359 + $0x80] sm:$0x1] %v406
    %v408 = vld [vmem:[%s359 + $0x88] sm:$0x1]
    %v409 = vsel %vm362, 0, %v408
    %410 = vst [vmem:[%s359 + $0x88] sm:$0x1] %v409
    %v411 = vld [vmem:[%s359 + $0xa0] sm:$0x1]
    %v412 = vsel %vm362, 0, %v411
    %413 = vst [vmem:[%s359 + $0xa0] sm:$0x1] %v412
    %v414 = vld [vmem:[%s359 + $0xa8] sm:$0x1]
    %v415 = vsel %vm362, 0, %v414
    %416 = vst [vmem:[%s359 + $0xa8] sm:$0x1] %v415
    %v417 = vld [vmem:[%s359 + $0xb0] sm:$0x1]
    %v418 = vsel %vm362, 0, %v417
    %419 = vst [vmem:[%s359 + $0xb0] sm:$0x1] %v418
    %v420 = vld [vmem:[%s359 + $0xb8] sm:$0x1]
    %v421 = vsel %vm362, 0, %v420
    %422 = vst [vmem:[%s359 + $0xb8] sm:$0x1] %v421
    %v423 = vld [vmem:[%s359 + $0xc0] sm:$0x1]
    %v424 = vsel %vm362, 0, %v423
    %425 = vst [vmem:[%s359 + $0xc0] sm:$0x1] %v424
    %v426 = vld [vmem:[%s359 + $0xc8] sm:$0x1]
    %v427 = vsel %vm362, 0, %v426
    %428 = vst [vmem:[%s359 + $0xc8] sm:$0x1] %v427
    %v429 = vld [vmem:[%s359 + $0xd0] sm:$0x1]
    %v430 = vsel %vm362, 0, %v429
    %431 = vst [vmem:[%s359 + $0xd0] sm:$0x1] %v430
    %v432 = vld [vmem:[%s359 + $0xd8] sm:$0x1]
    %v433 = vsel %vm362, 0, %v432
    %434 = vst [vmem:[%s359 + $0xd8] sm:$0x1] %v433
    %v435 = vld [vmem:[%s359 + $0xf0] sm:$0x1]
    %v436 = vsel %vm362, 0, %v435
    %437 = vst [vmem:[%s359 + $0xf0] sm:$0x1] %v436
    %v438 = vld [vmem:[%s359 + $0xf8] sm:$0x1]
    %v439 = vsel %vm362, 0, %v438
    %440 = vst [vmem:[%s359 + $0xf8] sm:$0x1] %v439
    %v441 = vld [vmem:[%s359 + $0x100] sm:$0x1]
    %v442 = vsel %vm362, 0, %v441
    %443 = vst [vmem:[%s359 + $0x100] sm:$0x1] %v442
    %v444 = vld [vmem:[%s359 + $0x108] sm:$0x1]
    %v445 = vsel %vm362, 0, %v444
    %446 = vst [vmem:[%s359 + $0x108] sm:$0x1] %v445
    %v447 = vld [vmem:[%s359 + $0x110] sm:$0x1]
    %v448 = vsel %vm362, 0, %v447
    %449 = vst [vmem:[%s359 + $0x110] sm:$0x1] %v448
    %v450 = vld [vmem:[%s359 + $0x118] sm:$0x1]
    %v451 = vsel %vm362, 0, %v450
    %452 = vst [vmem:[%s359 + $0x118] sm:$0x1] %v451
    %v453 = vld [vmem:[%s359 + $0x120] sm:$0x1]
    %v454 = vsel %vm362, 0, %v453
    %455 = vst [vmem:[%s359 + $0x120] sm:$0x1] %v454
    %v456 = vld [vmem:[%s359 + $0x128] sm:$0x1]
    %v457 = vsel %vm362, 0, %v456
    %458 = vst [vmem:[%s359 + $0x128] sm:$0x1] %v457
    %vm459 = vsmask.f32 7938
    %vm460 = vmand %vm360, %vm459
    %v461 = vld [vmem:[%s359 + $0x4] sm:$0x1]
    %v462 = vsel %vm460, 0, %v461
    %463 = vst [vmem:[%s359 + $0x4] sm:$0x1] %v462
    %v464 = vld [vmem:[%s359 + $0xc] sm:$0x1]
    %v465 = vsel %vm460, 0, %v464
    %466 = vst [vmem:[%s359 + $0xc] sm:$0x1] %v465
    %v467 = vld [vmem:[%s359 + $0x14] sm:$0x1]
    %v468 = vsel %vm460, 0, %v467
    %469 = vst [vmem:[%s359 + $0x14] sm:$0x1] %v468
    %v470 = vld [vmem:[%s359 + $0x1c] sm:$0x1]
    %v471 = vsel %vm460, 0, %v470
    %472 = vst [vmem:[%s359 + $0x1c] sm:$0x1] %v471
    %v473 = vld [vmem:[%s359 + $0x24] sm:$0x1]
    %v474 = vsel %vm460, 0, %v473
    %475 = vst [vmem:[%s359 + $0x24] sm:$0x1] %v474
    %v476 = vld [vmem:[%s359 + $0x2c] sm:$0x1]
    %v477 = vsel %vm460, 0, %v476
    %478 = vst [vmem:[%s359 + $0x2c] sm:$0x1] %v477
    %v479 = vld [vmem:[%s359 + $0x34] sm:$0x1]
    %v480 = vsel %vm460, 0, %v479
    %481 = vst [vmem:[%s359 + $0x34] sm:$0x1] %v480
    %v482 = vld [vmem:[%s359 + $0x3c] sm:$0x1]
    %v483 = vsel %vm460, 0, %v482
    %484 = vst [vmem:[%s359 + $0x3c] sm:$0x1] %v483
    %v485 = vld [vmem:[%s359 + $0x54] sm:$0x1]
    %v486 = vsel %vm460, 0, %v485
    %487 = vst [vmem:[%s359 + $0x54] sm:$0x1] %v486
    %v488 = vld [vmem:[%s359 + $0x5c] sm:$0x1]
    %v489 = vsel %vm460, 0, %v488
    %490 = vst [vmem:[%s359 + $0x5c] sm:$0x1] %v489
    %v491 = vld [vmem:[%s359 + $0x64] sm:$0x1]
    %v492 = vsel %vm460, 0, %v491
    %493 = vst [vmem:[%s359 + $0x64] sm:$0x1] %v492
    %v494 = vld [vmem:[%s359 + $0x6c] sm:$0x1]
    %v495 = vsel %vm460, 0, %v494
    %496 = vst [vmem:[%s359 + $0x6c] sm:$0x1] %v495
    %v497 = vld [vmem:[%s359 + $0x74] sm:$0x1]
    %v498 = vsel %vm460, 0, %v497
    %499 = vst [vmem:[%s359 + $0x74] sm:$0x1] %v498
    %v500 = vld [vmem:[%s359 + $0x7c] sm:$0x1]
    %v501 = vsel %vm460, 0, %v500
    %502 = vst [vmem:[%s359 + $0x7c] sm:$0x1] %v501
    %v503 = vld [vmem:[%s359 + $0x84] sm:$0x1]
    %v504 = vsel %vm460, 0, %v503
    %505 = vst [vmem:[%s359 + $0x84] sm:$0x1] %v504
    %v506 = vld [vmem:[%s359 + $0x8c] sm:$0x1]
    %v507 = vsel %vm460, 0, %v506
    %508 = vst [vmem:[%s359 + $0x8c] sm:$0x1] %v507
    %v509 = vld [vmem:[%s359 + $0xa4] sm:$0x1]
    %v510 = vsel %vm460, 0, %v509
    %511 = vst [vmem:[%s359 + $0xa4] sm:$0x1] %v510
    %v512 = vld [vmem:[%s359 + $0xac] sm:$0x1]
    %v513 = vsel %vm460, 0, %v512
    %514 = vst [vmem:[%s359 + $0xac] sm:$0x1] %v513
    %v515 = vld [vmem:[%s359 + $0xb4] sm:$0x1]
    %v516 = vsel %vm460, 0, %v515
    %517 = vst [vmem:[%s359 + $0xb4] sm:$0x1] %v516
    %v518 = vld [vmem:[%s359 + $0xbc] sm:$0x1]
    %v519 = vsel %vm460, 0, %v518
    %520 = vst [vmem:[%s359 + $0xbc] sm:$0x1] %v519
    %v521 = vld [vmem:[%s359 + $0xc4] sm:$0x1]
    %v522 = vsel %vm460, 0, %v521
    %523 = vst [vmem:[%s359 + $0xc4] sm:$0x1] %v522
    %v524 = vld [vmem:[%s359 + $0xcc] sm:$0x1]
    %v525 = vsel %vm460, 0, %v524
    %526 = vst [vmem:[%s359 + $0xcc] sm:$0x1] %v525
    %v527 = vld [vmem:[%s359 + $0xd4] sm:$0x1]
    %v528 = vsel %vm460, 0, %v527
    %529 = vst [vmem:[%s359 + $0xd4] sm:$0x1] %v528
    %v530 = vld [vmem:[%s359 + $0xdc] sm:$0x1]
    %v531 = vsel %vm460, 0, %v530
    %532 = vst [vmem:[%s359 + $0xdc] sm:$0x1] %v531
    %v533 = vld [vmem:[%s359 + $0xf4] sm:$0x1]
    %v534 = vsel %vm460, 0, %v533
    %535 = vst [vmem:[%s359 + $0xf4] sm:$0x1] %v534
    %v536 = vld [vmem:[%s359 + $0xfc] sm:$0x1]
    %v537 = vsel %vm460, 0, %v536
    %538 = vst [vmem:[%s359 + $0xfc] sm:$0x1] %v537
    %v539 = vld [vmem:[%s359 + $0x104] sm:$0x1]
    %v540 = vsel %vm460, 0, %v539
    %541 = vst [vmem:[%s359 + $0x104] sm:$0x1] %v540
    %v542 = vld [vmem:[%s359 + $0x10c] sm:$0x1]
    %v543 = vsel %vm460, 0, %v542
    %544 = vst [vmem:[%s359 + $0x10c] sm:$0x1] %v543
    %v545 = vld [vmem:[%s359 + $0x114] sm:$0x1]
    %v546 = vsel %vm460, 0, %v545
    %547 = vst [vmem:[%s359 + $0x114] sm:$0x1] %v546
    %v548 = vld [vmem:[%s359 + $0x11c] sm:$0x1]
    %v549 = vsel %vm460, 0, %v548
    %550 = vst [vmem:[%s359 + $0x11c] sm:$0x1] %v549
    %v551 = vld [vmem:[%s359 + $0x124] sm:$0x1]
    %v552 = vsel %vm460, 0, %v551
    %553 = vst [vmem:[%s359 + $0x124] sm:$0x1] %v552
    %v554 = vld [vmem:[%s359 + $0x12c] sm:$0x1]
    %v555 = vsel %vm460, 0, %v554
    %556 = vst [vmem:[%s359 + $0x12c] sm:$0x1] %v555
    %v557 = vpack.c.bf16 %v309, %v308
    %v558 = vpack.c.bf16 %v311, %v310
    %v559 = vpack.c.bf16 %v313, %v312
    %v560 = vpack.c.bf16 %v315, %v314
    %v561 = vpack.c.bf16 %v317, %v316
    %v562 = vpack.c.bf16 %v319, %v318
    %v563 = vpack.c.bf16 %v321, %v320
    %v564 = vpack.c.bf16 %v323, %v322
    %v565 = vpack.c.bf16 %v325, %v324
    %v566 = vpack.c.bf16 %v327, %v326
    %v567 = vpack.c.bf16 %v329, %v328
    %v568 = vpack.c.bf16 %v331, %v330
    %v569 = vpack.c.bf16 %v333, %v332
    %v570 = vpack.c.bf16 %v335, %v334
    %v571 = vpack.c.bf16 %v337, %v336
    %v572 = vpack.c.bf16 %v339, %v338
    %v589 = vunpack.c.l.b16 %v557
    %v590 = vunpack.c.h.b16 %v557
    %v591 = vunpack.c.l.b16 %v558
    %v592 = vunpack.c.h.b16 %v558
    %v593 = vunpack.c.l.b16 %v559
    %v594 = vunpack.c.h.b16 %v559
    %v595 = vunpack.c.l.b16 %v560
    %v596 = vunpack.c.h.b16 %v560
    %v597 = vunpack.c.l.b16 %v561
    %v598 = vunpack.c.h.b16 %v561
    %v599 = vunpack.c.l.b16 %v562
    %v600 = vunpack.c.h.b16 %v562
    %v601 = vunpack.c.l.b16 %v563
    %v602 = vunpack.c.h.b16 %v563
    %v603 = vunpack.c.l.b16 %v564
    %v604 = vunpack.c.h.b16 %v564
    %v605 = vunpack.c.l.b16 %v565
    %v606 = vunpack.c.h.b16 %v565
    %v607 = vunpack.c.l.b16 %v566
    %v608 = vunpack.c.h.b16 %v566
    %v609 = vunpack.c.l.b16 %v567
    %v610 = vunpack.c.h.b16 %v567
    %v611 = vunpack.c.l.b16 %v568
    %v612 = vunpack.c.h.b16 %v568
    %v613 = vunpack.c.l.b16 %v569
    %v614 = vunpack.c.h.b16 %v569
    %v615 = vunpack.c.l.b16 %v570
    %v616 = vunpack.c.h.b16 %v570
    %v617 = vunpack.c.l.b16 %v571
    %v618 = vunpack.c.h.b16 %v571
    %v619 = vunpack.c.l.b16 %v572
    %v620 = vunpack.c.h.b16 %v572
    %v621 = vpack.c.b16 %v589, %v589
    %v622 = vpack.c.b16 %v590, %v590
    %v623 = vpack.c.b16 %v591, %v591
    %v624 = vpack.c.b16 %v592, %v592
    %v625 = vpack.c.b16 %v593, %v593
    %v626 = vpack.c.b16 %v594, %v594
    %v627 = vpack.c.b16 %v595, %v595
    %v628 = vpack.c.b16 %v596, %v596
    %v629 = vpack.c.b16 %v597, %v597
    %v630 = vpack.c.b16 %v598, %v598
    %v631 = vpack.c.b16 %v599, %v599
    %v632 = vpack.c.b16 %v600, %v600
    %v633 = vpack.c.b16 %v601, %v601
    %v634 = vpack.c.b16 %v602, %v602
    %v635 = vpack.c.b16 %v603, %v603
    %v636 = vpack.c.b16 %v604, %v604
    %v637 = vpack.c.b16 %v605, %v605
    %v638 = vpack.c.b16 %v606, %v606
    %v639 = vpack.c.b16 %v607, %v607
    %v640 = vpack.c.b16 %v608, %v608
    %v641 = vpack.c.b16 %v609, %v609
    %v642 = vpack.c.b16 %v610, %v610
    %v643 = vpack.c.b16 %v611, %v611
    %v644 = vpack.c.b16 %v612, %v612
    %v645 = vpack.c.b16 %v613, %v613
    %v646 = vpack.c.b16 %v614, %v614
    %v647 = vpack.c.b16 %v615, %v615
    %v648 = vpack.c.b16 %v616, %v616
    %v649 = vpack.c.b16 %v617, %v617
    %v650 = vpack.c.b16 %v618, %v618
    %v651 = vpack.c.b16 %v619, %v619
    %v652 = vpack.c.b16 %v620, %v620
    %v654 = vshrl.u32 %v621, 16
    %v656 = vrot.slane %v654, 7
    %v657 = vshll.u32 %v621, 16
    %v659 = vor.u32 %v656, %v657
    %v660 = vrot.slane %v656, 4
    %v662 = vshrl.u32 %v622, 16
    %v664 = vrot.slane %v662, 7
    %v665 = vshll.u32 %v622, 16
    %v667 = vor.u32 %v664, %v665
    %v668 = vrot.slane %v664, 4
    %v670 = vshrl.u32 %v623, 16
    %v672 = vrot.slane %v670, 7
    %v673 = vshll.u32 %v623, 16
    %v675 = vor.u32 %v672, %v673
    %v676 = vrot.slane %v672, 4
    %v678 = vshrl.u32 %v624, 16
    %v680 = vrot.slane %v678, 7
    %v681 = vshll.u32 %v624, 16
    %v683 = vor.u32 %v680, %v681
    %v684 = vrot.slane %v680, 4
    %v686 = vshrl.u32 %v625, 16
    %v688 = vrot.slane %v686, 7
    %v689 = vshll.u32 %v625, 16
    %v691 = vor.u32 %v688, %v689
    %v692 = vrot.slane %v688, 4
    %v694 = vshrl.u32 %v626, 16
    %v696 = vrot.slane %v694, 7
    %v697 = vshll.u32 %v626, 16
    %v699 = vor.u32 %v696, %v697
    %v700 = vrot.slane %v696, 4
    %v702 = vshrl.u32 %v627, 16
    %v704 = vrot.slane %v702, 7
    %v705 = vshll.u32 %v627, 16
    %v707 = vor.u32 %v704, %v705
    %v708 = vrot.slane %v704, 4
    %v710 = vshrl.u32 %v628, 16
    %v712 = vrot.slane %v710, 7
    %v713 = vshll.u32 %v628, 16
    %v715 = vor.u32 %v712, %v713
    %v716 = vrot.slane %v712, 4
    %v718 = vshrl.u32 %v629, 16
    %v720 = vrot.slane %v718, 7
    %v721 = vshll.u32 %v629, 16
    %v723 = vor.u32 %v720, %v721
    %v724 = vrot.slane %v720, 4
    %v726 = vshrl.u32 %v630, 16
    %v728 = vrot.slane %v726, 7
    %v729 = vshll.u32 %v630, 16
    %v731 = vor.u32 %v728, %v729
    %v732 = vrot.slane %v728, 4
    %v734 = vshrl.u32 %v631, 16
    %v736 = vrot.slane %v734, 7
    %v737 = vshll.u32 %v631, 16
    %v739 = vor.u32 %v736, %v737
    %v740 = vrot.slane %v736, 4
    %v742 = vshrl.u32 %v632, 16
    %v744 = vrot.slane %v742, 7
    %v745 = vshll.u32 %v632, 16
    %v747 = vor.u32 %v744, %v745
    %v748 = vrot.slane %v744, 4
    %v750 = vshrl.u32 %v633, 16
    %v752 = vrot.slane %v750, 7
    %v753 = vshll.u32 %v633, 16
    %v755 = vor.u32 %v752, %v753
    %v756 = vrot.slane %v752, 4
    %v758 = vshrl.u32 %v634, 16
    %v760 = vrot.slane %v758, 7
    %v761 = vshll.u32 %v634, 16
    %v763 = vor.u32 %v760, %v761
    %v764 = vrot.slane %v760, 4
    %v766 = vshrl.u32 %v635, 16
    %v768 = vrot.slane %v766, 7
    %v769 = vshll.u32 %v635, 16
    %v771 = vor.u32 %v768, %v769
    %v772 = vrot.slane %v768, 4
    %v774 = vshrl.u32 %v636, 16
    %v776 = vrot.slane %v774, 7
    %v777 = vshll.u32 %v636, 16
    %v779 = vor.u32 %v776, %v777
    %v780 = vrot.slane %v776, 4
    %v782 = vshrl.u32 %v637, 16
    %v784 = vrot.slane %v782, 7
    %v785 = vshll.u32 %v637, 16
    %v787 = vor.u32 %v784, %v785
    %v788 = vrot.slane %v784, 4
    %v790 = vshrl.u32 %v638, 16
    %v792 = vrot.slane %v790, 7
    %v793 = vshll.u32 %v638, 16
    %v795 = vor.u32 %v792, %v793
    %v796 = vrot.slane %v792, 4
    %v798 = vshrl.u32 %v639, 16
    %v800 = vrot.slane %v798, 7
    %v801 = vshll.u32 %v639, 16
    %v803 = vor.u32 %v800, %v801
    %v804 = vrot.slane %v800, 4
    %v806 = vshrl.u32 %v640, 16
    %v808 = vrot.slane %v806, 7
    %v809 = vshll.u32 %v640, 16
    %v811 = vor.u32 %v808, %v809
    %v812 = vrot.slane %v808, 4
    %v814 = vshrl.u32 %v641, 16
    %v816 = vrot.slane %v814, 7
    %v817 = vshll.u32 %v641, 16
    %v819 = vor.u32 %v816, %v817
    %v820 = vrot.slane %v816, 4
    %v822 = vshrl.u32 %v642, 16
    %v824 = vrot.slane %v822, 7
    %v825 = vshll.u32 %v642, 16
    %v827 = vor.u32 %v824, %v825
    %v828 = vrot.slane %v824, 4
    %v830 = vshrl.u32 %v643, 16
    %v832 = vrot.slane %v830, 7
    %v833 = vshll.u32 %v643, 16
    %v835 = vor.u32 %v832, %v833
    %v836 = vrot.slane %v832, 4
    %v838 = vshrl.u32 %v644, 16
    %v840 = vrot.slane %v838, 7
    %v841 = vshll.u32 %v644, 16
    %v843 = vor.u32 %v840, %v841
    %v844 = vrot.slane %v840, 4
    %v846 = vshrl.u32 %v645, 16
    %v848 = vrot.slane %v846, 7
    %v849 = vshll.u32 %v645, 16
    %v851 = vor.u32 %v848, %v849
    %v852 = vrot.slane %v848, 4
    %v854 = vshrl.u32 %v646, 16
    %v856 = vrot.slane %v854, 7
    %v857 = vshll.u32 %v646, 16
    %v859 = vor.u32 %v856, %v857
    %v860 = vrot.slane %v856, 4
    %v862 = vshrl.u32 %v647, 16
    %v864 = vrot.slane %v862, 7
    %v865 = vshll.u32 %v647, 16
    %v867 = vor.u32 %v864, %v865
    %v868 = vrot.slane %v864, 4
    %v870 = vshrl.u32 %v648, 16
    %v872 = vrot.slane %v870, 7
    %v873 = vshll.u32 %v648, 16
    %v875 = vor.u32 %v872, %v873
    %v876 = vrot.slane %v872, 4
    %v878 = vshrl.u32 %v649, 16
    %v880 = vrot.slane %v878, 7
    %v881 = vshll.u32 %v649, 16
    %v883 = vor.u32 %v880, %v881
    %v884 = vrot.slane %v880, 4
    %v886 = vshrl.u32 %v650, 16
    %v888 = vrot.slane %v886, 7
    %v889 = vshll.u32 %v650, 16
    %v891 = vor.u32 %v888, %v889
    %v892 = vrot.slane %v888, 4
    %v894 = vshrl.u32 %v651, 16
    %v896 = vrot.slane %v894, 7
    %v897 = vshll.u32 %v651, 16
    %v899 = vor.u32 %v896, %v897
    %v900 = vrot.slane %v896, 4
    %v902 = vshrl.u32 %v652, 16
    %v904 = vrot.slane %v902, 7
    %v905 = vshll.u32 %v652, 16
    %v907 = vor.u32 %v904, %v905
    %v908 = vrot.slane %v904, 4
    %vm973 = vcmask 257024
    %vm974 = vmand %vm973, %vm459
    %v975 = vld [vmem:[%s359] sm:$0xf]
    %v976 = vsel %vm974, %v659, %v975
    %977 = vst [vmem:[%s359] sm:$0xf] %v976
    %v978 = vld [vmem:[%s359 + $0x4] sm:$0x1]
    %v979 = vsel %vm362, %v660, %v978
    %980 = vst [vmem:[%s359 + $0x4] sm:$0x1] %v979
    %v981 = vld [vmem:[%s359 + $0x8] sm:$0xf]
    %v982 = vsel %vm974, %v667, %v981
    %983 = vst [vmem:[%s359 + $0x8] sm:$0xf] %v982
    %v984 = vld [vmem:[%s359 + $0xc] sm:$0x1]
    %v985 = vsel %vm362, %v668, %v984
    %986 = vst [vmem:[%s359 + $0xc] sm:$0x1] %v985
    %v987 = vld [vmem:[%s359 + $0x10] sm:$0xf]
    %v988 = vsel %vm974, %v675, %v987
    %989 = vst [vmem:[%s359 + $0x10] sm:$0xf] %v988
    %v990 = vld [vmem:[%s359 + $0x14] sm:$0x1]
    %v991 = vsel %vm362, %v676, %v990
    %992 = vst [vmem:[%s359 + $0x14] sm:$0x1] %v991
    %v993 = vld [vmem:[%s359 + $0x18] sm:$0xf]
    %v994 = vsel %vm974, %v683, %v993
    %995 = vst [vmem:[%s359 + $0x18] sm:$0xf] %v994
    %v996 = vld [vmem:[%s359 + $0x1c] sm:$0x1]
    %v997 = vsel %vm362, %v684, %v996
    %998 = vst [vmem:[%s359 + $0x1c] sm:$0x1] %v997
    %v999 = vld [vmem:[%s359 + $0x20] sm:$0xf]
    %v1000 = vsel %vm974, %v691, %v999
    %1001 = vst [vmem:[%s359 + $0x20] sm:$0xf] %v1000
    %v1002 = vld [vmem:[%s359 + $0x24] sm:$0x1]
    %v1003 = vsel %vm362, %v692, %v1002
    %1004 = vst [vmem:[%s359 + $0x24] sm:$0x1] %v1003
    %v1005 = vld [vmem:[%s359 + $0x28] sm:$0xf]
    %v1006 = vsel %vm974, %v699, %v1005
    %1007 = vst [vmem:[%s359 + $0x28] sm:$0xf] %v1006
    %v1008 = vld [vmem:[%s359 + $0x2c] sm:$0x1]
    %v1009 = vsel %vm362, %v700, %v1008
    %1010 = vst [vmem:[%s359 + $0x2c] sm:$0x1] %v1009
    %v1011 = vld [vmem:[%s359 + $0x30] sm:$0xf]
    %v1012 = vsel %vm974, %v707, %v1011
    %1013 = vst [vmem:[%s359 + $0x30] sm:$0xf] %v1012
    %v1014 = vld [vmem:[%s359 + $0x34] sm:$0x1]
    %v1015 = vsel %vm362, %v708, %v1014
    %1016 = vst [vmem:[%s359 + $0x34] sm:$0x1] %v1015
    %v1017 = vld [vmem:[%s359 + $0x38] sm:$0xf]
    %v1018 = vsel %vm974, %v715, %v1017
    %1019 = vst [vmem:[%s359 + $0x38] sm:$0xf] %v1018
    %v1020 = vld [vmem:[%s359 + $0x3c] sm:$0x1]
    %v1021 = vsel %vm362, %v716, %v1020
    %1022 = vst [vmem:[%s359 + $0x3c] sm:$0x1] %v1021
    %v1023 = vld [vmem:[%s359 + $0x50] sm:$0xf]
    %v1024 = vsel %vm974, %v723, %v1023
    %1025 = vst [vmem:[%s359 + $0x50] sm:$0xf] %v1024
    %v1026 = vld [vmem:[%s359 + $0x54] sm:$0x1]
    %v1027 = vsel %vm362, %v724, %v1026
    %1028 = vst [vmem:[%s359 + $0x54] sm:$0x1] %v1027
    %v1029 = vld [vmem:[%s359 + $0x58] sm:$0xf]
    %v1030 = vsel %vm974, %v731, %v1029
    %1031 = vst [vmem:[%s359 + $0x58] sm:$0xf] %v1030
    %v1032 = vld [vmem:[%s359 + $0x5c] sm:$0x1]
    %v1033 = vsel %vm362, %v732, %v1032
    %1034 = vst [vmem:[%s359 + $0x5c] sm:$0x1] %v1033
    %v1035 = vld [vmem:[%s359 + $0x60] sm:$0xf]
    %v1036 = vsel %vm974, %v739, %v1035
    %1037 = vst [vmem:[%s359 + $0x60] sm:$0xf] %v1036
    %v1038 = vld [vmem:[%s359 + $0x64] sm:$0x1]
    %v1039 = vsel %vm362, %v740, %v1038
    %1040 = vst [vmem:[%s359 + $0x64] sm:$0x1] %v1039
    %v1041 = vld [vmem:[%s359 + $0x68] sm:$0xf]
    %v1042 = vsel %vm974, %v747, %v1041
    %1043 = vst [vmem:[%s359 + $0x68] sm:$0xf] %v1042
    %v1044 = vld [vmem:[%s359 + $0x6c] sm:$0x1]
    %v1045 = vsel %vm362, %v748, %v1044
    %1046 = vst [vmem:[%s359 + $0x6c] sm:$0x1] %v1045
    %v1047 = vld [vmem:[%s359 + $0x70] sm:$0xf]
    %v1048 = vsel %vm974, %v755, %v1047
    %1049 = vst [vmem:[%s359 + $0x70] sm:$0xf] %v1048
    %v1050 = vld [vmem:[%s359 + $0x74] sm:$0x1]
    %v1051 = vsel %vm362, %v756, %v1050
    %1052 = vst [vmem:[%s359 + $0x74] sm:$0x1] %v1051
    %v1053 = vld [vmem:[%s359 + $0x78] sm:$0xf]
    %v1054 = vsel %vm974, %v763, %v1053
    %1055 = vst [vmem:[%s359 + $0x78] sm:$0xf] %v1054
    %v1056 = vld [vmem:[%s359 + $0x7c] sm:$0x1]
    %v1057 = vsel %vm362, %v764, %v1056
    %1058 = vst [vmem:[%s359 + $0x7c] sm:$0x1] %v1057
    %v1059 = vld [vmem:[%s359 + $0x80] sm:$0xf]
    %v1060 = vsel %vm974, %v771, %v1059
    %1061 = vst [vmem:[%s359 + $0x80] sm:$0xf] %v1060
    %v1062 = vld [vmem:[%s359 + $0x84] sm:$0x1]
    %v1063 = vsel %vm362, %v772, %v1062
    %1064 = vst [vmem:[%s359 + $0x84] sm:$0x1] %v1063
    %v1065 = vld [vmem:[%s359 + $0x88] sm:$0xf]
    %v1066 = vsel %vm974, %v779, %v1065
    %1067 = vst [vmem:[%s359 + $0x88] sm:$0xf] %v1066
    %v1068 = vld [vmem:[%s359 + $0x8c] sm:$0x1]
    %v1069 = vsel %vm362, %v780, %v1068
    %1070 = vst [vmem:[%s359 + $0x8c] sm:$0x1] %v1069
    %v1071 = vld [vmem:[%s359 + $0xa0] sm:$0xf]
    %v1072 = vsel %vm974, %v787, %v1071
    %1073 = vst [vmem:[%s359 + $0xa0] sm:$0xf] %v1072
    %v1074 = vld [vmem:[%s359 + $0xa4] sm:$0x1]
    %v1075 = vsel %vm362, %v788, %v1074
    %1076 = vst [vmem:[%s359 + $0xa4] sm:$0x1] %v1075
    %v1077 = vld [vmem:[%s359 + $0xa8] sm:$0xf]
    %v1078 = vsel %vm974, %v795, %v1077
    %1079 = vst [vmem:[%s359 + $0xa8] sm:$0xf] %v1078
    %v1080 = vld [vmem:[%s359 + $0xac] sm:$0x1]
    %v1081 = vsel %vm362, %v796, %v1080
    %1082 = vst [vmem:[%s359 + $0xac] sm:$0x1] %v1081
    %v1083 = vld [vmem:[%s359 + $0xb0] sm:$0xf]
    %v1084 = vsel %vm974, %v803, %v1083
    %1085 = vst [vmem:[%s359 + $0xb0] sm:$0xf] %v1084
    %v1086 = vld [vmem:[%s359 + $0xb4] sm:$0x1]
    %v1087 = vsel %vm362, %v804, %v1086
    %1088 = vst [vmem:[%s359 + $0xb4] sm:$0x1] %v1087
    %v1089 = vld [vmem:[%s359 + $0xb8] sm:$0xf]
    %v1090 = vsel %vm974, %v811, %v1089
    %1091 = vst [vmem:[%s359 + $0xb8] sm:$0xf] %v1090
    %v1092 = vld [vmem:[%s359 + $0xbc] sm:$0x1]
    %v1093 = vsel %vm362, %v812, %v1092
    %1094 = vst [vmem:[%s359 + $0xbc] sm:$0x1] %v1093
    %v1095 = vld [vmem:[%s359 + $0xc0] sm:$0xf]
    %v1096 = vsel %vm974, %v819, %v1095
    %1097 = vst [vmem:[%s359 + $0xc0] sm:$0xf] %v1096
    %v1098 = vld [vmem:[%s359 + $0xc4] sm:$0x1]
    %v1099 = vsel %vm362, %v820, %v1098
    %1100 = vst [vmem:[%s359 + $0xc4] sm:$0x1] %v1099
    %v1101 = vld [vmem:[%s359 + $0xc8] sm:$0xf]
    %v1102 = vsel %vm974, %v827, %v1101
    %1103 = vst [vmem:[%s359 + $0xc8] sm:$0xf] %v1102
    %v1104 = vld [vmem:[%s359 + $0xcc] sm:$0x1]
    %v1105 = vsel %vm362, %v828, %v1104
    %1106 = vst [vmem:[%s359 + $0xcc] sm:$0x1] %v1105
    %v1107 = vld [vmem:[%s359 + $0xd0] sm:$0xf]
    %v1108 = vsel %vm974, %v835, %v1107
    %1109 = vst [vmem:[%s359 + $0xd0] sm:$0xf] %v1108
    %v1110 = vld [vmem:[%s359 + $0xd4] sm:$0x1]
    %v1111 = vsel %vm362, %v836, %v1110
    %1112 = vst [vmem:[%s359 + $0xd4] sm:$0x1] %v1111
    %v1113 = vld [vmem:[%s359 + $0xd8] sm:$0xf]
    %v1114 = vsel %vm974, %v843, %v1113
    %1115 = vst [vmem:[%s359 + $0xd8] sm:$0xf] %v1114
    %v1116 = vld [vmem:[%s359 + $0xdc] sm:$0x1]
    %v1117 = vsel %vm362, %v844, %v1116
    %1118 = vst [vmem:[%s359 + $0xdc] sm:$0x1] %v1117
    %v1119 = vld [vmem:[%s359 + $0xf0] sm:$0xf]
    %v1120 = vsel %vm974, %v851, %v1119
    %1121 = vst [vmem:[%s359 + $0xf0] sm:$0xf] %v1120
    %v1122 = vld [vmem:[%s359 + $0xf4] sm:$0x1]
    %v1123 = vsel %vm362, %v852, %v1122
    %1124 = vst [vmem:[%s359 + $0xf4] sm:$0x1] %v1123
    %v1125 = vld [vmem:[%s359 + $0xf8] sm:$0xf]
    %v1126 = vsel %vm974, %v859, %v1125
    %1127 = vst [vmem:[%s359 + $0xf8] sm:$0xf] %v1126
    %v1128 = vld [vmem:[%s359 + $0xfc] sm:$0x1]
    %v1129 = vsel %vm362, %v860, %v1128
    %1130 = vst [vmem:[%s359 + $0xfc] sm:$0x1] %v1129
    %v1131 = vld [vmem:[%s359 + $0x100] sm:$0xf]
    %v1132 = vsel %vm974, %v867, %v1131
    %1133 = vst [vmem:[%s359 + $0x100] sm:$0xf] %v1132
    %v1134 = vld [vmem:[%s359 + $0x104] sm:$0x1]
    %v1135 = vsel %vm362, %v868, %v1134
    %1136 = vst [vmem:[%s359 + $0x104] sm:$0x1] %v1135
    %v1137 = vld [vmem:[%s359 + $0x108] sm:$0xf]
    %v1138 = vsel %vm974, %v875, %v1137
    %1139 = vst [vmem:[%s359 + $0x108] sm:$0xf] %v1138
    %v1140 = vld [vmem:[%s359 + $0x10c] sm:$0x1]
    %v1141 = vsel %vm362, %v876, %v1140
    %1142 = vst [vmem:[%s359 + $0x10c] sm:$0x1] %v1141
    %v1143 = vld [vmem:[%s359 + $0x110] sm:$0xf]
    %v1144 = vsel %vm974, %v883, %v1143
    %1145 = vst [vmem:[%s359 + $0x110] sm:$0xf] %v1144
    %v1146 = vld [vmem:[%s359 + $0x114] sm:$0x1]
    %v1147 = vsel %vm362, %v884, %v1146
    %1148 = vst [vmem:[%s359 + $0x114] sm:$0x1] %v1147
    %v1149 = vld [vmem:[%s359 + $0x118] sm:$0xf]
    %v1150 = vsel %vm974, %v891, %v1149
    %1151 = vst [vmem:[%s359 + $0x118] sm:$0xf] %v1150
    %v1152 = vld [vmem:[%s359 + $0x11c] sm:$0x1]
    %v1153 = vsel %vm362, %v892, %v1152
    %1154 = vst [vmem:[%s359 + $0x11c] sm:$0x1] %v1153
    %v1155 = vld [vmem:[%s359 + $0x120] sm:$0xf]
    %v1156 = vsel %vm974, %v899, %v1155
    %1157 = vst [vmem:[%s359 + $0x120] sm:$0xf] %v1156
    %v1158 = vld [vmem:[%s359 + $0x124] sm:$0x1]
    %v1159 = vsel %vm362, %v900, %v1158
    %1160 = vst [vmem:[%s359 + $0x124] sm:$0x1] %v1159
    %v1161 = vld [vmem:[%s359 + $0x128] sm:$0xf]
    %v1162 = vsel %vm974, %v907, %v1161
    %1163 = vst [vmem:[%s359 + $0x128] sm:$0xf] %v1162
    %v1164 = vld [vmem:[%s359 + $0x12c] sm:$0x1]
    %v1165 = vsel %vm362, %v908, %v1164
    %1166 = vst [vmem:[%s359 + $0x12c] sm:$0x1] %v1165
    %v1167 = vld [vmem:[#allocation2] sm:$0xf]
    %v1168 = vld [vmem:[#allocation2 + $0x8] sm:$0xf]
    %v1169 = vld [vmem:[#allocation2 + $0x10] sm:$0xf]
    %v1170 = vld [vmem:[#allocation2 + $0x18] sm:$0xf]
    %v1171 = vld [vmem:[#allocation2 + $0x20] sm:$0xf]
    %v1172 = vld [vmem:[#allocation2 + $0x28] sm:$0xf]
    %v1173 = vld [vmem:[#allocation2 + $0x30] sm:$0xf]
    %v1174 = vld [vmem:[#allocation2 + $0x38] sm:$0xf]
    %v1175 = vld [vmem:[#allocation2 + $0x50] sm:$0xf]
    %v1176 = vld [vmem:[#allocation2 + $0x58] sm:$0xf]
    %v1177 = vld [vmem:[#allocation2 + $0x60] sm:$0xf]
    %v1178 = vld [vmem:[#allocation2 + $0x68] sm:$0xf]
    %v1179 = vld [vmem:[#allocation2 + $0x70] sm:$0xf]
    %v1180 = vld [vmem:[#allocation2 + $0x78] sm:$0xf]
    %v1181 = vld [vmem:[#allocation2 + $0x80] sm:$0xf]
    %v1182 = vld [vmem:[#allocation2 + $0x88] sm:$0xf]
    %v1183 = vld [vmem:[#allocation2 + $0xa0] sm:$0xf]
    %v1184 = vld [vmem:[#allocation2 + $0xa8] sm:$0xf]
    %v1185 = vld [vmem:[#allocation2 + $0xb0] sm:$0xf]
    %v1186 = vld [vmem:[#allocation2 + $0xb8] sm:$0xf]
    %v1187 = vld [vmem:[#allocation2 + $0xc0] sm:$0xf]
    %v1188 = vld [vmem:[#allocation2 + $0xc8] sm:$0xf]
    %v1189 = vld [vmem:[#allocation2 + $0xd0] sm:$0xf]
    %v1190 = vld [vmem:[#allocation2 + $0xd8] sm:$0xf]
    %v1191 = vld [vmem:[#allocation2 + $0xf0] sm:$0xf]
    %v1192 = vld [vmem:[#allocation2 + $0xf8] sm:$0xf]
    %v1193 = vld [vmem:[#allocation2 + $0x100] sm:$0xf]
    %v1194 = vld [vmem:[#allocation2 + $0x108] sm:$0xf]
    %v1195 = vld [vmem:[#allocation2 + $0x110] sm:$0xf]
    %v1196 = vld [vmem:[#allocation2 + $0x118] sm:$0xf]
    %v1197 = vld [vmem:[#allocation2 + $0x120] sm:$0xf]
    %v1198 = vld [vmem:[#allocation2 + $0x128] sm:$0xf]
    %v1231 = vunpack.c.l.b16 %v1167
    %v1232 = vunpack.c.l.b16 %v1168
    %v1233 = vunpack.c.l.b16 %v1169
    %v1234 = vunpack.c.l.b16 %v1170
    %v1235 = vunpack.c.l.b16 %v1171
    %v1236 = vunpack.c.l.b16 %v1172
    %v1237 = vunpack.c.l.b16 %v1173
    %v1238 = vunpack.c.l.b16 %v1174
    %v1239 = vunpack.c.l.b16 %v1175
    %v1240 = vunpack.c.l.b16 %v1176
    %v1241 = vunpack.c.l.b16 %v1177
    %v1242 = vunpack.c.l.b16 %v1178
    %v1243 = vunpack.c.l.b16 %v1179
    %v1244 = vunpack.c.l.b16 %v1180
    %v1245 = vunpack.c.l.b16 %v1181
    %v1246 = vunpack.c.l.b16 %v1182
    %v1247 = vunpack.c.l.b16 %v1183
    %v1248 = vunpack.c.l.b16 %v1184
    %v1249 = vunpack.c.l.b16 %v1185
    %v1250 = vunpack.c.l.b16 %v1186
    %v1251 = vunpack.c.l.b16 %v1187
    %v1252 = vunpack.c.l.b16 %v1188
    %v1253 = vunpack.c.l.b16 %v1189
    %v1254 = vunpack.c.l.b16 %v1190
    %v1255 = vunpack.c.l.b16 %v1191
    %v1256 = vunpack.c.l.b16 %v1192
    %v1257 = vunpack.c.l.b16 %v1193
    %v1258 = vunpack.c.l.b16 %v1194
    %v1259 = vunpack.c.l.b16 %v1195
    %v1260 = vunpack.c.l.b16 %v1196
    %v1261 = vunpack.c.l.b16 %v1197
    %v1262 = vunpack.c.l.b16 %v1198
    %v1263 = vpack.c.b16 %v1232, %v1231
    %v1264 = vpack.c.b16 %v1234, %v1233
    %v1265 = vpack.c.b16 %v1236, %v1235
    %v1266 = vpack.c.b16 %v1238, %v1237
    %v1267 = vpack.c.b16 %v1240, %v1239
    %v1268 = vpack.c.b16 %v1242, %v1241
    %v1269 = vpack.c.b16 %v1244, %v1243
    %v1270 = vpack.c.b16 %v1246, %v1245
    %v1271 = vpack.c.b16 %v1248, %v1247
    %v1272 = vpack.c.b16 %v1250, %v1249
    %v1273 = vpack.c.b16 %v1252, %v1251
    %v1274 = vpack.c.b16 %v1254, %v1253
    %v1275 = vpack.c.b16 %v1256, %v1255
    %v1276 = vpack.c.b16 %v1258, %v1257
    %v1277 = vpack.c.b16 %v1260, %v1259
    %v1278 = vpack.c.b16 %v1262, %v1261
    %vm1295 = vcmask 261120
    %1296 = vst.msk [vmem:[#allocation3] sm:$0xff] %vm1295, %v1263
    %1297 = vst.msk [vmem:[#allocation3 + $0x18] sm:$0xff] %vm1295, %v1264
    %1298 = vst.msk [vmem:[#allocation3 + $0x30] sm:$0xff] %vm1295, %v1265
    %1299 = vst.msk [vmem:[#allocation3 + $0x48] sm:$0xff] %vm1295, %v1266
    %1300 = vst.msk [vmem:[#allocation3 + $0x60] sm:$0xff] %vm1295, %v1267
    %1301 = vst.msk [vmem:[#allocation3 + $0x78] sm:$0xff] %vm1295, %v1268
    %1302 = vst.msk [vmem:[#allocation3 + $0x90] sm:$0xff] %vm1295, %v1269
    %1303 = vst.msk [vmem:[#allocation3 + $0xa8] sm:$0xff] %vm1295, %v1270
    %1304 = vst.msk [vmem:[#allocation3 + $0xc0] sm:$0xff] %vm1295, %v1271
    %1305 = vst.msk [vmem:[#allocation3 + $0xd8] sm:$0xff] %vm1295, %v1272
    %1306 = vst.msk [vmem:[#allocation3 + $0xf0] sm:$0xff] %vm1295, %v1273
    %1307 = vst.msk [vmem:[#allocation3 + $0x108] sm:$0xff] %vm1295, %v1274
    %1308 = vst.msk [vmem:[#allocation3 + $0x120] sm:$0xff] %vm1295, %v1275
    %1309 = vst.msk [vmem:[#allocation3 + $0x138] sm:$0xff] %vm1295, %v1276
    %1310 = vst.msk [vmem:[#allocation3 + $0x150] sm:$0xff] %vm1295, %v1277
    %1311 = vst.msk [vmem:[#allocation3 + $0x168] sm:$0xff] %vm1295, %v1278
    %v1312 = vld [vmem:[#allocation2] sm:$0xf]
    %v1313 = vld [vmem:[#allocation2 + $0x4] sm:$0x1]
    %v1314 = vld [vmem:[#allocation2 + $0x8] sm:$0xf]
    %v1315 = vld [vmem:[#allocation2 + $0xc] sm:$0x1]
    %v1316 = vld [vmem:[#allocation2 + $0x10] sm:$0xf]
    %v1317 = vld [vmem:[#allocation2 + $0x14] sm:$0x1]
    %v1318 = vld [vmem:[#allocation2 + $0x18] sm:$0xf]
    %v1319 = vld [vmem:[#allocation2 + $0x1c] sm:$0x1]
    %v1320 = vld [vmem:[#allocation2 + $0x20] sm:$0xf]
    %v1321 = vld [vmem:[#allocation2 + $0x24] sm:$0x1]
    %v1322 = vld [vmem:[#allocation2 + $0x28] sm:$0xf]
    %v1323 = vld [vmem:[#allocation2 + $0x2c] sm:$0x1]
    %v1324 = vld [vmem:[#allocation2 + $0x30] sm:$0xf]
    %v1325 = vld [vmem:[#allocation2 + $0x34] sm:$0x1]
    %v1326 = vld [vmem:[#allocation2 + $0x38] sm:$0xf]
    %v1327 = vld [vmem:[#allocation2 + $0x3c] sm:$0x1]
    %v1328 = vld [vmem:[#allocation2 + $0x50] sm:$0xf]
    %v1329 = vld [vmem:[#allocation2 + $0x54] sm:$0x1]
    %v1330 = vld [vmem:[#allocation2 + $0x58] sm:$0xf]
    %v1331 = vld [vmem:[#allocation2 + $0x5c] sm:$0x1]
    %v1332 = vld [vmem:[#allocation2 + $0x60] sm:$0xf]
    %v1333 = vld [vmem:[#allocation2 + $0x64] sm:$0x1]
    %v1334 = vld [vmem:[#allocation2 + $0x68] sm:$0xf]
    %v1335 = vld [vmem:[#allocation2 + $0x6c] sm:$0x1]
    %v1336 = vld [vmem:[#allocation2 + $0x70] sm:$0xf]
    %v1337 = vld [vmem:[#allocation2 + $0x74] sm:$0x1]
    %v1338 = vld [vmem:[#allocation2 + $0x78] sm:$0xf]
    %v1339 = vld [vmem:[#allocation2 + $0x7c] sm:$0x1]
    %v1340 = vld [vmem:[#allocation2 + $0x80] sm:$0xf]
    %v1341 = vld [vmem:[#allocation2 + $0x84] sm:$0x1]
    %v1342 = vld [vmem:[#allocation2 + $0x88] sm:$0xf]
    %v1343 = vld [vmem:[#allocation2 + $0x8c] sm:$0x1]
    %v1344 = vld [vmem:[#allocation2 + $0xa0] sm:$0xf]
    %v1345 = vld [vmem:[#allocation2 + $0xa4] sm:$0x1]
    %v1346 = vld [vmem:[#allocation2 + $0xa8] sm:$0xf]
    %v1347 = vld [vmem:[#allocation2 + $0xac] sm:$0x1]
    %v1348 = vld [vmem:[#allocation2 + $0xb0] sm:$0xf]
    %v1349 = vld [vmem:[#allocation2 + $0xb4] sm:$0x1]
    %v1350 = vld [vmem:[#allocation2 + $0xb8] sm:$0xf]
    %v1351 = vld [vmem:[#allocation2 + $0xbc] sm:$0x1]
    %v1352 = vld [vmem:[#allocation2 + $0xc0] sm:$0xf]
    %v1353 = vld [vmem:[#allocation2 + $0xc4] sm:$0x1]
    %v1354 = vld [vmem:[#allocation2 + $0xc8] sm:$0xf]
    %v1355 = vld [vmem:[#allocation2 + $0xcc] sm:$0x1]
    %v1356 = vld [vmem:[#allocation2 + $0xd0] sm:$0xf]
    %v1357 = vld [vmem:[#allocation2 + $0xd4] sm:$0x1]
    %v1358 = vld [vmem:[#allocation2 + $0xd8] sm:$0xf]
    %v1359 = vld [vmem:[#allocation2 + $0xdc] sm:$0x1]
    %v1360 = vld [vmem:[#allocation2 + $0xf0] sm:$0xf]
    %v1361 = vld [vmem:[#allocation2 + $0xf4] sm:$0x1]
    %v1362 = vld [vmem:[#allocation2 + $0xf8] sm:$0xf]
    %v1363 = vld [vmem:[#allocation2 + $0xfc] sm:$0x1]
    %v1364 = vld [vmem:[#allocation2 + $0x100] sm:$0xf]
    %v1365 = vld [vmem:[#allocation2 + $0x104] sm:$0x1]
    %v1366 = vld [vmem:[#allocation2 + $0x108] sm:$0xf]
    %v1367 = vld [vmem:[#allocation2 + $0x10c] sm:$0x1]
    %v1368 = vld [vmem:[#allocation2 + $0x110] sm:$0xf]
    %v1369 = vld [vmem:[#allocation2 + $0x114] sm:$0x1]
    %v1370 = vld [vmem:[#allocation2 + $0x118] sm:$0xf]
    %v1371 = vld [vmem:[#allocation2 + $0x11c] sm:$0x1]
    %v1372 = vld [vmem:[#allocation2 + $0x120] sm:$0xf]
    %v1373 = vld [vmem:[#allocation2 + $0x124] sm:$0x1]
    %v1374 = vld [vmem:[#allocation2 + $0x128] sm:$0xf]
    %v1375 = vld [vmem:[#allocation2 + $0x12c] sm:$0x1]
    %vm1376 = vsmask.f32 3328
    %vm1377 = vsmask.f32 7440
    %vm1378 = vmor %vm1376, %vm1377
    %v1380 = vshrl.u32 %v1312, 16
    %v1382 = vrot.slane %v1380, 4
    %v1383 = vshll.u32 %v1312, 16
    %v1385 = vrot.slane %v1383, 5
    %v1386 = vor.u32 %v1382, %v1385
    %v1387 = vrot.slane %v1386, 4
    %v1389 = vshll.u32 %v1313, 16
    %v1391 = vrot.slane %v1389, 5
    %v1392 = vsel %vm1378, %v1387, %v1391
    %v1394 = vshrl.u32 %v1314, 16
    %v1396 = vrot.slane %v1394, 4
    %v1397 = vshll.u32 %v1314, 16
    %v1399 = vrot.slane %v1397, 5
    %v1400 = vor.u32 %v1396, %v1399
    %v1401 = vrot.slane %v1400, 4
    %v1403 = vshll.u32 %v1315, 16
    %v1405 = vrot.slane %v1403, 5
    %v1406 = vsel %vm1378, %v1401, %v1405
    %v1408 = vshrl.u32 %v1316, 16
    %v1410 = vrot.slane %v1408, 4
    %v1411 = vshll.u32 %v1316, 16
    %v1413 = vrot.slane %v1411, 5
    %v1414 = vor.u32 %v1410, %v1413
    %v1415 = vrot.slane %v1414, 4
    %v1417 = vshll.u32 %v1317, 16
    %v1419 = vrot.slane %v1417, 5
    %v1420 = vsel %vm1378, %v1415, %v1419
    %v1422 = vshrl.u32 %v1318, 16
    %v1424 = vrot.slane %v1422, 4
    %v1425 = vshll.u32 %v1318, 16
    %v1427 = vrot.slane %v1425, 5
    %v1428 = vor.u32 %v1424, %v1427
    %v1429 = vrot.slane %v1428, 4
    %v1431 = vshll.u32 %v1319, 16
    %v1433 = vrot.slane %v1431, 5
    %v1434 = vsel %vm1378, %v1429, %v1433
    %v1436 = vshrl.u32 %v1320, 16
    %v1438 = vrot.slane %v1436, 4
    %v1439 = vshll.u32 %v1320, 16
    %v1441 = vrot.slane %v1439, 5
    %v1442 = vor.u32 %v1438, %v1441
    %v1443 = vrot.slane %v1442, 4
    %v1445 = vshll.u32 %v1321, 16
    %v1447 = vrot.slane %v1445, 5
    %v1448 = vsel %vm1378, %v1443, %v1447
    %v1450 = vshrl.u32 %v1322, 16
    %v1452 = vrot.slane %v1450, 4
    %v1453 = vshll.u32 %v1322, 16
    %v1455 = vrot.slane %v1453, 5
    %v1456 = vor.u32 %v1452, %v1455
    %v1457 = vrot.slane %v1456, 4
    %v1459 = vshll.u32 %v1323, 16
    %v1461 = vrot.slane %v1459, 5
    %v1462 = vsel %vm1378, %v1457, %v1461
    %v1464 = vshrl.u32 %v1324, 16
    %v1466 = vrot.slane %v1464, 4
    %v1467 = vshll.u32 %v1324, 16
    %v1469 = vrot.slane %v1467, 5
    %v1470 = vor.u32 %v1466, %v1469
    %v1471 = vrot.slane %v1470, 4
    %v1473 = vshll.u32 %v1325, 16
    %v1475 = vrot.slane %v1473, 5
    %v1476 = vsel %vm1378, %v1471, %v1475
    %v1478 = vshrl.u32 %v1326, 16
    %v1480 = vrot.slane %v1478, 4
    %v1481 = vshll.u32 %v1326, 16
    %v1483 = vrot.slane %v1481, 5
    %v1484 = vor.u32 %v1480, %v1483
    %v1485 = vrot.slane %v1484, 4
    %v1487 = vshll.u32 %v1327, 16
    %v1489 = vrot.slane %v1487, 5
    %v1490 = vsel %vm1378, %v1485, %v1489
    %v1492 = vshrl.u32 %v1328, 16
    %v1494 = vrot.slane %v1492, 4
    %v1495 = vshll.u32 %v1328, 16
    %v1497 = vrot.slane %v1495, 5
    %v1498 = vor.u32 %v1494, %v1497
    %v1499 = vrot.slane %v1498, 4
    %v1501 = vshll.u32 %v1329, 16
    %v1503 = vrot.slane %v1501, 5
    %v1504 = vsel %vm1378, %v1499, %v1503
    %v1506 = vshrl.u32 %v1330, 16
    %v1508 = vrot.slane %v1506, 4
    %v1509 = vshll.u32 %v1330, 16
    %v1511 = vrot.slane %v1509, 5
    %v1512 = vor.u32 %v1508, %v1511
    %v1513 = vrot.slane %v1512, 4
    %v1515 = vshll.u32 %v1331, 16
    %v1517 = vrot.slane %v1515, 5
    %v1518 = vsel %vm1378, %v1513, %v1517
    %v1520 = vshrl.u32 %v1332, 16
    %v1522 = vrot.slane %v1520, 4
    %v1523 = vshll.u32 %v1332, 16
    %v1525 = vrot.slane %v1523, 5
    %v1526 = vor.u32 %v1522, %v1525
    %v1527 = vrot.slane %v1526, 4
    %v1529 = vshll.u32 %v1333, 16
    %v1531 = vrot.slane %v1529, 5
    %v1532 = vsel %vm1378, %v1527, %v1531
    %v1534 = vshrl.u32 %v1334, 16
    %v1536 = vrot.slane %v1534, 4
    %v1537 = vshll.u32 %v1334, 16
    %v1539 = vrot.slane %v1537, 5
    %v1540 = vor.u32 %v1536, %v1539
    %v1541 = vrot.slane %v1540, 4
    %v1543 = vshll.u32 %v1335, 16
    %v1545 = vrot.slane %v1543, 5
    %v1546 = vsel %vm1378, %v1541, %v1545
    %v1548 = vshrl.u32 %v1336, 16
    %v1550 = vrot.slane %v1548, 4
    %v1551 = vshll.u32 %v1336, 16
    %v1553 = vrot.slane %v1551, 5
    %v1554 = vor.u32 %v1550, %v1553
    %v1555 = vrot.slane %v1554, 4
    %v1557 = vshll.u32 %v1337, 16
    %v1559 = vrot.slane %v1557, 5
    %v1560 = vsel %vm1378, %v1555, %v1559
    %v1562 = vshrl.u32 %v1338, 16
    %v1564 = vrot.slane %v1562, 4
    %v1565 = vshll.u32 %v1338, 16
    %v1567 = vrot.slane %v1565, 5
    %v1568 = vor.u32 %v1564, %v1567
    %v1569 = vrot.slane %v1568, 4
    %v1571 = vshll.u32 %v1339, 16
    %v1573 = vrot.slane %v1571, 5
    %v1574 = vsel %vm1378, %v1569, %v1573
    %v1576 = vshrl.u32 %v1340, 16
    %v1578 = vrot.slane %v1576, 4
    %v1579 = vshll.u32 %v1340, 16
    %v1581 = vrot.slane %v1579, 5
    %v1582 = vor.u32 %v1578, %v1581
    %v1583 = vrot.slane %v1582, 4
    %v1585 = vshll.u32 %v1341, 16
    %v1587 = vrot.slane %v1585, 5
    %v1588 = vsel %vm1378, %v1583, %v1587
    %v1590 = vshrl.u32 %v1342, 16
    %v1592 = vrot.slane %v1590, 4
    %v1593 = vshll.u32 %v1342, 16
    %v1595 = vrot.slane %v1593, 5
    %v1596 = vor.u32 %v1592, %v1595
    %v1597 = vrot.slane %v1596, 4
    %v1599 = vshll.u32 %v1343, 16
    %v1601 = vrot.slane %v1599, 5
    %v1602 = vsel %vm1378, %v1597, %v1601
    %v1604 = vshrl.u32 %v1344, 16
    %v1606 = vrot.slane %v1604, 4
    %v1607 = vshll.u32 %v1344, 16
    %v1609 = vrot.slane %v1607, 5
    %v1610 = vor.u32 %v1606, %v1609
    %v1611 = vrot.slane %v1610, 4
    %v1613 = vshll.u32 %v1345, 16
    %v1615 = vrot.slane %v1613, 5
    %v1616 = vsel %vm1378, %v1611, %v1615
    %v1618 = vshrl.u32 %v1346, 16
    %v1620 = vrot.slane %v1618, 4
    %v1621 = vshll.u32 %v1346, 16
    %v1623 = vrot.slane %v1621, 5
    %v1624 = vor.u32 %v1620, %v1623
    %v1625 = vrot.slane %v1624, 4
    %v1627 = vshll.u32 %v1347, 16
    %v1629 = vrot.slane %v1627, 5
    %v1630 = vsel %vm1378, %v1625, %v1629
    %v1632 = vshrl.u32 %v1348, 16
    %v1634 = vrot.slane %v1632, 4
    %v1635 = vshll.u32 %v1348, 16
    %v1637 = vrot.slane %v1635, 5
    %v1638 = vor.u32 %v1634, %v1637
    %v1639 = vrot.slane %v1638, 4
    %v1641 = vshll.u32 %v1349, 16
    %v1643 = vrot.slane %v1641, 5
    %v1644 = vsel %vm1378, %v1639, %v1643
    %v1646 = vshrl.u32 %v1350, 16
    %v1648 = vrot.slane %v1646, 4
    %v1649 = vshll.u32 %v1350, 16
    %v1651 = vrot.slane %v1649, 5
    %v1652 = vor.u32 %v1648, %v1651
    %v1653 = vrot.slane %v1652, 4
    %v1655 = vshll.u32 %v1351, 16
    %v1657 = vrot.slane %v1655, 5
    %v1658 = vsel %vm1378, %v1653, %v1657
    %v1660 = vshrl.u32 %v1352, 16
    %v1662 = vrot.slane %v1660, 4
    %v1663 = vshll.u32 %v1352, 16
    %v1665 = vrot.slane %v1663, 5
    %v1666 = vor.u32 %v1662, %v1665
    %v1667 = vrot.slane %v1666, 4
    %v1669 = vshll.u32 %v1353, 16
    %v1671 = vrot.slane %v1669, 5
    %v1672 = vsel %vm1378, %v1667, %v1671
    %v1674 = vshrl.u32 %v1354, 16
    %v1676 = vrot.slane %v1674, 4
    %v1677 = vshll.u32 %v1354, 16
    %v1679 = vrot.slane %v1677, 5
    %v1680 = vor.u32 %v1676, %v1679
    %v1681 = vrot.slane %v1680, 4
    %v1683 = vshll.u32 %v1355, 16
    %v1685 = vrot.slane %v1683, 5
    %v1686 = vsel %vm1378, %v1681, %v1685
    %v1688 = vshrl.u32 %v1356, 16
    %v1690 = vrot.slane %v1688, 4
    %v1691 = vshll.u32 %v1356, 16
    %v1693 = vrot.slane %v1691, 5
    %v1694 = vor.u32 %v1690, %v1693
    %v1695 = vrot.slane %v1694, 4
    %v1697 = vshll.u32 %v1357, 16
    %v1699 = vrot.slane %v1697, 5
    %v1700 = vsel %vm1378, %v1695, %v1699
    %v1702 = vshrl.u32 %v1358, 16
    %v1704 = vrot.slane %v1702, 4
    %v1705 = vshll.u32 %v1358, 16
    %v1707 = vrot.slane %v1705, 5
    %v1708 = vor.u32 %v1704, %v1707
    %v1709 = vrot.slane %v1708, 4
    %v1711 = vshll.u32 %v1359, 16
    %v1713 = vrot.slane %v1711, 5
    %v1714 = vsel %vm1378, %v1709, %v1713
    %v1716 = vshrl.u32 %v1360, 16
    %v1718 = vrot.slane %v1716, 4
    %v1719 = vshll.u32 %v1360, 16
    %v1721 = vrot.slane %v1719, 5
    %v1722 = vor.u32 %v1718, %v1721
    %v1723 = vrot.slane %v1722, 4
    %v1725 = vshll.u32 %v1361, 16
    %v1727 = vrot.slane %v1725, 5
    %v1728 = vsel %vm1378, %v1723, %v1727
    %v1730 = vshrl.u32 %v1362, 16
    %v1732 = vrot.slane %v1730, 4
    %v1733 = vshll.u32 %v1362, 16
    %v1735 = vrot.slane %v1733, 5
    %v1736 = vor.u32 %v1732, %v1735
    %v1737 = vrot.slane %v1736, 4
    %v1739 = vshll.u32 %v1363, 16
    %v1741 = vrot.slane %v1739, 5
    %v1742 = vsel %vm1378, %v1737, %v1741
    %v1744 = vshrl.u32 %v1364, 16
    %v1746 = vrot.slane %v1744, 4
    %v1747 = vshll.u32 %v1364, 16
    %v1749 = vrot.slane %v1747, 5
    %v1750 = vor.u32 %v1746, %v1749
    %v1751 = vrot.slane %v1750, 4
    %v1753 = vshll.u32 %v1365, 16
    %v1755 = vrot.slane %v1753, 5
    %v1756 = vsel %vm1378, %v1751, %v1755
    %v1758 = vshrl.u32 %v1366, 16
    %v1760 = vrot.slane %v1758, 4
    %v1761 = vshll.u32 %v1366, 16
    %v1763 = vrot.slane %v1761, 5
    %v1764 = vor.u32 %v1760, %v1763
    %v1765 = vrot.slane %v1764, 4
    %v1767 = vshll.u32 %v1367, 16
    %v1769 = vrot.slane %v1767, 5
    %v1770 = vsel %vm1378, %v1765, %v1769
    %v1772 = vshrl.u32 %v1368, 16
    %v1774 = vrot.slane %v1772, 4
    %v1775 = vshll.u32 %v1368, 16
    %v1777 = vrot.slane %v1775, 5
    %v1778 = vor.u32 %v1774, %v1777
    %v1779 = vrot.slane %v1778, 4
    %v1781 = vshll.u32 %v1369, 16
    %v1783 = vrot.slane %v1781, 5
    %v1784 = vsel %vm1378, %v1779, %v1783
    %v1786 = vshrl.u32 %v1370, 16
    %v1788 = vrot.slane %v1786, 4
    %v1789 = vshll.u32 %v1370, 16
    %v1791 = vrot.slane %v1789, 5
    %v1792 = vor.u32 %v1788, %v1791
    %v1793 = vrot.slane %v1792, 4
    %v1795 = vshll.u32 %v1371, 16
    %v1797 = vrot.slane %v1795, 5
    %v1798 = vsel %vm1378, %v1793, %v1797
    %v1800 = vshrl.u32 %v1372, 16
    %v1802 = vrot.slane %v1800, 4
    %v1803 = vshll.u32 %v1372, 16
    %v1805 = vrot.slane %v1803, 5
    %v1806 = vor.u32 %v1802, %v1805
    %v1807 = vrot.slane %v1806, 4
    %v1809 = vshll.u32 %v1373, 16
    %v1811 = vrot.slane %v1809, 5
    %v1812 = vsel %vm1378, %v1807, %v1811
    %v1814 = vshrl.u32 %v1374, 16
    %v1816 = vrot.slane %v1814, 4
    %v1817 = vshll.u32 %v1374, 16
    %v1819 = vrot.slane %v1817, 5
    %v1820 = vor.u32 %v1816, %v1819
    %v1821 = vrot.slane %v1820, 4
    %v1823 = vshll.u32 %v1375, 16
    %v1825 = vrot.slane %v1823, 5
    %v1826 = vsel %vm1378, %v1821, %v1825
    %v1827 = vunpack.c.l.b16 %v1392
    %v1828 = vunpack.c.l.b16 %v1406
    %v1829 = vunpack.c.l.b16 %v1420
    %v1830 = vunpack.c.l.b16 %v1434
    %v1831 = vunpack.c.l.b16 %v1448
    %v1832 = vunpack.c.l.b16 %v1462
    %v1833 = vunpack.c.l.b16 %v1476
    %v1834 = vunpack.c.l.b16 %v1490
    %v1835 = vunpack.c.l.b16 %v1504
    %v1836 = vunpack.c.l.b16 %v1518
    %v1837 = vunpack.c.l.b16 %v1532
    %v1838 = vunpack.c.l.b16 %v1546
    %v1839 = vunpack.c.l.b16 %v1560
    %v1840 = vunpack.c.l.b16 %v1574
    %v1841 = vunpack.c.l.b16 %v1588
    %v1842 = vunpack.c.l.b16 %v1602
    %v1843 = vunpack.c.l.b16 %v1616
    %v1844 = vunpack.c.l.b16 %v1630
    %v1845 = vunpack.c.l.b16 %v1644
    %v1846 = vunpack.c.l.b16 %v1658
    %v1847 = vunpack.c.l.b16 %v1672
    %v1848 = vunpack.c.l.b16 %v1686
    %v1849 = vunpack.c.l.b16 %v1700
    %v1850 = vunpack.c.l.b16 %v1714
    %v1851 = vunpack.c.l.b16 %v1728
    %v1852 = vunpack.c.l.b16 %v1742
    %v1853 = vunpack.c.l.b16 %v1756
    %v1854 = vunpack.c.l.b16 %v1770
    %v1855 = vunpack.c.l.b16 %v1784
    %v1856 = vunpack.c.l.b16 %v1798
    %v1857 = vunpack.c.l.b16 %v1812
    %v1858 = vunpack.c.l.b16 %v1826
    %v1859 = vpack.c.b16 %v1828, %v1827
    %v1860 = vpack.c.b16 %v1830, %v1829
    %v1861 = vpack.c.b16 %v1832, %v1831
    %v1862 = vpack.c.b16 %v1834, %v1833
    %v1863 = vpack.c.b16 %v1836, %v1835
    %v1864 = vpack.c.b16 %v1838, %v1837
    %v1865 = vpack.c.b16 %v1840, %v1839
    %v1866 = vpack.c.b16 %v1842, %v1841
    %v1867 = vpack.c.b16 %v1844, %v1843
    %v1868 = vpack.c.b16 %v1846, %v1845
    %v1869 = vpack.c.b16 %v1848, %v1847
    %v1870 = vpack.c.b16 %v1850, %v1849
    %v1871 = vpack.c.b16 %v1852, %v1851
    %v1872 = vpack.c.b16 %v1854, %v1853
    %v1873 = vpack.c.b16 %v1856, %v1855
    %v1874 = vpack.c.b16 %v1858, %v1857
    %1875 = vrot.lane.b32.xlu0 %v1859, 32
    %v1876 = vpop.permute.xlu0 %1875
    %1877 = vrot.lane.b32.xlu0 %v1860, 32
    %v1878 = vpop.permute.xlu0 %1877
    %1879 = vrot.lane.b32.xlu0 %v1861, 32
    %v1880 = vpop.permute.xlu0 %1879
    %1881 = vrot.lane.b32.xlu0 %v1862, 32
    %v1882 = vpop.permute.xlu0 %1881
    %1883 = vrot.lane.b32.xlu0 %v1863, 32
    %v1884 = vpop.permute.xlu0 %1883
    %1885 = vrot.lane.b32.xlu0 %v1864, 32
    %v1886 = vpop.permute.xlu0 %1885
    %1887 = vrot.lane.b32.xlu0 %v1865, 32
    %v1888 = vpop.permute.xlu0 %1887
    %1889 = vrot.lane.b32.xlu0 %v1866, 32
    %v1890 = vpop.permute.xlu0 %1889
    %1891 = vrot.lane.b32.xlu0 %v1867, 32
    %v1892 = vpop.permute.xlu0 %1891
    %1893 = vrot.lane.b32.xlu0 %v1868, 32
    %v1894 = vpop.permute.xlu0 %1893
    %1895 = vrot.lane.b32.xlu0 %v1869, 32
    %v1896 = vpop.permute.xlu0 %1895
    %1897 = vrot.lane.b32.xlu0 %v1870, 32
    %v1898 = vpop.permute.xlu0 %1897
    %1899 = vrot.lane.b32.xlu0 %v1871, 32
    %v1900 = vpop.permute.xlu0 %1899
    %1901 = vrot.lane.b32.xlu0 %v1872, 32
    %v1902 = vpop.permute.xlu0 %1901
    %1903 = vrot.lane.b32.xlu0 %v1873, 32
    %v1904 = vpop.permute.xlu0 %1903
    %1905 = vrot.lane.b32.xlu0 %v1874, 32
    %v1906 = vpop.permute.xlu0 %1905
    %vm1923 = vcmask 523520
    %1924 = vst.msk [vmem:[#allocation3] sm:$0xff] %vm1923, %v1876
    %1925 = vst.msk [vmem:[#allocation3 + $0x18] sm:$0xff] %vm1923, %v1878
    %1926 = vst.msk [vmem:[#allocation3 + $0x30] sm:$0xff] %vm1923, %v1880
    %1927 = vst.msk [vmem:[#allocation3 + $0x48] sm:$0xff] %vm1923, %v1882
    %1928 = vst.msk [vmem:[#allocation3 + $0x60] sm:$0xff] %vm1923, %v1884
    %1929 = vst.msk [vmem:[#allocation3 + $0x78] sm:$0xff] %vm1923, %v1886
    %1930 = vst.msk [vmem:[#allocation3 + $0x90] sm:$0xff] %vm1923, %v1888
    %1931 = vst.msk [vmem:[#allocation3 + $0xa8] sm:$0xff] %vm1923, %v1890
    %1932 = vst.msk [vmem:[#allocation3 + $0xc0] sm:$0xff] %vm1923, %v1892
    %1933 = vst.msk [vmem:[#allocation3 + $0xd8] sm:$0xff] %vm1923, %v1894
    %1934 = vst.msk [vmem:[#allocation3 + $0xf0] sm:$0xff] %vm1923, %v1896
    %1935 = vst.msk [vmem:[#allocation3 + $0x108] sm:$0xff] %vm1923, %v1898
    %1936 = vst.msk [vmem:[#allocation3 + $0x120] sm:$0xff] %vm1923, %v1900
    %1937 = vst.msk [vmem:[#allocation3 + $0x138] sm:$0xff] %vm1923, %v1902
    %1938 = vst.msk [vmem:[#allocation3 + $0x150] sm:$0xff] %vm1923, %v1904
    %1939 = vst.msk [vmem:[#allocation3 + $0x168] sm:$0xff] %vm1923, %v1906
    %v1940 = vld [vmem:[#allocation2] sm:$0xe]
    %v1941 = vld [vmem:[#allocation2 + $0x4] sm:$0x1]
    %v1942 = vld [vmem:[#allocation2 + $0x8] sm:$0xe]
    %v1943 = vld [vmem:[#allocation2 + $0xc] sm:$0x1]
    %v1944 = vld [vmem:[#allocation2 + $0x10] sm:$0xe]
    %v1945 = vld [vmem:[#allocation2 + $0x14] sm:$0x1]
    %v1946 = vld [vmem:[#allocation2 + $0x18] sm:$0xe]
    %v1947 = vld [vmem:[#allocation2 + $0x1c] sm:$0x1]
    %v1948 = vld [vmem:[#allocation2 + $0x20] sm:$0xe]
    %v1949 = vld [vmem:[#allocation2 + $0x24] sm:$0x1]
    %v1950 = vld [vmem:[#allocation2 + $0x28] sm:$0xe]
    %v1951 = vld [vmem:[#allocation2 + $0x2c] sm:$0x1]
    %v1952 = vld [vmem:[#allocation2 + $0x30] sm:$0xe]
    %v1953 = vld [vmem:[#allocation2 + $0x34] sm:$0x1]
    %v1954 = vld [vmem:[#allocation2 + $0x38] sm:$0xe]
    %v1955 = vld [vmem:[#allocation2 + $0x3c] sm:$0x1]
    %v1956 = vld [vmem:[#allocation2 + $0x50] sm:$0xe]
    %v1957 = vld [vmem:[#allocation2 + $0x54] sm:$0x1]
    %v1958 = vld [vmem:[#allocation2 + $0x58] sm:$0xe]
    %v1959 = vld [vmem:[#allocation2 + $0x5c] sm:$0x1]
    %v1960 = vld [vmem:[#allocation2 + $0x60] sm:$0xe]
    %v1961 = vld [vmem:[#allocation2 + $0x64] sm:$0x1]
    %v1962 = vld [vmem:[#allocation2 + $0x68] sm:$0xe]
    %v1963 = vld [vmem:[#allocation2 + $0x6c] sm:$0x1]
    %v1964 = vld [vmem:[#allocation2 + $0x70] sm:$0xe]
    %v1965 = vld [vmem:[#allocation2 + $0x74] sm:$0x1]
    %v1966 = vld [vmem:[#allocation2 + $0x78] sm:$0xe]
    %v1967 = vld [vmem:[#allocation2 + $0x7c] sm:$0x1]
    %v1968 = vld [vmem:[#allocation2 + $0x80] sm:$0xe]
    %v1969 = vld [vmem:[#allocation2 + $0x84] sm:$0x1]
    %v1970 = vld [vmem:[#allocation2 + $0x88] sm:$0xe]
    %v1971 = vld [vmem:[#allocation2 + $0x8c] sm:$0x1]
    %v1972 = vld [vmem:[#allocation2 + $0xa0] sm:$0xe]
    %v1973 = vld [vmem:[#allocation2 + $0xa4] sm:$0x1]
    %v1974 = vld [vmem:[#allocation2 + $0xa8] sm:$0xe]
    %v1975 = vld [vmem:[#allocation2 + $0xac] sm:$0x1]
    %v1976 = vld [vmem:[#allocation2 + $0xb0] sm:$0xe]
    %v1977 = vld [vmem:[#allocation2 + $0xb4] sm:$0x1]
    %v1978 = vld [vmem:[#allocation2 + $0xb8] sm:$0xe]
    %v1979 = vld [vmem:[#allocation2 + $0xbc] sm:$0x1]
    %v1980 = vld [vmem:[#allocation2 + $0xc0] sm:$0xe]
    %v1981 = vld [vmem:[#allocation2 + $0xc4] sm:$0x1]
    %v1982 = vld [vmem:[#allocation2 + $0xc8] sm:$0xe]
    %v1983 = vld [vmem:[#allocation2 + $0xcc] sm:$0x1]
    %v1984 = vld [vmem:[#allocation2 + $0xd0] sm:$0xe]
    %v1985 = vld [vmem:[#allocation2 + $0xd4] sm:$0x1]
    %v1986 = vld [vmem:[#allocation2 + $0xd8] sm:$0xe]
    %v1987 = vld [vmem:[#allocation2 + $0xdc] sm:$0x1]
    %v1988 = vld [vmem:[#allocation2 + $0xf0] sm:$0xe]
    %v1989 = vld [vmem:[#allocation2 + $0xf4] sm:$0x1]
    %v1990 = vld [vmem:[#allocation2 + $0xf8] sm:$0xe]
    %v1991 = vld [vmem:[#allocation2 + $0xfc] sm:$0x1]
    %v1992 = vld [vmem:[#allocation2 + $0x100] sm:$0xe]
    %v1993 = vld [vmem:[#allocation2 + $0x104] sm:$0x1]
    %v1994 = vld [vmem:[#allocation2 + $0x108] sm:$0xe]
    %v1995 = vld [vmem:[#allocation2 + $0x10c] sm:$0x1]
    %v1996 = vld [vmem:[#allocation2 + $0x110] sm:$0xe]
    %v1997 = vld [vmem:[#allocation2 + $0x114] sm:$0x1]
    %v1998 = vld [vmem:[#allocation2 + $0x118] sm:$0xe]
    %v1999 = vld [vmem:[#allocation2 + $0x11c] sm:$0x1]
    %v2000 = vld [vmem:[#allocation2 + $0x120] sm:$0xe]
    %v2001 = vld [vmem:[#allocation2 + $0x124] sm:$0x1]
    %v2002 = vld [vmem:[#allocation2 + $0x128] sm:$0xe]
    %v2003 = vld [vmem:[#allocation2 + $0x12c] sm:$0x1]
    %vm2068 = vcmask 1042432
    %vm2069 = vcmask 1046532
    %vm2070 = vmor %vm2068, %vm2069
    %v2071 = vrot.slane %v1940, 5
    %v2072 = vrot.slane %v2071, 4
    %v2073 = vrot.slane %v1941, 5
    %v2074 = vsel %vm2070, %v2072, %v2073
    %v2075 = vrot.slane %v1942, 5
    %v2076 = vrot.slane %v2075, 4
    %v2077 = vrot.slane %v1943, 5
    %v2078 = vsel %vm2070, %v2076, %v2077
    %v2079 = vrot.slane %v1944, 5
    %v2080 = vrot.slane %v2079, 4
    %v2081 = vrot.slane %v1945, 5
    %v2082 = vsel %vm2070, %v2080, %v2081
    %v2083 = vrot.slane %v1946, 5
    %v2084 = vrot.slane %v2083, 4
    %v2085 = vrot.slane %v1947, 5
    %v2086 = vsel %vm2070, %v2084, %v2085
    %v2087 = vrot.slane %v1948, 5
    %v2088 = vrot.slane %v2087, 4
    %v2089 = vrot.slane %v1949, 5
    %v2090 = vsel %vm2070, %v2088, %v2089
    %v2091 = vrot.slane %v1950, 5
    %v2092 = vrot.slane %v2091, 4
    %v2093 = vrot.slane %v1951, 5
    %v2094 = vsel %vm2070, %v2092, %v2093
    %v2095 = vrot.slane %v1952, 5
    %v2096 = vrot.slane %v2095, 4
    %v2097 = vrot.slane %v1953, 5
    %v2098 = vsel %vm2070, %v2096, %v2097
    %v2099 = vrot.slane %v1954, 5
    %v2100 = vrot.slane %v2099, 4
    %v2101 = vrot.slane %v1955, 5
    %v2102 = vsel %vm2070, %v2100, %v2101
    %v2103 = vrot.slane %v1956, 5
    %v2104 = vrot.slane %v2103, 4
    %v2105 = vrot.slane %v1957, 5
    %v2106 = vsel %vm2070, %v2104, %v2105
    %v2107 = vrot.slane %v1958, 5
    %v2108 = vrot.slane %v2107, 4
    %v2109 = vrot.slane %v1959, 5
    %v2110 = vsel %vm2070, %v2108, %v2109
    %v2111 = vrot.slane %v1960, 5
    %v2112 = vrot.slane %v2111, 4
    %v2113 = vrot.slane %v1961, 5
    %v2114 = vsel %vm2070, %v2112, %v2113
    %v2115 = vrot.slane %v1962, 5
    %v2116 = vrot.slane %v2115, 4
    %v2117 = vrot.slane %v1963, 5
    %v2118 = vsel %vm2070, %v2116, %v2117
    %v2119 = vrot.slane %v1964, 5
    %v2120 = vrot.slane %v2119, 4
    %v2121 = vrot.slane %v1965, 5
    %v2122 = vsel %vm2070, %v2120, %v2121
    %v2123 = vrot.slane %v1966, 5
    %v2124 = vrot.slane %v2123, 4
    %v2125 = vrot.slane %v1967, 5
    %v2126 = vsel %vm2070, %v2124, %v2125
    %v2127 = vrot.slane %v1968, 5
    %v2128 = vrot.slane %v2127, 4
    %v2129 = vrot.slane %v1969, 5
    %v2130 = vsel %vm2070, %v2128, %v2129
    %v2131 = vrot.slane %v1970, 5
    %v2132 = vrot.slane %v2131, 4
    %v2133 = vrot.slane %v1971, 5
    %v2134 = vsel %vm2070, %v2132, %v2133
    %v2135 = vrot.slane %v1972, 5
    %v2136 = vrot.slane %v2135, 4
    %v2137 = vrot.slane %v1973, 5
    %v2138 = vsel %vm2070, %v2136, %v2137
    %v2139 = vrot.slane %v1974, 5
    %v2140 = vrot.slane %v2139, 4
    %v2141 = vrot.slane %v1975, 5
    %v2142 = vsel %vm2070, %v2140, %v2141
    %v2143 = vrot.slane %v1976, 5
    %v2144 = vrot.slane %v2143, 4
    %v2145 = vrot.slane %v1977, 5
    %v2146 = vsel %vm2070, %v2144, %v2145
    %v2147 = vrot.slane %v1978, 5
    %v2148 = vrot.slane %v2147, 4
    %v2149 = vrot.slane %v1979, 5
    %v2150 = vsel %vm2070, %v2148, %v2149
    %v2151 = vrot.slane %v1980, 5
    %v2152 = vrot.slane %v2151, 4
    %v2153 = vrot.slane %v1981, 5
    %v2154 = vsel %vm2070, %v2152, %v2153
    %v2155 = vrot.slane %v1982, 5
    %v2156 = vrot.slane %v2155, 4
    %v2157 = vrot.slane %v1983, 5
    %v2158 = vsel %vm2070, %v2156, %v2157
    %v2159 = vrot.slane %v1984, 5
    %v2160 = vrot.slane %v2159, 4
    %v2161 = vrot.slane %v1985, 5
    %v2162 = vsel %vm2070, %v2160, %v2161
    %v2163 = vrot.slane %v1986, 5
    %v2164 = vrot.slane %v2163, 4
    %v2165 = vrot.slane %v1987, 5
    %v2166 = vsel %vm2070, %v2164, %v2165
    %v2167 = vrot.slane %v1988, 5
    %v2168 = vrot.slane %v2167, 4
    %v2169 = vrot.slane %v1989, 5
    %v2170 = vsel %vm2070, %v2168, %v2169
    %v2171 = vrot.slane %v1990, 5
    %v2172 = vrot.slane %v2171, 4
    %v2173 = vrot.slane %v1991, 5
    %v2174 = vsel %vm2070, %v2172, %v2173
    %v2175 = vrot.slane %v1992, 5
    %v2176 = vrot.slane %v2175, 4
    %v2177 = vrot.slane %v1993, 5
    %v2178 = vsel %vm2070, %v2176, %v2177
    %v2179 = vrot.slane %v1994, 5
    %v2180 = vrot.slane %v2179, 4
    %v2181 = vrot.slane %v1995, 5
    %v2182 = vsel %vm2070, %v2180, %v2181
    %v2183 = vrot.slane %v1996, 5
    %v2184 = vrot.slane %v2183, 4
    %v2185 = vrot.slane %v1997, 5
    %v2186 = vsel %vm2070, %v2184, %v2185
    %v2187 = vrot.slane %v1998, 5
    %v2188 = vrot.slane %v2187, 4
    %v2189 = vrot.slane %v1999, 5
    %v2190 = vsel %vm2070, %v2188, %v2189
    %v2191 = vrot.slane %v2000, 5
    %v2192 = vrot.slane %v2191, 4
    %v2193 = vrot.slane %v2001, 5
    %v2194 = vsel %vm2070, %v2192, %v2193
    %v2195 = vrot.slane %v2002, 5
    %v2196 = vrot.slane %v2195, 4
    %v2197 = vrot.slane %v2003, 5
    %v2198 = vsel %vm2070, %v2196, %v2197
    %v2199 = vunpack.c.l.b16 %v2074
    %v2200 = vunpack.c.l.b16 %v2078
    %v2201 = vunpack.c.l.b16 %v2082
    %v2202 = vunpack.c.l.b16 %v2086
    %v2203 = vunpack.c.l.b16 %v2090
    %v2204 = vunpack.c.l.b16 %v2094
    %v2205 = vunpack.c.l.b16 %v2098
    %v2206 = vunpack.c.l.b16 %v2102
    %v2207 = vunpack.c.l.b16 %v2106
    %v2208 = vunpack.c.l.b16 %v2110
    %v2209 = vunpack.c.l.b16 %v2114
    %v2210 = vunpack.c.l.b16 %v2118
    %v2211 = vunpack.c.l.b16 %v2122
    %v2212 = vunpack.c.l.b16 %v2126
    %v2213 = vunpack.c.l.b16 %v2130
    %v2214 = vunpack.c.l.b16 %v2134
    %v2215 = vunpack.c.l.b16 %v2138
    %v2216 = vunpack.c.l.b16 %v2142
    %v2217 = vunpack.c.l.b16 %v2146
    %v2218 = vunpack.c.l.b16 %v2150
    %v2219 = vunpack.c.l.b16 %v2154
    %v2220 = vunpack.c.l.b16 %v2158
    %v2221 = vunpack.c.l.b16 %v2162
    %v2222 = vunpack.c.l.b16 %v2166
    %v2223 = vunpack.c.l.b16 %v2170
    %v2224 = vunpack.c.l.b16 %v2174
    %v2225 = vunpack.c.l.b16 %v2178
    %v2226 = vunpack.c.l.b16 %v2182
    %v2227 = vunpack.c.l.b16 %v2186
    %v2228 = vunpack.c.l.b16 %v2190
    %v2229 = vunpack.c.l.b16 %v2194
    %v2230 = vunpack.c.l.b16 %v2198
    %v2231 = vpack.c.b16 %v2200, %v2199
    %v2232 = vpack.c.b16 %v2202, %v2201
    %v2233 = vpack.c.b16 %v2204, %v2203
    %v2234 = vpack.c.b16 %v2206, %v2205
    %v2235 = vpack.c.b16 %v2208, %v2207
    %v2236 = vpack.c.b16 %v2210, %v2209
    %v2237 = vpack.c.b16 %v2212, %v2211
    %v2238 = vpack.c.b16 %v2214, %v2213
    %v2239 = vpack.c.b16 %v2216, %v2215
    %v2240 = vpack.c.b16 %v2218, %v2217
    %v2241 = vpack.c.b16 %v2220, %v2219
    %v2242 = vpack.c.b16 %v2222, %v2221
    %v2243 = vpack.c.b16 %v2224, %v2223
    %v2244 = vpack.c.b16 %v2226, %v2225
    %v2245 = vpack.c.b16 %v2228, %v2227
    %v2246 = vpack.c.b16 %v2230, %v2229
    %2247 = vrot.lane.b32.xlu0 %v2231, 64
    %v2248 = vpop.permute.xlu0 %2247
    %2249 = vrot.lane.b32.xlu0 %v2232, 64
    %v2250 = vpop.permute.xlu0 %2249
    %2251 = vrot.lane.b32.xlu0 %v2233, 64
    %v2252 = vpop.permute.xlu0 %2251
    %2253 = vrot.lane.b32.xlu0 %v2234, 64
    %v2254 = vpop.permute.xlu0 %2253
    %2255 = vrot.lane.b32.xlu0 %v2235, 64
    %v2256 = vpop.permute.xlu0 %2255
    %2257 = vrot.lane.b32.xlu0 %v2236, 64
    %v2258 = vpop.permute.xlu0 %2257
    %2259 = vrot.lane.b32.xlu0 %v2237, 64
    %v2260 = vpop.permute.xlu0 %2259
    %2261 = vrot.lane.b32.xlu0 %v2238, 64
    %v2262 = vpop.permute.xlu0 %2261
    %2263 = vrot.lane.b32.xlu0 %v2239, 64
    %v2264 = vpop.permute.xlu0 %2263
    %2265 = vrot.lane.b32.xlu0 %v2240, 64
    %v2266 = vpop.permute.xlu0 %2265
    %2267 = vrot.lane.b32.xlu0 %v2241, 64
    %v2268 = vpop.permute.xlu0 %2267
    %2269 = vrot.lane.b32.xlu0 %v2242, 64
    %v2270 = vpop.permute.xlu0 %2269
    %2271 = vrot.lane.b32.xlu0 %v2243, 64
    %v2272 = vpop.permute.xlu0 %2271
    %2273 = vrot.lane.b32.xlu0 %v2244, 64
    %v2274 = vpop.permute.xlu0 %2273
    %2275 = vrot.lane.b32.xlu0 %v2245, 64
    %v2276 = vpop.permute.xlu0 %2275
    %2277 = vrot.lane.b32.xlu0 %v2246, 64
    %v2278 = vpop.permute.xlu0 %2277
    %vm2295 = vcmask 785920
    %2296 = vst.msk [vmem:[#allocation3] sm:$0xff] %vm2295, %v2248
    %2297 = vst.msk [vmem:[#allocation3 + $0x18] sm:$0xff] %vm2295, %v2250
    %2298 = vst.msk [vmem:[#allocation3 + $0x30] sm:$0xff] %vm2295, %v2252
    %2299 = vst.msk [vmem:[#allocation3 + $0x48] sm:$0xff] %vm2295, %v2254
    %2300 = vst.msk [vmem:[#allocation3 + $0x60] sm:$0xff] %vm2295, %v2256
    %2301 = vst.msk [vmem:[#allocation3 + $0x78] sm:$0xff] %vm2295, %v2258
    %2302 = vst.msk [vmem:[#allocation3 + $0x90] sm:$0xff] %vm2295, %v2260
    %2303 = vst.msk [vmem:[#allocation3 + $0xa8] sm:$0xff] %vm2295, %v2262
    %2304 = vst.msk [vmem:[#allocation3 + $0xc0] sm:$0xff] %vm2295, %v2264
    %2305 = vst.msk [vmem:[#allocation3 + $0xd8] sm:$0xff] %vm2295, %v2266
    %2306 = vst.msk [vmem:[#allocation3 + $0xf0] sm:$0xff] %vm2295, %v2268
    %2307 = vst.msk [vmem:[#allocation3 + $0x108] sm:$0xff] %vm2295, %v2270
    %2308 = vst.msk [vmem:[#allocation3 + $0x120] sm:$0xff] %vm2295, %v2272
    %2309 = vst.msk [vmem:[#allocation3 + $0x138] sm:$0xff] %vm2295, %v2274
    %2310 = vst.msk [vmem:[#allocation3 + $0x150] sm:$0xff] %vm2295, %v2276
    %2311 = vst.msk [vmem:[#allocation3 + $0x168] sm:$0xff] %vm2295, %v2278
    %v2312 = vld [vmem:[%s359] sm:$0xf]
    %v2313 = vld [vmem:[%s359 + $0x8] sm:$0xf]
    %v2314 = vld [vmem:[%s359 + $0x10] sm:$0xf]
    %v2315 = vld [vmem:[%s359 + $0x18] sm:$0xf]
    %v2316 = vld [vmem:[%s359 + $0x20] sm:$0xf]
    %v2317 = vld [vmem:[%s359 + $0x28] sm:$0xf]
    %v2318 = vld [vmem:[%s359 + $0x30] sm:$0xf]
    %v2319 = vld [vmem:[%s359 + $0x38] sm:$0xf]
    %v2320 = vld [vmem:[%s359 + $0x50] sm:$0xf]
    %v2321 = vld [vmem:[%s359 + $0x58] sm:$0xf]
    %v2322 = vld [vmem:[%s359 + $0x60] sm:$0xf]
    %v2323 = vld [vmem:[%s359 + $0x68] sm:$0xf]
    %v2324 = vld [vmem:[%s359 + $0x70] sm:$0xf]
    %v2325 = vld [vmem:[%s359 + $0x78] sm:$0xf]
    %v2326 = vld [vmem:[%s359 + $0x80] sm:$0xf]
    %v2327 = vld [vmem:[%s359 + $0x88] sm:$0xf]
    %v2328 = vld [vmem:[%s359 + $0xa0] sm:$0xf]
    %v2329 = vld [vmem:[%s359 + $0xa8] sm:$0xf]
    %v2330 = vld [vmem:[%s359 + $0xb0] sm:$0xf]
    %v2331 = vld [vmem:[%s359 + $0xb8] sm:$0xf]
    %v2332 = vld [vmem:[%s359 + $0xc0] sm:$0xf]
    %v2333 = vld [vmem:[%s359 + $0xc8] sm:$0xf]
    %v2334 = vld [vmem:[%s359 + $0xd0] sm:$0xf]
    %v2335 = vld [vmem:[%s359 + $0xd8] sm:$0xf]
    %v2336 = vld [vmem:[%s359 + $0xf0] sm:$0xf]
    %v2337 = vld [vmem:[%s359 + $0xf8] sm:$0xf]
    %v2338 = vld [vmem:[%s359 + $0x100] sm:$0xf]
    %v2339 = vld [vmem:[%s359 + $0x108] sm:$0xf]
    %v2340 = vld [vmem:[%s359 + $0x110] sm:$0xf]
    %v2341 = vld [vmem:[%s359 + $0x118] sm:$0xf]
    %v2342 = vld [vmem:[%s359 + $0x120] sm:$0xf]
    %v2343 = vld [vmem:[%s359 + $0x128] sm:$0xf]
    %v2376 = vunpack.c.l.b16 %v2312
    %v2377 = vunpack.c.l.b16 %v2313
    %v2378 = vunpack.c.l.b16 %v2314
    %v2379 = vunpack.c.l.b16 %v2315
    %v2380 = vunpack.c.l.b16 %v2316
    %v2381 = vunpack.c.l.b16 %v2317
    %v2382 = vunpack.c.l.b16 %v2318
    %v2383 = vunpack.c.l.b16 %v2319
    %v2384 = vunpack.c.l.b16 %v2320
    %v2385 = vunpack.c.l.b16 %v2321
    %v2386 = vunpack.c.l.b16 %v2322
    %v2387 = vunpack.c.l.b16 %v2323
    %v2388 = vunpack.c.l.b16 %v2324
    %v2389 = vunpack.c.l.b16 %v2325
    %v2390 = vunpack.c.l.b16 %v2326
    %v2391 = vunpack.c.l.b16 %v2327
    %v2392 = vunpack.c.l.b16 %v2328
    %v2393 = vunpack.c.l.b16 %v2329
    %v2394 = vunpack.c.l.b16 %v2330
    %v2395 = vunpack.c.l.b16 %v2331
    %v2396 = vunpack.c.l.b16 %v2332
    %v2397 = vunpack.c.l.b16 %v2333
    %v2398 = vunpack.c.l.b16 %v2334
    %v2399 = vunpack.c.l.b16 %v2335
    %v2400 = vunpack.c.l.b16 %v2336
    %v2401 = vunpack.c.l.b16 %v2337
    %v2402 = vunpack.c.l.b16 %v2338
    %v2403 = vunpack.c.l.b16 %v2339
    %v2404 = vunpack.c.l.b16 %v2340
    %v2405 = vunpack.c.l.b16 %v2341
    %v2406 = vunpack.c.l.b16 %v2342
    %v2407 = vunpack.c.l.b16 %v2343
    %v2408 = vpack.c.b16 %v2377, %v2376
    %v2409 = vpack.c.b16 %v2379, %v2378
    %v2410 = vpack.c.b16 %v2381, %v2380
    %v2411 = vpack.c.b16 %v2383, %v2382
    %v2412 = vpack.c.b16 %v2385, %v2384
    %v2413 = vpack.c.b16 %v2387, %v2386
    %v2414 = vpack.c.b16 %v2389, %v2388
    %v2415 = vpack.c.b16 %v2391, %v2390
    %v2416 = vpack.c.b16 %v2393, %v2392
    %v2417 = vpack.c.b16 %v2395, %v2394
    %v2418 = vpack.c.b16 %v2397, %v2396
    %v2419 = vpack.c.b16 %v2399, %v2398
    %v2420 = vpack.c.b16 %v2401, %v2400
    %v2421 = vpack.c.b16 %v2403, %v2402
    %v2422 = vpack.c.b16 %v2405, %v2404
    %v2423 = vpack.c.b16 %v2407, %v2406
    %2424 = vrot.lane.b32.xlu0 %v2408, 96
    %v2425 = vpop.permute.xlu0 %2424
    %2426 = vrot.lane.b32.xlu0 %v2409, 96
    %v2427 = vpop.permute.xlu0 %2426
    %2428 = vrot.lane.b32.xlu0 %v2410, 96
    %v2429 = vpop.permute.xlu0 %2428
    %2430 = vrot.lane.b32.xlu0 %v2411, 96
    %v2431 = vpop.permute.xlu0 %2430
    %2432 = vrot.lane.b32.xlu0 %v2412, 96
    %v2433 = vpop.permute.xlu0 %2432
    %2434 = vrot.lane.b32.xlu0 %v2413, 96
    %v2435 = vpop.permute.xlu0 %2434
    %2436 = vrot.lane.b32.xlu0 %v2414, 96
    %v2437 = vpop.permute.xlu0 %2436
    %2438 = vrot.lane.b32.xlu0 %v2415, 96
    %v2439 = vpop.permute.xlu0 %2438
    %2440 = vrot.lane.b32.xlu0 %v2416, 96
    %v2441 = vpop.permute.xlu0 %2440
    %2442 = vrot.lane.b32.xlu0 %v2417, 96
    %v2443 = vpop.permute.xlu0 %2442
    %2444 = vrot.lane.b32.xlu0 %v2418, 96
    %v2445 = vpop.permute.xlu0 %2444
    %2446 = vrot.lane.b32.xlu0 %v2419, 96
    %v2447 = vpop.permute.xlu0 %2446
    %2448 = vrot.lane.b32.xlu0 %v2420, 96
    %v2449 = vpop.permute.xlu0 %2448
    %2450 = vrot.lane.b32.xlu0 %v2421, 96
    %v2451 = vpop.permute.xlu0 %2450
    %2452 = vrot.lane.b32.xlu0 %v2422, 96
    %v2453 = vpop.permute.xlu0 %2452
    %2454 = vrot.lane.b32.xlu0 %v2423, 96
    %v2455 = vpop.permute.xlu0 %2454
    %vm2472 = vcmask 1048320
    %2473 = vst.msk [vmem:[#allocation3] sm:$0xff] %vm2472, %v2425
    %2474 = vst.msk [vmem:[#allocation3 + $0x18] sm:$0xff] %vm2472, %v2427
    %2475 = vst.msk [vmem:[#allocation3 + $0x30] sm:$0xff] %vm2472, %v2429
    %2476 = vst.msk [vmem:[#allocation3 + $0x48] sm:$0xff] %vm2472, %v2431
    %2477 = vst.msk [vmem:[#allocation3 + $0x60] sm:$0xff] %vm2472, %v2433
    %2478 = vst.msk [vmem:[#allocation3 + $0x78] sm:$0xff] %vm2472, %v2435
    %2479 = vst.msk [vmem:[#allocation3 + $0x90] sm:$0xff] %vm2472, %v2437
    %2480 = vst.msk [vmem:[#allocation3 + $0xa8] sm:$0xff] %vm2472, %v2439
    %2481 = vst.msk [vmem:[#allocation3 + $0xc0] sm:$0xff] %vm2472, %v2441
    %2482 = vst.msk [vmem:[#allocation3 + $0xd8] sm:$0xff] %vm2472, %v2443
    %2483 = vst.msk [vmem:[#allocation3 + $0xf0] sm:$0xff] %vm2472, %v2445
    %2484 = vst.msk [vmem:[#allocation3 + $0x108] sm:$0xff] %vm2472, %v2447
    %2485 = vst.msk [vmem:[#allocation3 + $0x120] sm:$0xff] %vm2472, %v2449
    %2486 = vst.msk [vmem:[#allocation3 + $0x138] sm:$0xff] %vm2472, %v2451
    %2487 = vst.msk [vmem:[#allocation3 + $0x150] sm:$0xff] %vm2472, %v2453
    %2488 = vst.msk [vmem:[#allocation3 + $0x168] sm:$0xff] %vm2472, %v2455
    %v2489 = vld [vmem:[%s359] sm:$0xf]
    %v2490 = vld [vmem:[%s359 + $0x4] sm:$0x1]
    %v2491 = vld [vmem:[%s359 + $0x8] sm:$0xf]
    %v2492 = vld [vmem:[%s359 + $0xc] sm:$0x1]
    %v2493 = vld [vmem:[%s359 + $0x10] sm:$0xf]
    %v2494 = vld [vmem:[%s359 + $0x14] sm:$0x1]
    %v2495 = vld [vmem:[%s359 + $0x18] sm:$0xf]
    %v2496 = vld [vmem:[%s359 + $0x1c] sm:$0x1]
    %v2497 = vld [vmem:[%s359 + $0x20] sm:$0xf]
    %v2498 = vld [vmem:[%s359 + $0x24] sm:$0x1]
    %v2499 = vld [vmem:[%s359 + $0x28] sm:$0xf]
    %v2500 = vld [vmem:[%s359 + $0x2c] sm:$0x1]
    %v2501 = vld [vmem:[%s359 + $0x30] sm:$0xf]
    %v2502 = vld [vmem:[%s359 + $0x34] sm:$0x1]
    %v2503 = vld [vmem:[%s359 + $0x38] sm:$0xf]
    %v2504 = vld [vmem:[%s359 + $0x3c] sm:$0x1]
    %v2505 = vld [vmem:[%s359 + $0x50] sm:$0xf]
    %v2506 = vld [vmem:[%s359 + $0x54] sm:$0x1]
    %v2507 = vld [vmem:[%s359 + $0x58] sm:$0xf]
    %v2508 = vld [vmem:[%s359 + $0x5c] sm:$0x1]
    %v2509 = vld [vmem:[%s359 + $0x60] sm:$0xf]
    %v2510 = vld [vmem:[%s359 + $0x64] sm:$0x1]
    %v2511 = vld [vmem:[%s359 + $0x68] sm:$0xf]
    %v2512 = vld [vmem:[%s359 + $0x6c] sm:$0x1]
    %v2513 = vld [vmem:[%s359 + $0x70] sm:$0xf]
    %v2514 = vld [vmem:[%s359 + $0x74] sm:$0x1]
    %v2515 = vld [vmem:[%s359 + $0x78] sm:$0xf]
    %v2516 = vld [vmem:[%s359 + $0x7c] sm:$0x1]
    %v2517 = vld [vmem:[%s359 + $0x80] sm:$0xf]
    %v2518 = vld [vmem:[%s359 + $0x84] sm:$0x1]
    %v2519 = vld [vmem:[%s359 + $0x88] sm:$0xf]
    %v2520 = vld [vmem:[%s359 + $0x8c] sm:$0x1]
    %v2521 = vld [vmem:[%s359 + $0xa0] sm:$0xf]
    %v2522 = vld [vmem:[%s359 + $0xa4] sm:$0x1]
    %v2523 = vld [vmem:[%s359 + $0xa8] sm:$0xf]
    %v2524 = vld [vmem:[%s359 + $0xac] sm:$0x1]
    %v2525 = vld [vmem:[%s359 + $0xb0] sm:$0xf]
    %v2526 = vld [vmem:[%s359 + $0xb4] sm:$0x1]
    %v2527 = vld [vmem:[%s359 + $0xb8] sm:$0xf]
    %v2528 = vld [vmem:[%s359 + $0xbc] sm:$0x1]
    %v2529 = vld [vmem:[%s359 + $0xc0] sm:$0xf]
    %v2530 = vld [vmem:[%s359 + $0xc4] sm:$0x1]
    %v2531 = vld [vmem:[%s359 + $0xc8] sm:$0xf]
    %v2532 = vld [vmem:[%s359 + $0xcc] sm:$0x1]
    %v2533 = vld [vmem:[%s359 + $0xd0] sm:$0xf]
    %v2534 = vld [vmem:[%s359 + $0xd4] sm:$0x1]
    %v2535 = vld [vmem:[%s359 + $0xd8] sm:$0xf]
    %v2536 = vld [vmem:[%s359 + $0xdc] sm:$0x1]
    %v2537 = vld [vmem:[%s359 + $0xf0] sm:$0xf]
    %v2538 = vld [vmem:[%s359 + $0xf4] sm:$0x1]
    %v2539 = vld [vmem:[%s359 + $0xf8] sm:$0xf]
    %v2540 = vld [vmem:[%s359 + $0xfc] sm:$0x1]
    %v2541 = vld [vmem:[%s359 + $0x100] sm:$0xf]
    %v2542 = vld [vmem:[%s359 + $0x104] sm:$0x1]
    %v2543 = vld [vmem:[%s359 + $0x108] sm:$0xf]
    %v2544 = vld [vmem:[%s359 + $0x10c] sm:$0x1]
    %v2545 = vld [vmem:[%s359 + $0x110] sm:$0xf]
    %v2546 = vld [vmem:[%s359 + $0x114] sm:$0x1]
    %v2547 = vld [vmem:[%s359 + $0x118] sm:$0xf]
    %v2548 = vld [vmem:[%s359 + $0x11c] sm:$0x1]
    %v2549 = vld [vmem:[%s359 + $0x120] sm:$0xf]
    %v2550 = vld [vmem:[%s359 + $0x124] sm:$0x1]
    %v2551 = vld [vmem:[%s359 + $0x128] sm:$0xf]
    %v2552 = vld [vmem:[%s359 + $0x12c] sm:$0x1]
    %v2554 = vshrl.u32 %v2489, 16
    %v2556 = vrot.slane %v2554, 4
    %v2557 = vshll.u32 %v2489, 16
    %v2559 = vrot.slane %v2557, 5
    %v2560 = vor.u32 %v2556, %v2559
    %v2561 = vrot.slane %v2560, 4
    %v2563 = vshll.u32 %v2490, 16
    %v2565 = vrot.slane %v2563, 5
    %v2566 = vsel %vm1378, %v2561, %v2565
    %v2568 = vshrl.u32 %v2491, 16
    %v2570 = vrot.slane %v2568, 4
    %v2571 = vshll.u32 %v2491, 16
    %v2573 = vrot.slane %v2571, 5
    %v2574 = vor.u32 %v2570, %v2573
    %v2575 = vrot.slane %v2574, 4
    %v2577 = vshll.u32 %v2492, 16
    %v2579 = vrot.slane %v2577, 5
    %v2580 = vsel %vm1378, %v2575, %v2579
    %v2582 = vshrl.u32 %v2493, 16
    %v2584 = vrot.slane %v2582, 4
    %v2585 = vshll.u32 %v2493, 16
    %v2587 = vrot.slane %v2585, 5
    %v2588 = vor.u32 %v2584, %v2587
    %v2589 = vrot.slane %v2588, 4
    %v2591 = vshll.u32 %v2494, 16
    %v2593 = vrot.slane %v2591, 5
    %v2594 = vsel %vm1378, %v2589, %v2593
    %v2596 = vshrl.u32 %v2495, 16
    %v2598 = vrot.slane %v2596, 4
    %v2599 = vshll.u32 %v2495, 16
    %v2601 = vrot.slane %v2599, 5
    %v2602 = vor.u32 %v2598, %v2601
    %v2603 = vrot.slane %v2602, 4
    %v2605 = vshll.u32 %v2496, 16
    %v2607 = vrot.slane %v2605, 5
    %v2608 = vsel %vm1378, %v2603, %v2607
    %v2610 = vshrl.u32 %v2497, 16
    %v2612 = vrot.slane %v2610, 4
    %v2613 = vshll.u32 %v2497, 16
    %v2615 = vrot.slane %v2613, 5
    %v2616 = vor.u32 %v2612, %v2615
    %v2617 = vrot.slane %v2616, 4
    %v2619 = vshll.u32 %v2498, 16
    %v2621 = vrot.slane %v2619, 5
    %v2622 = vsel %vm1378, %v2617, %v2621
    %v2624 = vshrl.u32 %v2499, 16
    %v2626 = vrot.slane %v2624, 4
    %v2627 = vshll.u32 %v2499, 16
    %v2629 = vrot.slane %v2627, 5
    %v2630 = vor.u32 %v2626, %v2629
    %v2631 = vrot.slane %v2630, 4
    %v2633 = vshll.u32 %v2500, 16
    %v2635 = vrot.slane %v2633, 5
    %v2636 = vsel %vm1378, %v2631, %v2635
    %v2638 = vshrl.u32 %v2501, 16
    %v2640 = vrot.slane %v2638, 4
    %v2641 = vshll.u32 %v2501, 16
    %v2643 = vrot.slane %v2641, 5
    %v2644 = vor.u32 %v2640, %v2643
    %v2645 = vrot.slane %v2644, 4
    %v2647 = vshll.u32 %v2502, 16
    %v2649 = vrot.slane %v2647, 5
    %v2650 = vsel %vm1378, %v2645, %v2649
    %v2652 = vshrl.u32 %v2503, 16
    %v2654 = vrot.slane %v2652, 4
    %v2655 = vshll.u32 %v2503, 16
    %v2657 = vrot.slane %v2655, 5
    %v2658 = vor.u32 %v2654, %v2657
    %v2659 = vrot.slane %v2658, 4
    %v2661 = vshll.u32 %v2504, 16
    %v2663 = vrot.slane %v2661, 5
    %v2664 = vsel %vm1378, %v2659, %v2663
    %v2666 = vshrl.u32 %v2505, 16
    %v2668 = vrot.slane %v2666, 4
    %v2669 = vshll.u32 %v2505, 16
    %v2671 = vrot.slane %v2669, 5
    %v2672 = vor.u32 %v2668, %v2671
    %v2673 = vrot.slane %v2672, 4
    %v2675 = vshll.u32 %v2506, 16
    %v2677 = vrot.slane %v2675, 5
    %v2678 = vsel %vm1378, %v2673, %v2677
    %v2680 = vshrl.u32 %v2507, 16
    %v2682 = vrot.slane %v2680, 4
    %v2683 = vshll.u32 %v2507, 16
    %v2685 = vrot.slane %v2683, 5
    %v2686 = vor.u32 %v2682, %v2685
    %v2687 = vrot.slane %v2686, 4
    %v2689 = vshll.u32 %v2508, 16
    %v2691 = vrot.slane %v2689, 5
    %v2692 = vsel %vm1378, %v2687, %v2691
    %v2694 = vshrl.u32 %v2509, 16
    %v2696 = vrot.slane %v2694, 4
    %v2697 = vshll.u32 %v2509, 16
    %v2699 = vrot.slane %v2697, 5
    %v2700 = vor.u32 %v2696, %v2699
    %v2701 = vrot.slane %v2700, 4
    %v2703 = vshll.u32 %v2510, 16
    %v2705 = vrot.slane %v2703, 5
    %v2706 = vsel %vm1378, %v2701, %v2705
    %v2708 = vshrl.u32 %v2511, 16
    %v2710 = vrot.slane %v2708, 4
    %v2711 = vshll.u32 %v2511, 16
    %v2713 = vrot.slane %v2711, 5
    %v2714 = vor.u32 %v2710, %v2713
    %v2715 = vrot.slane %v2714, 4
    %v2717 = vshll.u32 %v2512, 16
    %v2719 = vrot.slane %v2717, 5
    %v2720 = vsel %vm1378, %v2715, %v2719
    %v2722 = vshrl.u32 %v2513, 16
    %v2724 = vrot.slane %v2722, 4
    %v2725 = vshll.u32 %v2513, 16
    %v2727 = vrot.slane %v2725, 5
    %v2728 = vor.u32 %v2724, %v2727
    %v2729 = vrot.slane %v2728, 4
    %v2731 = vshll.u32 %v2514, 16
    %v2733 = vrot.slane %v2731, 5
    %v2734 = vsel %vm1378, %v2729, %v2733
    %v2736 = vshrl.u32 %v2515, 16
    %v2738 = vrot.slane %v2736, 4
    %v2739 = vshll.u32 %v2515, 16
    %v2741 = vrot.slane %v2739, 5
    %v2742 = vor.u32 %v2738, %v2741
    %v2743 = vrot.slane %v2742, 4
    %v2745 = vshll.u32 %v2516, 16
    %v2747 = vrot.slane %v2745, 5
    %v2748 = vsel %vm1378, %v2743, %v2747
    %v2750 = vshrl.u32 %v2517, 16
    %v2752 = vrot.slane %v2750, 4
    %v2753 = vshll.u32 %v2517, 16
    %v2755 = vrot.slane %v2753, 5
    %v2756 = vor.u32 %v2752, %v2755
    %v2757 = vrot.slane %v2756, 4
    %v2759 = vshll.u32 %v2518, 16
    %v2761 = vrot.slane %v2759, 5
    %v2762 = vsel %vm1378, %v2757, %v2761
    %v2764 = vshrl.u32 %v2519, 16
    %v2766 = vrot.slane %v2764, 4
    %v2767 = vshll.u32 %v2519, 16
    %v2769 = vrot.slane %v2767, 5
    %v2770 = vor.u32 %v2766, %v2769
    %v2771 = vrot.slane %v2770, 4
    %v2773 = vshll.u32 %v2520, 16
    %v2775 = vrot.slane %v2773, 5
    %v2776 = vsel %vm1378, %v2771, %v2775
    %v2778 = vshrl.u32 %v2521, 16
    %v2780 = vrot.slane %v2778, 4
    %v2781 = vshll.u32 %v2521, 16
    %v2783 = vrot.slane %v2781, 5
    %v2784 = vor.u32 %v2780, %v2783
    %v2785 = vrot.slane %v2784, 4
    %v2787 = vshll.u32 %v2522, 16
    %v2789 = vrot.slane %v2787, 5
    %v2790 = vsel %vm1378, %v2785, %v2789
    %v2792 = vshrl.u32 %v2523, 16
    %v2794 = vrot.slane %v2792, 4
    %v2795 = vshll.u32 %v2523, 16
    %v2797 = vrot.slane %v2795, 5
    %v2798 = vor.u32 %v2794, %v2797
    %v2799 = vrot.slane %v2798, 4
    %v2801 = vshll.u32 %v2524, 16
    %v2803 = vrot.slane %v2801, 5
    %v2804 = vsel %vm1378, %v2799, %v2803
    %v2806 = vshrl.u32 %v2525, 16
    %v2808 = vrot.slane %v2806, 4
    %v2809 = vshll.u32 %v2525, 16
    %v2811 = vrot.slane %v2809, 5
    %v2812 = vor.u32 %v2808, %v2811
    %v2813 = vrot.slane %v2812, 4
    %v2815 = vshll.u32 %v2526, 16
    %v2817 = vrot.slane %v2815, 5
    %v2818 = vsel %vm1378, %v2813, %v2817
    %v2820 = vshrl.u32 %v2527, 16
    %v2822 = vrot.slane %v2820, 4
    %v2823 = vshll.u32 %v2527, 16
    %v2825 = vrot.slane %v2823, 5
    %v2826 = vor.u32 %v2822, %v2825
    %v2827 = vrot.slane %v2826, 4
    %v2829 = vshll.u32 %v2528, 16
    %v2831 = vrot.slane %v2829, 5
    %v2832 = vsel %vm1378, %v2827, %v2831
    %v2834 = vshrl.u32 %v2529, 16
    %v2836 = vrot.slane %v2834, 4
    %v2837 = vshll.u32 %v2529, 16
    %v2839 = vrot.slane %v2837, 5
    %v2840 = vor.u32 %v2836, %v2839
    %v2841 = vrot.slane %v2840, 4
    %v2843 = vshll.u32 %v2530, 16
    %v2845 = vrot.slane %v2843, 5
    %v2846 = vsel %vm1378, %v2841, %v2845
    %v2848 = vshrl.u32 %v2531, 16
    %v2850 = vrot.slane %v2848, 4
    %v2851 = vshll.u32 %v2531, 16
    %v2853 = vrot.slane %v2851, 5
    %v2854 = vor.u32 %v2850, %v2853
    %v2855 = vrot.slane %v2854, 4
    %v2857 = vshll.u32 %v2532, 16
    %v2859 = vrot.slane %v2857, 5
    %v2860 = vsel %vm1378, %v2855, %v2859
    %v2862 = vshrl.u32 %v2533, 16
    %v2864 = vrot.slane %v2862, 4
    %v2865 = vshll.u32 %v2533, 16
    %v2867 = vrot.slane %v2865, 5
    %v2868 = vor.u32 %v2864, %v2867
    %v2869 = vrot.slane %v2868, 4
    %v2871 = vshll.u32 %v2534, 16
    %v2873 = vrot.slane %v2871, 5
    %v2874 = vsel %vm1378, %v2869, %v2873
    %v2876 = vshrl.u32 %v2535, 16
    %v2878 = vrot.slane %v2876, 4
    %v2879 = vshll.u32 %v2535, 16
    %v2881 = vrot.slane %v2879, 5
    %v2882 = vor.u32 %v2878, %v2881
    %v2883 = vrot.slane %v2882, 4
    %v2885 = vshll.u32 %v2536, 16
    %v2887 = vrot.slane %v2885, 5
    %v2888 = vsel %vm1378, %v2883, %v2887
    %v2890 = vshrl.u32 %v2537, 16
    %v2892 = vrot.slane %v2890, 4
    %v2893 = vshll.u32 %v2537, 16
    %v2895 = vrot.slane %v2893, 5
    %v2896 = vor.u32 %v2892, %v2895
    %v2897 = vrot.slane %v2896, 4
    %v2899 = vshll.u32 %v2538, 16
    %v2901 = vrot.slane %v2899, 5
    %v2902 = vsel %vm1378, %v2897, %v2901
    %v2904 = vshrl.u32 %v2539, 16
    %v2906 = vrot.slane %v2904, 4
    %v2907 = vshll.u32 %v2539, 16
    %v2909 = vrot.slane %v2907, 5
    %v2910 = vor.u32 %v2906, %v2909
    %v2911 = vrot.slane %v2910, 4
    %v2913 = vshll.u32 %v2540, 16
    %v2915 = vrot.slane %v2913, 5
    %v2916 = vsel %vm1378, %v2911, %v2915
    %v2918 = vshrl.u32 %v2541, 16
    %v2920 = vrot.slane %v2918, 4
    %v2921 = vshll.u32 %v2541, 16
    %v2923 = vrot.slane %v2921, 5
    %v2924 = vor.u32 %v2920, %v2923
    %v2925 = vrot.slane %v2924, 4
    %v2927 = vshll.u32 %v2542, 16
    %v2929 = vrot.slane %v2927, 5
    %v2930 = vsel %vm1378, %v2925, %v2929
    %v2932 = vshrl.u32 %v2543, 16
    %v2934 = vrot.slane %v2932, 4
    %v2935 = vshll.u32 %v2543, 16
    %v2937 = vrot.slane %v2935, 5
    %v2938 = vor.u32 %v2934, %v2937
    %v2939 = vrot.slane %v2938, 4
    %v2941 = vshll.u32 %v2544, 16
    %v2943 = vrot.slane %v2941, 5
    %v2944 = vsel %vm1378, %v2939, %v2943
    %v2946 = vshrl.u32 %v2545, 16
    %v2948 = vrot.slane %v2946, 4
    %v2949 = vshll.u32 %v2545, 16
    %v2951 = vrot.slane %v2949, 5
    %v2952 = vor.u32 %v2948, %v2951
    %v2953 = vrot.slane %v2952, 4
    %v2955 = vshll.u32 %v2546, 16
    %v2957 = vrot.slane %v2955, 5
    %v2958 = vsel %vm1378, %v2953, %v2957
    %v2960 = vshrl.u32 %v2547, 16
    %v2962 = vrot.slane %v2960, 4
    %v2963 = vshll.u32 %v2547, 16
    %v2965 = vrot.slane %v2963, 5
    %v2966 = vor.u32 %v2962, %v2965
    %v2967 = vrot.slane %v2966, 4
    %v2969 = vshll.u32 %v2548, 16
    %v2971 = vrot.slane %v2969, 5
    %v2972 = vsel %vm1378, %v2967, %v2971
    %v2974 = vshrl.u32 %v2549, 16
    %v2976 = vrot.slane %v2974, 4
    %v2977 = vshll.u32 %v2549, 16
    %v2979 = vrot.slane %v2977, 5
    %v2980 = vor.u32 %v2976, %v2979
    %v2981 = vrot.slane %v2980, 4
    %v2983 = vshll.u32 %v2550, 16
    %v2985 = vrot.slane %v2983, 5
    %v2986 = vsel %vm1378, %v2981, %v2985
    %v2988 = vshrl.u32 %v2551, 16
    %v2990 = vrot.slane %v2988, 4
    %v2991 = vshll.u32 %v2551, 16
    %v2993 = vrot.slane %v2991, 5
    %v2994 = vor.u32 %v2990, %v2993
    %v2995 = vrot.slane %v2994, 4
    %v2997 = vshll.u32 %v2552, 16
    %v2999 = vrot.slane %v2997, 5
    %v3000 = vsel %vm1378, %v2995, %v2999
    %v3001 = vunpack.c.l.b16 %v2566
    %v3002 = vunpack.c.l.b16 %v2580
    %v3003 = vunpack.c.l.b16 %v2594
    %v3004 = vunpack.c.l.b16 %v2608
    %v3005 = vunpack.c.l.b16 %v2622
    %v3006 = vunpack.c.l.b16 %v2636
    %v3007 = vunpack.c.l.b16 %v2650
    %v3008 = vunpack.c.l.b16 %v2664
    %v3009 = vunpack.c.l.b16 %v2678
    %v3010 = vunpack.c.l.b16 %v2692
    %v3011 = vunpack.c.l.b16 %v2706
    %v3012 = vunpack.c.l.b16 %v2720
    %v3013 = vunpack.c.l.b16 %v2734
    %v3014 = vunpack.c.l.b16 %v2748
    %v3015 = vunpack.c.l.b16 %v2762
    %v3016 = vunpack.c.l.b16 %v2776
    %v3017 = vunpack.c.l.b16 %v2790
    %v3018 = vunpack.c.l.b16 %v2804
    %v3019 = vunpack.c.l.b16 %v2818
    %v3020 = vunpack.c.l.b16 %v2832
    %v3021 = vunpack.c.l.b16 %v2846
    %v3022 = vunpack.c.l.b16 %v2860
    %v3023 = vunpack.c.l.b16 %v2874
    %v3024 = vunpack.c.l.b16 %v2888
    %v3025 = vunpack.c.l.b16 %v2902
    %v3026 = vunpack.c.l.b16 %v2916
    %v3027 = vunpack.c.l.b16 %v2930
    %v3028 = vunpack.c.l.b16 %v2944
    %v3029 = vunpack.c.l.b16 %v2958
    %v3030 = vunpack.c.l.b16 %v2972
    %v3031 = vunpack.c.l.b16 %v2986
    %v3032 = vunpack.c.l.b16 %v3000
    %v3033 = vpack.c.b16 %v3002, %v3001
    %v3034 = vpack.c.b16 %v3004, %v3003
    %v3035 = vpack.c.b16 %v3006, %v3005
    %v3036 = vpack.c.b16 %v3008, %v3007
    %v3037 = vpack.c.b16 %v3010, %v3009
    %v3038 = vpack.c.b16 %v3012, %v3011
    %v3039 = vpack.c.b16 %v3014, %v3013
    %v3040 = vpack.c.b16 %v3016, %v3015
    %v3041 = vpack.c.b16 %v3018, %v3017
    %v3042 = vpack.c.b16 %v3020, %v3019
    %v3043 = vpack.c.b16 %v3022, %v3021
    %v3044 = vpack.c.b16 %v3024, %v3023
    %v3045 = vpack.c.b16 %v3026, %v3025
    %v3046 = vpack.c.b16 %v3028, %v3027
    %v3047 = vpack.c.b16 %v3030, %v3029
    %v3048 = vpack.c.b16 %v3032, %v3031
    %3065 = vst.msk [vmem:[#allocation3 + $0x8] sm:$0xff] %vm1295, %v3033
    %3066 = vst.msk [vmem:[#allocation3 + $0x20] sm:$0xff] %vm1295, %v3034
    %3067 = vst.msk [vmem:[#allocation3 + $0x38] sm:$0xff] %vm1295, %v3035
    %3068 = vst.msk [vmem:[#allocation3 + $0x50] sm:$0xff] %vm1295, %v3036
    %3069 = vst.msk [vmem:[#allocation3 + $0x68] sm:$0xff] %vm1295, %v3037
    %3070 = vst.msk [vmem:[#allocation3 + $0x80] sm:$0xff] %vm1295, %v3038
    %3071 = vst.msk [vmem:[#allocation3 + $0x98] sm:$0xff] %vm1295, %v3039
    %3072 = vst.msk [vmem:[#allocation3 + $0xb0] sm:$0xff] %vm1295, %v3040
    %3073 = vst.msk [vmem:[#allocation3 + $0xc8] sm:$0xff] %vm1295, %v3041
    %3074 = vst.msk [vmem:[#allocation3 + $0xe0] sm:$0xff] %vm1295, %v3042
    %3075 = vst.msk [vmem:[#allocation3 + $0xf8] sm:$0xff] %vm1295, %v3043
    %3076 = vst.msk [vmem:[#allocation3 + $0x110] sm:$0xff] %vm1295, %v3044
    %3077 = vst.msk [vmem:[#allocation3 + $0x128] sm:$0xff] %vm1295, %v3045
    %3078 = vst.msk [vmem:[#allocation3 + $0x140] sm:$0xff] %vm1295, %v3046
    %3079 = vst.msk [vmem:[#allocation3 + $0x158] sm:$0xff] %vm1295, %v3047
    %3080 = vst.msk [vmem:[#allocation3 + $0x170] sm:$0xff] %vm1295, %v3048
    %v3081 = vld [vmem:[%s359] sm:$0xe]
    %v3082 = vld [vmem:[%s359 + $0x4] sm:$0x1]
    %v3083 = vld [vmem:[%s359 + $0x8] sm:$0xe]
    %v3084 = vld [vmem:[%s359 + $0xc] sm:$0x1]
    %v3085 = vld [vmem:[%s359 + $0x10] sm:$0xe]
    %v3086 = vld [vmem:[%s359 + $0x14] sm:$0x1]
    %v3087 = vld [vmem:[%s359 + $0x18] sm:$0xe]
    %v3088 = vld [vmem:[%s359 + $0x1c] sm:$0x1]
    %v3089 = vld [vmem:[%s359 + $0x20] sm:$0xe]
    %v3090 = vld [vmem:[%s359 + $0x24] sm:$0x1]
    %v3091 = vld [vmem:[%s359 + $0x28] sm:$0xe]
    %v3092 = vld [vmem:[%s359 + $0x2c] sm:$0x1]
    %v3093 = vld [vmem:[%s359 + $0x30] sm:$0xe]
    %v3094 = vld [vmem:[%s359 + $0x34] sm:$0x1]
    %v3095 = vld [vmem:[%s359 + $0x38] sm:$0xe]
    %v3096 = vld [vmem:[%s359 + $0x3c] sm:$0x1]
    %v3097 = vld [vmem:[%s359 + $0x50] sm:$0xe]
    %v3098 = vld [vmem:[%s359 + $0x54] sm:$0x1]
    %v3099 = vld [vmem:[%s359 + $0x58] sm:$0xe]
    %v3100 = vld [vmem:[%s359 + $0x5c] sm:$0x1]
    %v3101 = vld [vmem:[%s359 + $0x60] sm:$0xe]
    %v3102 = vld [vmem:[%s359 + $0x64] sm:$0x1]
    %v3103 = vld [vmem:[%s359 + $0x68] sm:$0xe]
    %v3104 = vld [vmem:[%s359 + $0x6c] sm:$0x1]
    %v3105 = vld [vmem:[%s359 + $0x70] sm:$0xe]
    %v3106 = vld [vmem:[%s359 + $0x74] sm:$0x1]
    %v3107 = vld [vmem:[%s359 + $0x78] sm:$0xe]
    %v3108 = vld [vmem:[%s359 + $0x7c] sm:$0x1]
    %v3109 = vld [vmem:[%s359 + $0x80] sm:$0xe]
    %v3110 = vld [vmem:[%s359 + $0x84] sm:$0x1]
    %v3111 = vld [vmem:[%s359 + $0x88] sm:$0xe]
    %v3112 = vld [vmem:[%s359 + $0x8c] sm:$0x1]
    %v3113 = vld [vmem:[%s359 + $0xa0] sm:$0xe]
    %v3114 = vld [vmem:[%s359 + $0xa4] sm:$0x1]
    %v3115 = vld [vmem:[%s359 + $0xa8] sm:$0xe]
    %v3116 = vld [vmem:[%s359 + $0xac] sm:$0x1]
    %v3117 = vld [vmem:[%s359 + $0xb0] sm:$0xe]
    %v3118 = vld [vmem:[%s359 + $0xb4] sm:$0x1]
    %v3119 = vld [vmem:[%s359 + $0xb8] sm:$0xe]
    %v3120 = vld [vmem:[%s359 + $0xbc] sm:$0x1]
    %v3121 = vld [vmem:[%s359 + $0xc0] sm:$0xe]
    %v3122 = vld [vmem:[%s359 + $0xc4] sm:$0x1]
    %v3123 = vld [vmem:[%s359 + $0xc8] sm:$0xe]
    %v3124 = vld [vmem:[%s359 + $0xcc] sm:$0x1]
    %v3125 = vld [vmem:[%s359 + $0xd0] sm:$0xe]
    %v3126 = vld [vmem:[%s359 + $0xd4] sm:$0x1]
    %v3127 = vld [vmem:[%s359 + $0xd8] sm:$0xe]
    %v3128 = vld [vmem:[%s359 + $0xdc] sm:$0x1]
    %v3129 = vld [vmem:[%s359 + $0xf0] sm:$0xe]
    %v3130 = vld [vmem:[%s359 + $0xf4] sm:$0x1]
    %v3131 = vld [vmem:[%s359 + $0xf8] sm:$0xe]
    %v3132 = vld [vmem:[%s359 + $0xfc] sm:$0x1]
    %v3133 = vld [vmem:[%s359 + $0x100] sm:$0xe]
    %v3134 = vld [vmem:[%s359 + $0x104] sm:$0x1]
    %v3135 = vld [vmem:[%s359 + $0x108] sm:$0xe]
    %v3136 = vld [vmem:[%s359 + $0x10c] sm:$0x1]
    %v3137 = vld [vmem:[%s359 + $0x110] sm:$0xe]
    %v3138 = vld [vmem:[%s359 + $0x114] sm:$0x1]
    %v3139 = vld [vmem:[%s359 + $0x118] sm:$0xe]
    %v3140 = vld [vmem:[%s359 + $0x11c] sm:$0x1]
    %v3141 = vld [vmem:[%s359 + $0x120] sm:$0xe]
    %v3142 = vld [vmem:[%s359 + $0x124] sm:$0x1]
    %v3143 = vld [vmem:[%s359 + $0x128] sm:$0xe]
    %v3144 = vld [vmem:[%s359 + $0x12c] sm:$0x1]
    %v3209 = vrot.slane %v3081, 5
    %v3210 = vrot.slane %v3209, 4
    %v3211 = vrot.slane %v3082, 5
    %v3212 = vsel %vm2070, %v3210, %v3211
    %v3213 = vrot.slane %v3083, 5
    %v3214 = vrot.slane %v3213, 4
    %v3215 = vrot.slane %v3084, 5
    %v3216 = vsel %vm2070, %v3214, %v3215
    %v3217 = vrot.slane %v3085, 5
    %v3218 = vrot.slane %v3217, 4
    %v3219 = vrot.slane %v3086, 5
    %v3220 = vsel %vm2070, %v3218, %v3219
    %v3221 = vrot.slane %v3087, 5
    %v3222 = vrot.slane %v3221, 4
    %v3223 = vrot.slane %v3088, 5
    %v3224 = vsel %vm2070, %v3222, %v3223
    %v3225 = vrot.slane %v3089, 5
    %v3226 = vrot.slane %v3225, 4
    %v3227 = vrot.slane %v3090, 5
    %v3228 = vsel %vm2070, %v3226, %v3227
    %v3229 = vrot.slane %v3091, 5
    %v3230 = vrot.slane %v3229, 4
    %v3231 = vrot.slane %v3092, 5
    %v3232 = vsel %vm2070, %v3230, %v3231
    %v3233 = vrot.slane %v3093, 5
    %v3234 = vrot.slane %v3233, 4
    %v3235 = vrot.slane %v3094, 5
    %v3236 = vsel %vm2070, %v3234, %v3235
    %v3237 = vrot.slane %v3095, 5
    %v3238 = vrot.slane %v3237, 4
    %v3239 = vrot.slane %v3096, 5
    %v3240 = vsel %vm2070, %v3238, %v3239
    %v3241 = vrot.slane %v3097, 5
    %v3242 = vrot.slane %v3241, 4
    %v3243 = vrot.slane %v3098, 5
    %v3244 = vsel %vm2070, %v3242, %v3243
    %v3245 = vrot.slane %v3099, 5
    %v3246 = vrot.slane %v3245, 4
    %v3247 = vrot.slane %v3100, 5
    %v3248 = vsel %vm2070, %v3246, %v3247
    %v3249 = vrot.slane %v3101, 5
    %v3250 = vrot.slane %v3249, 4
    %v3251 = vrot.slane %v3102, 5
    %v3252 = vsel %vm2070, %v3250, %v3251
    %v3253 = vrot.slane %v3103, 5
    %v3254 = vrot.slane %v3253, 4
    %v3255 = vrot.slane %v3104, 5
    %v3256 = vsel %vm2070, %v3254, %v3255
    %v3257 = vrot.slane %v3105, 5
    %v3258 = vrot.slane %v3257, 4
    %v3259 = vrot.slane %v3106, 5
    %v3260 = vsel %vm2070, %v3258, %v3259
    %v3261 = vrot.slane %v3107, 5
    %v3262 = vrot.slane %v3261, 4
    %v3263 = vrot.slane %v3108, 5
    %v3264 = vsel %vm2070, %v3262, %v3263
    %v3265 = vrot.slane %v3109, 5
    %v3266 = vrot.slane %v3265, 4
    %v3267 = vrot.slane %v3110, 5
    %v3268 = vsel %vm2070, %v3266, %v3267
    %v3269 = vrot.slane %v3111, 5
    %v3270 = vrot.slane %v3269, 4
    %v3271 = vrot.slane %v3112, 5
    %v3272 = vsel %vm2070, %v3270, %v3271
    %v3273 = vrot.slane %v3113, 5
    %v3274 = vrot.slane %v3273, 4
    %v3275 = vrot.slane %v3114, 5
    %v3276 = vsel %vm2070, %v3274, %v3275
    %v3277 = vrot.slane %v3115, 5
    %v3278 = vrot.slane %v3277, 4
    %v3279 = vrot.slane %v3116, 5
    %v3280 = vsel %vm2070, %v3278, %v3279
    %v3281 = vrot.slane %v3117, 5
    %v3282 = vrot.slane %v3281, 4
    %v3283 = vrot.slane %v3118, 5
    %v3284 = vsel %vm2070, %v3282, %v3283
    %v3285 = vrot.slane %v3119, 5
    %v3286 = vrot.slane %v3285, 4
    %v3287 = vrot.slane %v3120, 5
    %v3288 = vsel %vm2070, %v3286, %v3287
    %v3289 = vrot.slane %v3121, 5
    %v3290 = vrot.slane %v3289, 4
    %v3291 = vrot.slane %v3122, 5
    %v3292 = vsel %vm2070, %v3290, %v3291
    %v3293 = vrot.slane %v3123, 5
    %v3294 = vrot.slane %v3293, 4
    %v3295 = vrot.slane %v3124, 5
    %v3296 = vsel %vm2070, %v3294, %v3295
    %v3297 = vrot.slane %v3125, 5
    %v3298 = vrot.slane %v3297, 4
    %v3299 = vrot.slane %v3126, 5
    %v3300 = vsel %vm2070, %v3298, %v3299
    %v3301 = vrot.slane %v3127, 5
    %v3302 = vrot.slane %v3301, 4
    %v3303 = vrot.slane %v3128, 5
    %v3304 = vsel %vm2070, %v3302, %v3303
    %v3305 = vrot.slane %v3129, 5
    %v3306 = vrot.slane %v3305, 4
    %v3307 = vrot.slane %v3130, 5
    %v3308 = vsel %vm2070, %v3306, %v3307
    %v3309 = vrot.slane %v3131, 5
    %v3310 = vrot.slane %v3309, 4
    %v3311 = vrot.slane %v3132, 5
    %v3312 = vsel %vm2070, %v3310, %v3311
    %v3313 = vrot.slane %v3133, 5
    %v3314 = vrot.slane %v3313, 4
    %v3315 = vrot.slane %v3134, 5
    %v3316 = vsel %vm2070, %v3314, %v3315
    %v3317 = vrot.slane %v3135, 5
    %v3318 = vrot.slane %v3317, 4
    %v3319 = vrot.slane %v3136, 5
    %v3320 = vsel %vm2070, %v3318, %v3319
    %v3321 = vrot.slane %v3137, 5
    %v3322 = vrot.slane %v3321, 4
    %v3323 = vrot.slane %v3138, 5
    %v3324 = vsel %vm2070, %v3322, %v3323
    %v3325 = vrot.slane %v3139, 5
    %v3326 = vrot.slane %v3325, 4
    %v3327 = vrot.slane %v3140, 5
    %v3328 = vsel %vm2070, %v3326, %v3327
    %v3329 = vrot.slane %v3141, 5
    %v3330 = vrot.slane %v3329, 4
    %v3331 = vrot.slane %v3142, 5
    %v3332 = vsel %vm2070, %v3330, %v3331
    %v3333 = vrot.slane %v3143, 5
    %v3334 = vrot.slane %v3333, 4
    %v3335 = vrot.slane %v3144, 5
    %v3336 = vsel %vm2070, %v3334, %v3335
    %v3337 = vunpack.c.l.b16 %v3212
    %v3338 = vunpack.c.l.b16 %v3216
    %v3339 = vunpack.c.l.b16 %v3220
    %v3340 = vunpack.c.l.b16 %v3224
    %v3341 = vunpack.c.l.b16 %v3228
    %v3342 = vunpack.c.l.b16 %v3232
    %v3343 = vunpack.c.l.b16 %v3236
    %v3344 = vunpack.c.l.b16 %v3240
    %v3345 = vunpack.c.l.b16 %v3244
    %v3346 = vunpack.c.l.b16 %v3248
    %v3347 = vunpack.c.l.b16 %v3252
    %v3348 = vunpack.c.l.b16 %v3256
    %v3349 = vunpack.c.l.b16 %v3260
    %v3350 = vunpack.c.l.b16 %v3264
    %v3351 = vunpack.c.l.b16 %v3268
    %v3352 = vunpack.c.l.b16 %v3272
    %v3353 = vunpack.c.l.b16 %v3276
    %v3354 = vunpack.c.l.b16 %v3280
    %v3355 = vunpack.c.l.b16 %v3284
    %v3356 = vunpack.c.l.b16 %v3288
    %v3357 = vunpack.c.l.b16 %v3292
    %v3358 = vunpack.c.l.b16 %v3296
    %v3359 = vunpack.c.l.b16 %v3300
    %v3360 = vunpack.c.l.b16 %v3304
    %v3361 = vunpack.c.l.b16 %v3308
    %v3362 = vunpack.c.l.b16 %v3312
    %v3363 = vunpack.c.l.b16 %v3316
    %v3364 = vunpack.c.l.b16 %v3320
    %v3365 = vunpack.c.l.b16 %v3324
    %v3366 = vunpack.c.l.b16 %v3328
    %v3367 = vunpack.c.l.b16 %v3332
    %v3368 = vunpack.c.l.b16 %v3336
    %v3369 = vpack.c.b16 %v3338, %v3337
    %v3370 = vpack.c.b16 %v3340, %v3339
    %v3371 = vpack.c.b16 %v3342, %v3341
    %v3372 = vpack.c.b16 %v3344, %v3343
    %v3373 = vpack.c.b16 %v3346, %v3345
    %v3374 = vpack.c.b16 %v3348, %v3347
    %v3375 = vpack.c.b16 %v3350, %v3349
    %v3376 = vpack.c.b16 %v3352, %v3351
    %v3377 = vpack.c.b16 %v3354, %v3353
    %v3378 = vpack.c.b16 %v3356, %v3355
    %v3379 = vpack.c.b16 %v3358, %v3357
    %v3380 = vpack.c.b16 %v3360, %v3359
    %v3381 = vpack.c.b16 %v3362, %v3361
    %v3382 = vpack.c.b16 %v3364, %v3363
    %v3383 = vpack.c.b16 %v3366, %v3365
    %v3384 = vpack.c.b16 %v3368, %v3367
    %3385 = vrot.lane.b32.xlu0 %v3369, 32
    %v3386 = vpop.permute.xlu0 %3385
    %3387 = vrot.lane.b32.xlu0 %v3370, 32
    %v3388 = vpop.permute.xlu0 %3387
    %3389 = vrot.lane.b32.xlu0 %v3371, 32
    %v3390 = vpop.permute.xlu0 %3389
    %3391 = vrot.lane.b32.xlu0 %v3372, 32
    %v3392 = vpop.permute.xlu0 %3391
    %3393 = vrot.lane.b32.xlu0 %v3373, 32
    %v3394 = vpop.permute.xlu0 %3393
    %3395 = vrot.lane.b32.xlu0 %v3374, 32
    %v3396 = vpop.permute.xlu0 %3395
    %3397 = vrot.lane.b32.xlu0 %v3375, 32
    %v3398 = vpop.permute.xlu0 %3397
    %3399 = vrot.lane.b32.xlu0 %v3376, 32
    %v3400 = vpop.permute.xlu0 %3399
    %3401 = vrot.lane.b32.xlu0 %v3377, 32
    %v3402 = vpop.permute.xlu0 %3401
    %3403 = vrot.lane.b32.xlu0 %v3378, 32
    %v3404 = vpop.permute.xlu0 %3403
    %3405 = vrot.lane.b32.xlu0 %v3379, 32
    %v3406 = vpop.permute.xlu0 %3405
    %3407 = vrot.lane.b32.xlu0 %v3380, 32
    %v3408 = vpop.permute.xlu0 %3407
    %3409 = vrot.lane.b32.xlu0 %v3381, 32
    %v3410 = vpop.permute.xlu0 %3409
    %3411 = vrot.lane.b32.xlu0 %v3382, 32
    %v3412 = vpop.permute.xlu0 %3411
    %3413 = vrot.lane.b32.xlu0 %v3383, 32
    %v3414 = vpop.permute.xlu0 %3413
    %3415 = vrot.lane.b32.xlu0 %v3384, 32
    %v3416 = vpop.permute.xlu0 %3415
    %3433 = vst.msk [vmem:[#allocation3 + $0x8] sm:$0xff] %vm1923, %v3386
    %3434 = vst.msk [vmem:[#allocation3 + $0x20] sm:$0xff] %vm1923, %v3388
    %3435 = vst.msk [vmem:[#allocation3 + $0x38] sm:$0xff] %vm1923, %v3390
    %3436 = vst.msk [vmem:[#allocation3 + $0x50] sm:$0xff] %vm1923, %v3392
    %3437 = vst.msk [vmem:[#allocation3 + $0x68] sm:$0xff] %vm1923, %v3394
    %3438 = vst.msk [vmem:[#allocation3 + $0x80] sm:$0xff] %vm1923, %v3396
    %3439 = vst.msk [vmem:[#allocation3 + $0x98] sm:$0xff] %vm1923, %v3398
    %3440 = vst.msk [vmem:[#allocation3 + $0xb0] sm:$0xff] %vm1923, %v3400
    %3441 = vst.msk [vmem:[#allocation3 + $0xc8] sm:$0xff] %vm1923, %v3402
    %3442 = vst.msk [vmem:[#allocation3 + $0xe0] sm:$0xff] %vm1923, %v3404
    %3443 = vst.msk [vmem:[#allocation3 + $0xf8] sm:$0xff] %vm1923, %v3406
    %3444 = vst.msk [vmem:[#allocation3 + $0x110] sm:$0xff] %vm1923, %v3408
    %3445 = vst.msk [vmem:[#allocation3 + $0x128] sm:$0xff] %vm1923, %v3410
    %3446 = vst.msk [vmem:[#allocation3 + $0x140] sm:$0xff] %vm1923, %v3412
    %3447 = vst.msk [vmem:[#allocation3 + $0x158] sm:$0xff] %vm1923, %v3414
    %3448 = vst.msk [vmem:[#allocation3 + $0x170] sm:$0xff] %vm1923, %v3416
    %s3449 = scalar_lea.vmem [#allocation2], 16
    %v3450 = vld [vmem:[%s3449] sm:$0xf]
    %v3451 = vld [vmem:[%s3449 + $0x8] sm:$0xf]
    %v3452 = vld [vmem:[%s3449 + $0x10] sm:$0xf]
    %v3453 = vld [vmem:[%s3449 + $0x18] sm:$0xf]
    %v3454 = vld [vmem:[%s3449 + $0x20] sm:$0xf]
    %v3455 = vld [vmem:[%s3449 + $0x28] sm:$0xf]
    %v3456 = vld [vmem:[%s3449 + $0x30] sm:$0xf]
    %v3457 = vld [vmem:[%s3449 + $0x38] sm:$0xf]
    %v3458 = vld [vmem:[%s3449 + $0x50] sm:$0xf]
    %v3459 = vld [vmem:[%s3449 + $0x58] sm:$0xf]
    %v3460 = vld [vmem:[%s3449 + $0x60] sm:$0xf]
    %v3461 = vld [vmem:[%s3449 + $0x68] sm:$0xf]
    %v3462 = vld [vmem:[%s3449 + $0x70] sm:$0xf]
    %v3463 = vld [vmem:[%s3449 + $0x78] sm:$0xf]
    %v3464 = vld [vmem:[%s3449 + $0x80] sm:$0xf]
    %v3465 = vld [vmem:[%s3449 + $0x88] sm:$0xf]
    %v3466 = vld [vmem:[%s3449 + $0xa0] sm:$0xf]
    %v3467 = vld [vmem:[%s3449 + $0xa8] sm:$0xf]
    %v3468 = vld [vmem:[%s3449 + $0xb0] sm:$0xf]
    %v3469 = vld [vmem:[%s3449 + $0xb8] sm:$0xf]
    %v3470 = vld [vmem:[%s3449 + $0xc0] sm:$0xf]
    %v3471 = vld [vmem:[%s3449 + $0xc8] sm:$0xf]
    %v3472 = vld [vmem:[%s3449 + $0xd0] sm:$0xf]
    %v3473 = vld [vmem:[%s3449 + $0xd8] sm:$0xf]
    %v3474 = vld [vmem:[%s3449 + $0xf0] sm:$0xf]
    %v3475 = vld [vmem:[%s3449 + $0xf8] sm:$0xf]
    %v3476 = vld [vmem:[%s3449 + $0x100] sm:$0xf]
    %v3477 = vld [vmem:[%s3449 + $0x108] sm:$0xf]
    %v3478 = vld [vmem:[%s3449 + $0x110] sm:$0xf]
    %v3479 = vld [vmem:[%s3449 + $0x118] sm:$0xf]
    %v3480 = vld [vmem:[%s3449 + $0x120] sm:$0xf]
    %v3481 = vld [vmem:[%s3449 + $0x128] sm:$0xf]
    %v3514 = vunpack.c.l.b16 %v3450
    %v3515 = vunpack.c.l.b16 %v3451
    %v3516 = vunpack.c.l.b16 %v3452
    %v3517 = vunpack.c.l.b16 %v3453
    %v3518 = vunpack.c.l.b16 %v3454
    %v3519 = vunpack.c.l.b16 %v3455
    %v3520 = vunpack.c.l.b16 %v3456
    %v3521 = vunpack.c.l.b16 %v3457
    %v3522 = vunpack.c.l.b16 %v3458
    %v3523 = vunpack.c.l.b16 %v3459
    %v3524 = vunpack.c.l.b16 %v3460
    %v3525 = vunpack.c.l.b16 %v3461
    %v3526 = vunpack.c.l.b16 %v3462
    %v3527 = vunpack.c.l.b16 %v3463
    %v3528 = vunpack.c.l.b16 %v3464
    %v3529 = vunpack.c.l.b16 %v3465
    %v3530 = vunpack.c.l.b16 %v3466
    %v3531 = vunpack.c.l.b16 %v3467
    %v3532 = vunpack.c.l.b16 %v3468
    %v3533 = vunpack.c.l.b16 %v3469
    %v3534 = vunpack.c.l.b16 %v3470
    %v3535 = vunpack.c.l.b16 %v3471
    %v3536 = vunpack.c.l.b16 %v3472
    %v3537 = vunpack.c.l.b16 %v3473
    %v3538 = vunpack.c.l.b16 %v3474
    %v3539 = vunpack.c.l.b16 %v3475
    %v3540 = vunpack.c.l.b16 %v3476
    %v3541 = vunpack.c.l.b16 %v3477
    %v3542 = vunpack.c.l.b16 %v3478
    %v3543 = vunpack.c.l.b16 %v3479
    %v3544 = vunpack.c.l.b16 %v3480
    %v3545 = vunpack.c.l.b16 %v3481
    %v3546 = vpack.c.b16 %v3515, %v3514
    %v3547 = vpack.c.b16 %v3517, %v3516
    %v3548 = vpack.c.b16 %v3519, %v3518
    %v3549 = vpack.c.b16 %v3521, %v3520
    %v3550 = vpack.c.b16 %v3523, %v3522
    %v3551 = vpack.c.b16 %v3525, %v3524
    %v3552 = vpack.c.b16 %v3527, %v3526
    %v3553 = vpack.c.b16 %v3529, %v3528
    %v3554 = vpack.c.b16 %v3531, %v3530
    %v3555 = vpack.c.b16 %v3533, %v3532
    %v3556 = vpack.c.b16 %v3535, %v3534
    %v3557 = vpack.c.b16 %v3537, %v3536
    %v3558 = vpack.c.b16 %v3539, %v3538
    %v3559 = vpack.c.b16 %v3541, %v3540
    %v3560 = vpack.c.b16 %v3543, %v3542
    %v3561 = vpack.c.b16 %v3545, %v3544
    %3562 = vrot.lane.b32.xlu0 %v3546, 64
    %v3563 = vpop.permute.xlu0 %3562
    %3564 = vrot.lane.b32.xlu0 %v3547, 64
    %v3565 = vpop.permute.xlu0 %3564
    %3566 = vrot.lane.b32.xlu0 %v3548, 64
    %v3567 = vpop.permute.xlu0 %3566
    %3568 = vrot.lane.b32.xlu0 %v3549, 64
    %v3569 = vpop.permute.xlu0 %3568
    %3570 = vrot.lane.b32.xlu0 %v3550, 64
    %v3571 = vpop.permute.xlu0 %3570
    %3572 = vrot.lane.b32.xlu0 %v3551, 64
    %v3573 = vpop.permute.xlu0 %3572
    %3574 = vrot.lane.b32.xlu0 %v3552, 64
    %v3575 = vpop.permute.xlu0 %3574
    %3576 = vrot.lane.b32.xlu0 %v3553, 64
    %v3577 = vpop.permute.xlu0 %3576
    %3578 = vrot.lane.b32.xlu0 %v3554, 64
    %v3579 = vpop.permute.xlu0 %3578
    %3580 = vrot.lane.b32.xlu0 %v3555, 64
    %v3581 = vpop.permute.xlu0 %3580
    %3582 = vrot.lane.b32.xlu0 %v3556, 64
    %v3583 = vpop.permute.xlu0 %3582
    %3584 = vrot.lane.b32.xlu0 %v3557, 64
    %v3585 = vpop.permute.xlu0 %3584
    %3586 = vrot.lane.b32.xlu0 %v3558, 64
    %v3587 = vpop.permute.xlu0 %3586
    %3588 = vrot.lane.b32.xlu0 %v3559, 64
    %v3589 = vpop.permute.xlu0 %3588
    %3590 = vrot.lane.b32.xlu0 %v3560, 64
    %v3591 = vpop.permute.xlu0 %3590
    %3592 = vrot.lane.b32.xlu0 %v3561, 64
    %v3593 = vpop.permute.xlu0 %3592
    %3610 = vst.msk [vmem:[#allocation3 + $0x8] sm:$0xff] %vm2295, %v3563
    %3611 = vst.msk [vmem:[#allocation3 + $0x20] sm:$0xff] %vm2295, %v3565
    %3612 = vst.msk [vmem:[#allocation3 + $0x38] sm:$0xff] %vm2295, %v3567
    %3613 = vst.msk [vmem:[#allocation3 + $0x50] sm:$0xff] %vm2295, %v3569
    %3614 = vst.msk [vmem:[#allocation3 + $0x68] sm:$0xff] %vm2295, %v3571
    %3615 = vst.msk [vmem:[#allocation3 + $0x80] sm:$0xff] %vm2295, %v3573
    %3616 = vst.msk [vmem:[#allocation3 + $0x98] sm:$0xff] %vm2295, %v3575
    %3617 = vst.msk [vmem:[#allocation3 + $0xb0] sm:$0xff] %vm2295, %v3577
    %3618 = vst.msk [vmem:[#allocation3 + $0xc8] sm:$0xff] %vm2295, %v3579
    %3619 = vst.msk [vmem:[#allocation3 + $0xe0] sm:$0xff] %vm2295, %v3581
    %3620 = vst.msk [vmem:[#allocation3 + $0xf8] sm:$0xff] %vm2295, %v3583
    %3621 = vst.msk [vmem:[#allocation3 + $0x110] sm:$0xff] %vm2295, %v3585
    %3622 = vst.msk [vmem:[#allocation3 + $0x128] sm:$0xff] %vm2295, %v3587
    %3623 = vst.msk [vmem:[#allocation3 + $0x140] sm:$0xff] %vm2295, %v3589
    %3624 = vst.msk [vmem:[#allocation3 + $0x158] sm:$0xff] %vm2295, %v3591
    %3625 = vst.msk [vmem:[#allocation3 + $0x170] sm:$0xff] %vm2295, %v3593
    %v3626 = vld [vmem:[%s3449] sm:$0xf]
    %v3627 = vld [vmem:[%s3449 + $0x4] sm:$0x1]
    %v3628 = vld [vmem:[%s3449 + $0x8] sm:$0xf]
    %v3629 = vld [vmem:[%s3449 + $0xc] sm:$0x1]
    %v3630 = vld [vmem:[%s3449 + $0x10] sm:$0xf]
    %v3631 = vld [vmem:[%s3449 + $0x14] sm:$0x1]
    %v3632 = vld [vmem:[%s3449 + $0x18] sm:$0xf]
    %v3633 = vld [vmem:[%s3449 + $0x1c] sm:$0x1]
    %v3634 = vld [vmem:[%s3449 + $0x20] sm:$0xf]
    %v3635 = vld [vmem:[%s3449 + $0x24] sm:$0x1]
    %v3636 = vld [vmem:[%s3449 + $0x28] sm:$0xf]
    %v3637 = vld [vmem:[%s3449 + $0x2c] sm:$0x1]
    %v3638 = vld [vmem:[%s3449 + $0x30] sm:$0xf]
    %v3639 = vld [vmem:[%s3449 + $0x34] sm:$0x1]
    %v3640 = vld [vmem:[%s3449 + $0x38] sm:$0xf]
    %v3641 = vld [vmem:[%s3449 + $0x3c] sm:$0x1]
    %v3642 = vld [vmem:[%s3449 + $0x50] sm:$0xf]
    %v3643 = vld [vmem:[%s3449 + $0x54] sm:$0x1]
    %v3644 = vld [vmem:[%s3449 + $0x58] sm:$0xf]
    %v3645 = vld [vmem:[%s3449 + $0x5c] sm:$0x1]
    %v3646 = vld [vmem:[%s3449 + $0x60] sm:$0xf]
    %v3647 = vld [vmem:[%s3449 + $0x64] sm:$0x1]
    %v3648 = vld [vmem:[%s3449 + $0x68] sm:$0xf]
    %v3649 = vld [vmem:[%s3449 + $0x6c] sm:$0x1]
    %v3650 = vld [vmem:[%s3449 + $0x70] sm:$0xf]
    %v3651 = vld [vmem:[%s3449 + $0x74] sm:$0x1]
    %v3652 = vld [vmem:[%s3449 + $0x78] sm:$0xf]
    %v3653 = vld [vmem:[%s3449 + $0x7c] sm:$0x1]
    %v3654 = vld [vmem:[%s3449 + $0x80] sm:$0xf]
    %v3655 = vld [vmem:[%s3449 + $0x84] sm:$0x1]
    %v3656 = vld [vmem:[%s3449 + $0x88] sm:$0xf]
    %v3657 = vld [vmem:[%s3449 + $0x8c] sm:$0x1]
    %v3658 = vld [vmem:[%s3449 + $0xa0] sm:$0xf]
    %v3659 = vld [vmem:[%s3449 + $0xa4] sm:$0x1]
    %v3660 = vld [vmem:[%s3449 + $0xa8] sm:$0xf]
    %v3661 = vld [vmem:[%s3449 + $0xac] sm:$0x1]
    %v3662 = vld [vmem:[%s3449 + $0xb0] sm:$0xf]
    %v3663 = vld [vmem:[%s3449 + $0xb4] sm:$0x1]
    %v3664 = vld [vmem:[%s3449 + $0xb8] sm:$0xf]
    %v3665 = vld [vmem:[%s3449 + $0xbc] sm:$0x1]
    %v3666 = vld [vmem:[%s3449 + $0xc0] sm:$0xf]
    %v3667 = vld [vmem:[%s3449 + $0xc4] sm:$0x1]
    %v3668 = vld [vmem:[%s3449 + $0xc8] sm:$0xf]
    %v3669 = vld [vmem:[%s3449 + $0xcc] sm:$0x1]
    %v3670 = vld [vmem:[%s3449 + $0xd0] sm:$0xf]
    %v3671 = vld [vmem:[%s3449 + $0xd4] sm:$0x1]
    %v3672 = vld [vmem:[%s3449 + $0xd8] sm:$0xf]
    %v3673 = vld [vmem:[%s3449 + $0xdc] sm:$0x1]
    %v3674 = vld [vmem:[%s3449 + $0xf0] sm:$0xf]
    %v3675 = vld [vmem:[%s3449 + $0xf4] sm:$0x1]
    %v3676 = vld [vmem:[%s3449 + $0xf8] sm:$0xf]
    %v3677 = vld [vmem:[%s3449 + $0xfc] sm:$0x1]
    %v3678 = vld [vmem:[%s3449 + $0x100] sm:$0xf]
    %v3679 = vld [vmem:[%s3449 + $0x104] sm:$0x1]
    %v3680 = vld [vmem:[%s3449 + $0x108] sm:$0xf]
    %v3681 = vld [vmem:[%s3449 + $0x10c] sm:$0x1]
    %v3682 = vld [vmem:[%s3449 + $0x110] sm:$0xf]
    %v3683 = vld [vmem:[%s3449 + $0x114] sm:$0x1]
    %v3684 = vld [vmem:[%s3449 + $0x118] sm:$0xf]
    %v3685 = vld [vmem:[%s3449 + $0x11c] sm:$0x1]
    %v3686 = vld [vmem:[%s3449 + $0x120] sm:$0xf]
    %v3687 = vld [vmem:[%s3449 + $0x124] sm:$0x1]
    %v3688 = vld [vmem:[%s3449 + $0x128] sm:$0xf]
    %v3689 = vld [vmem:[%s3449 + $0x12c] sm:$0x1]
    %v3691 = vshrl.u32 %v3626, 16
    %v3693 = vrot.slane %v3691, 4
    %v3694 = vshll.u32 %v3626, 16
    %v3696 = vrot.slane %v3694, 5
    %v3697 = vor.u32 %v3693, %v3696
    %v3698 = vrot.slane %v3697, 4
    %v3700 = vshll.u32 %v3627, 16
    %v3702 = vrot.slane %v3700, 5
    %v3703 = vsel %vm1378, %v3698, %v3702
    %v3705 = vshrl.u32 %v3628, 16
    %v3707 = vrot.slane %v3705, 4
    %v3708 = vshll.u32 %v3628, 16
    %v3710 = vrot.slane %v3708, 5
    %v3711 = vor.u32 %v3707, %v3710
    %v3712 = vrot.slane %v3711, 4
    %v3714 = vshll.u32 %v3629, 16
    %v3716 = vrot.slane %v3714, 5
    %v3717 = vsel %vm1378, %v3712, %v3716
    %v3719 = vshrl.u32 %v3630, 16
    %v3721 = vrot.slane %v3719, 4
    %v3722 = vshll.u32 %v3630, 16
    %v3724 = vrot.slane %v3722, 5
    %v3725 = vor.u32 %v3721, %v3724
    %v3726 = vrot.slane %v3725, 4
    %v3728 = vshll.u32 %v3631, 16
    %v3730 = vrot.slane %v3728, 5
    %v3731 = vsel %vm1378, %v3726, %v3730
    %v3733 = vshrl.u32 %v3632, 16
    %v3735 = vrot.slane %v3733, 4
    %v3736 = vshll.u32 %v3632, 16
    %v3738 = vrot.slane %v3736, 5
    %v3739 = vor.u32 %v3735, %v3738
    %v3740 = vrot.slane %v3739, 4
    %v3742 = vshll.u32 %v3633, 16
    %v3744 = vrot.slane %v3742, 5
    %v3745 = vsel %vm1378, %v3740, %v3744
    %v3747 = vshrl.u32 %v3634, 16
    %v3749 = vrot.slane %v3747, 4
    %v3750 = vshll.u32 %v3634, 16
    %v3752 = vrot.slane %v3750, 5
    %v3753 = vor.u32 %v3749, %v3752
    %v3754 = vrot.slane %v3753, 4
    %v3756 = vshll.u32 %v3635, 16
    %v3758 = vrot.slane %v3756, 5
    %v3759 = vsel %vm1378, %v3754, %v3758
    %v3761 = vshrl.u32 %v3636, 16
    %v3763 = vrot.slane %v3761, 4
    %v3764 = vshll.u32 %v3636, 16
    %v3766 = vrot.slane %v3764, 5
    %v3767 = vor.u32 %v3763, %v3766
    %v3768 = vrot.slane %v3767, 4
    %v3770 = vshll.u32 %v3637, 16
    %v3772 = vrot.slane %v3770, 5
    %v3773 = vsel %vm1378, %v3768, %v3772
    %v3775 = vshrl.u32 %v3638, 16
    %v3777 = vrot.slane %v3775, 4
    %v3778 = vshll.u32 %v3638, 16
    %v3780 = vrot.slane %v3778, 5
    %v3781 = vor.u32 %v3777, %v3780
    %v3782 = vrot.slane %v3781, 4
    %v3784 = vshll.u32 %v3639, 16
    %v3786 = vrot.slane %v3784, 5
    %v3787 = vsel %vm1378, %v3782, %v3786
    %v3789 = vshrl.u32 %v3640, 16
    %v3791 = vrot.slane %v3789, 4
    %v3792 = vshll.u32 %v3640, 16
    %v3794 = vrot.slane %v3792, 5
    %v3795 = vor.u32 %v3791, %v3794
    %v3796 = vrot.slane %v3795, 4
    %v3798 = vshll.u32 %v3641, 16
    %v3800 = vrot.slane %v3798, 5
    %v3801 = vsel %vm1378, %v3796, %v3800
    %v3803 = vshrl.u32 %v3642, 16
    %v3805 = vrot.slane %v3803, 4
    %v3806 = vshll.u32 %v3642, 16
    %v3808 = vrot.slane %v3806, 5
    %v3809 = vor.u32 %v3805, %v3808
    %v3810 = vrot.slane %v3809, 4
    %v3812 = vshll.u32 %v3643, 16
    %v3814 = vrot.slane %v3812, 5
    %v3815 = vsel %vm1378, %v3810, %v3814
    %v3817 = vshrl.u32 %v3644, 16
    %v3819 = vrot.slane %v3817, 4
    %v3820 = vshll.u32 %v3644, 16
    %v3822 = vrot.slane %v3820, 5
    %v3823 = vor.u32 %v3819, %v3822
    %v3824 = vrot.slane %v3823, 4
    %v3826 = vshll.u32 %v3645, 16
    %v3828 = vrot.slane %v3826, 5
    %v3829 = vsel %vm1378, %v3824, %v3828
    %v3831 = vshrl.u32 %v3646, 16
    %v3833 = vrot.slane %v3831, 4
    %v3834 = vshll.u32 %v3646, 16
    %v3836 = vrot.slane %v3834, 5
    %v3837 = vor.u32 %v3833, %v3836
    %v3838 = vrot.slane %v3837, 4
    %v3840 = vshll.u32 %v3647, 16
    %v3842 = vrot.slane %v3840, 5
    %v3843 = vsel %vm1378, %v3838, %v3842
    %v3845 = vshrl.u32 %v3648, 16
    %v3847 = vrot.slane %v3845, 4
    %v3848 = vshll.u32 %v3648, 16
    %v3850 = vrot.slane %v3848, 5
    %v3851 = vor.u32 %v3847, %v3850
    %v3852 = vrot.slane %v3851, 4
    %v3854 = vshll.u32 %v3649, 16
    %v3856 = vrot.slane %v3854, 5
    %v3857 = vsel %vm1378, %v3852, %v3856
    %v3859 = vshrl.u32 %v3650, 16
    %v3861 = vrot.slane %v3859, 4
    %v3862 = vshll.u32 %v3650, 16
    %v3864 = vrot.slane %v3862, 5
    %v3865 = vor.u32 %v3861, %v3864
    %v3866 = vrot.slane %v3865, 4
    %v3868 = vshll.u32 %v3651, 16
    %v3870 = vrot.slane %v3868, 5
    %v3871 = vsel %vm1378, %v3866, %v3870
    %v3873 = vshrl.u32 %v3652, 16
    %v3875 = vrot.slane %v3873, 4
    %v3876 = vshll.u32 %v3652, 16
    %v3878 = vrot.slane %v3876, 5
    %v3879 = vor.u32 %v3875, %v3878
    %v3880 = vrot.slane %v3879, 4
    %v3882 = vshll.u32 %v3653, 16
    %v3884 = vrot.slane %v3882, 5
    %v3885 = vsel %vm1378, %v3880, %v3884
    %v3887 = vshrl.u32 %v3654, 16
    %v3889 = vrot.slane %v3887, 4
    %v3890 = vshll.u32 %v3654, 16
    %v3892 = vrot.slane %v3890, 5
    %v3893 = vor.u32 %v3889, %v3892
    %v3894 = vrot.slane %v3893, 4
    %v3896 = vshll.u32 %v3655, 16
    %v3898 = vrot.slane %v3896, 5
    %v3899 = vsel %vm1378, %v3894, %v3898
    %v3901 = vshrl.u32 %v3656, 16
    %v3903 = vrot.slane %v3901, 4
    %v3904 = vshll.u32 %v3656, 16
    %v3906 = vrot.slane %v3904, 5
    %v3907 = vor.u32 %v3903, %v3906
    %v3908 = vrot.slane %v3907, 4
    %v3910 = vshll.u32 %v3657, 16
    %v3912 = vrot.slane %v3910, 5
    %v3913 = vsel %vm1378, %v3908, %v3912
    %v3915 = vshrl.u32 %v3658, 16
    %v3917 = vrot.slane %v3915, 4
    %v3918 = vshll.u32 %v3658, 16
    %v3920 = vrot.slane %v3918, 5
    %v3921 = vor.u32 %v3917, %v3920
    %v3922 = vrot.slane %v3921, 4
    %v3924 = vshll.u32 %v3659, 16
    %v3926 = vrot.slane %v3924, 5
    %v3927 = vsel %vm1378, %v3922, %v3926
    %v3929 = vshrl.u32 %v3660, 16
    %v3931 = vrot.slane %v3929, 4
    %v3932 = vshll.u32 %v3660, 16
    %v3934 = vrot.slane %v3932, 5
    %v3935 = vor.u32 %v3931, %v3934
    %v3936 = vrot.slane %v3935, 4
    %v3938 = vshll.u32 %v3661, 16
    %v3940 = vrot.slane %v3938, 5
    %v3941 = vsel %vm1378, %v3936, %v3940
    %v3943 = vshrl.u32 %v3662, 16
    %v3945 = vrot.slane %v3943, 4
    %v3946 = vshll.u32 %v3662, 16
    %v3948 = vrot.slane %v3946, 5
    %v3949 = vor.u32 %v3945, %v3948
    %v3950 = vrot.slane %v3949, 4
    %v3952 = vshll.u32 %v3663, 16
    %v3954 = vrot.slane %v3952, 5
    %v3955 = vsel %vm1378, %v3950, %v3954
    %v3957 = vshrl.u32 %v3664, 16
    %v3959 = vrot.slane %v3957, 4
    %v3960 = vshll.u32 %v3664, 16
    %v3962 = vrot.slane %v3960, 5
    %v3963 = vor.u32 %v3959, %v3962
    %v3964 = vrot.slane %v3963, 4
    %v3966 = vshll.u32 %v3665, 16
    %v3968 = vrot.slane %v3966, 5
    %v3969 = vsel %vm1378, %v3964, %v3968
    %v3971 = vshrl.u32 %v3666, 16
    %v3973 = vrot.slane %v3971, 4
    %v3974 = vshll.u32 %v3666, 16
    %v3976 = vrot.slane %v3974, 5
    %v3977 = vor.u32 %v3973, %v3976
    %v3978 = vrot.slane %v3977, 4
    %v3980 = vshll.u32 %v3667, 16
    %v3982 = vrot.slane %v3980, 5
    %v3983 = vsel %vm1378, %v3978, %v3982
    %v3985 = vshrl.u32 %v3668, 16
    %v3987 = vrot.slane %v3985, 4
    %v3988 = vshll.u32 %v3668, 16
    %v3990 = vrot.slane %v3988, 5
    %v3991 = vor.u32 %v3987, %v3990
    %v3992 = vrot.slane %v3991, 4
    %v3994 = vshll.u32 %v3669, 16
    %v3996 = vrot.slane %v3994, 5
    %v3997 = vsel %vm1378, %v3992, %v3996
    %v3999 = vshrl.u32 %v3670, 16
    %v4001 = vrot.slane %v3999, 4
    %v4002 = vshll.u32 %v3670, 16
    %v4004 = vrot.slane %v4002, 5
    %v4005 = vor.u32 %v4001, %v4004
    %v4006 = vrot.slane %v4005, 4
    %v4008 = vshll.u32 %v3671, 16
    %v4010 = vrot.slane %v4008, 5
    %v4011 = vsel %vm1378, %v4006, %v4010
    %v4013 = vshrl.u32 %v3672, 16
    %v4015 = vrot.slane %v4013, 4
    %v4016 = vshll.u32 %v3672, 16
    %v4018 = vrot.slane %v4016, 5
    %v4019 = vor.u32 %v4015, %v4018
    %v4020 = vrot.slane %v4019, 4
    %v4022 = vshll.u32 %v3673, 16
    %v4024 = vrot.slane %v4022, 5
    %v4025 = vsel %vm1378, %v4020, %v4024
    %v4027 = vshrl.u32 %v3674, 16
    %v4029 = vrot.slane %v4027, 4
    %v4030 = vshll.u32 %v3674, 16
    %v4032 = vrot.slane %v4030, 5
    %v4033 = vor.u32 %v4029, %v4032
    %v4034 = vrot.slane %v4033, 4
    %v4036 = vshll.u32 %v3675, 16
    %v4038 = vrot.slane %v4036, 5
    %v4039 = vsel %vm1378, %v4034, %v4038
    %v4041 = vshrl.u32 %v3676, 16
    %v4043 = vrot.slane %v4041, 4
    %v4044 = vshll.u32 %v3676, 16
    %v4046 = vrot.slane %v4044, 5
    %v4047 = vor.u32 %v4043, %v4046
    %v4048 = vrot.slane %v4047, 4
    %v4050 = vshll.u32 %v3677, 16
    %v4052 = vrot.slane %v4050, 5
    %v4053 = vsel %vm1378, %v4048, %v4052
    %v4055 = vshrl.u32 %v3678, 16
    %v4057 = vrot.slane %v4055, 4
    %v4058 = vshll.u32 %v3678, 16
    %v4060 = vrot.slane %v4058, 5
    %v4061 = vor.u32 %v4057, %v4060
    %v4062 = vrot.slane %v4061, 4
    %v4064 = vshll.u32 %v3679, 16
    %v4066 = vrot.slane %v4064, 5
    %v4067 = vsel %vm1378, %v4062, %v4066
    %v4069 = vshrl.u32 %v3680, 16
    %v4071 = vrot.slane %v4069, 4
    %v4072 = vshll.u32 %v3680, 16
    %v4074 = vrot.slane %v4072, 5
    %v4075 = vor.u32 %v4071, %v4074
    %v4076 = vrot.slane %v4075, 4
    %v4078 = vshll.u32 %v3681, 16
    %v4080 = vrot.slane %v4078, 5
    %v4081 = vsel %vm1378, %v4076, %v4080
    %v4083 = vshrl.u32 %v3682, 16
    %v4085 = vrot.slane %v4083, 4
    %v4086 = vshll.u32 %v3682, 16
    %v4088 = vrot.slane %v4086, 5
    %v4089 = vor.u32 %v4085, %v4088
    %v4090 = vrot.slane %v4089, 4
    %v4092 = vshll.u32 %v3683, 16
    %v4094 = vrot.slane %v4092, 5
    %v4095 = vsel %vm1378, %v4090, %v4094
    %v4097 = vshrl.u32 %v3684, 16
    %v4099 = vrot.slane %v4097, 4
    %v4100 = vshll.u32 %v3684, 16
    %v4102 = vrot.slane %v4100, 5
    %v4103 = vor.u32 %v4099, %v4102
    %v4104 = vrot.slane %v4103, 4
    %v4106 = vshll.u32 %v3685, 16
    %v4108 = vrot.slane %v4106, 5
    %v4109 = vsel %vm1378, %v4104, %v4108
    %v4111 = vshrl.u32 %v3686, 16
    %v4113 = vrot.slane %v4111, 4
    %v4114 = vshll.u32 %v3686, 16
    %v4116 = vrot.slane %v4114, 5
    %v4117 = vor.u32 %v4113, %v4116
    %v4118 = vrot.slane %v4117, 4
    %v4120 = vshll.u32 %v3687, 16
    %v4122 = vrot.slane %v4120, 5
    %v4123 = vsel %vm1378, %v4118, %v4122
    %v4125 = vshrl.u32 %v3688, 16
    %v4127 = vrot.slane %v4125, 4
    %v4128 = vshll.u32 %v3688, 16
    %v4130 = vrot.slane %v4128, 5
    %v4131 = vor.u32 %v4127, %v4130
    %v4132 = vrot.slane %v4131, 4
    %v4134 = vshll.u32 %v3689, 16
    %v4136 = vrot.slane %v4134, 5
    %v4137 = vsel %vm1378, %v4132, %v4136
    %v4138 = vunpack.c.l.b16 %v3703
    %v4139 = vunpack.c.l.b16 %v3717
    %v4140 = vunpack.c.l.b16 %v3731
    %v4141 = vunpack.c.l.b16 %v3745
    %v4142 = vunpack.c.l.b16 %v3759
    %v4143 = vunpack.c.l.b16 %v3773
    %v4144 = vunpack.c.l.b16 %v3787
    %v4145 = vunpack.c.l.b16 %v3801
    %v4146 = vunpack.c.l.b16 %v3815
    %v4147 = vunpack.c.l.b16 %v3829
    %v4148 = vunpack.c.l.b16 %v3843
    %v4149 = vunpack.c.l.b16 %v3857
    %v4150 = vunpack.c.l.b16 %v3871
    %v4151 = vunpack.c.l.b16 %v3885
    %v4152 = vunpack.c.l.b16 %v3899
    %v4153 = vunpack.c.l.b16 %v3913
    %v4154 = vunpack.c.l.b16 %v3927
    %v4155 = vunpack.c.l.b16 %v3941
    %v4156 = vunpack.c.l.b16 %v3955
    %v4157 = vunpack.c.l.b16 %v3969
    %v4158 = vunpack.c.l.b16 %v3983
    %v4159 = vunpack.c.l.b16 %v3997
    %v4160 = vunpack.c.l.b16 %v4011
    %v4161 = vunpack.c.l.b16 %v4025
    %v4162 = vunpack.c.l.b16 %v4039
    %v4163 = vunpack.c.l.b16 %v4053
    %v4164 = vunpack.c.l.b16 %v4067
    %v4165 = vunpack.c.l.b16 %v4081
    %v4166 = vunpack.c.l.b16 %v4095
    %v4167 = vunpack.c.l.b16 %v4109
    %v4168 = vunpack.c.l.b16 %v4123
    %v4169 = vunpack.c.l.b16 %v4137
    %v4170 = vpack.c.b16 %v4139, %v4138
    %v4171 = vpack.c.b16 %v4141, %v4140
    %v4172 = vpack.c.b16 %v4143, %v4142
    %v4173 = vpack.c.b16 %v4145, %v4144
    %v4174 = vpack.c.b16 %v4147, %v4146
    %v4175 = vpack.c.b16 %v4149, %v4148
    %v4176 = vpack.c.b16 %v4151, %v4150
    %v4177 = vpack.c.b16 %v4153, %v4152
    %v4178 = vpack.c.b16 %v4155, %v4154
    %v4179 = vpack.c.b16 %v4157, %v4156
    %v4180 = vpack.c.b16 %v4159, %v4158
    %v4181 = vpack.c.b16 %v4161, %v4160
    %v4182 = vpack.c.b16 %v4163, %v4162
    %v4183 = vpack.c.b16 %v4165, %v4164
    %v4184 = vpack.c.b16 %v4167, %v4166
    %v4185 = vpack.c.b16 %v4169, %v4168
    %4186 = vrot.lane.b32.xlu0 %v4170, 96
    %v4187 = vpop.permute.xlu0 %4186
    %4188 = vrot.lane.b32.xlu0 %v4171, 96
    %v4189 = vpop.permute.xlu0 %4188
    %4190 = vrot.lane.b32.xlu0 %v4172, 96
    %v4191 = vpop.permute.xlu0 %4190
    %4192 = vrot.lane.b32.xlu0 %v4173, 96
    %v4193 = vpop.permute.xlu0 %4192
    %4194 = vrot.lane.b32.xlu0 %v4174, 96
    %v4195 = vpop.permute.xlu0 %4194
    %4196 = vrot.lane.b32.xlu0 %v4175, 96
    %v4197 = vpop.permute.xlu0 %4196
    %4198 = vrot.lane.b32.xlu0 %v4176, 96
    %v4199 = vpop.permute.xlu0 %4198
    %4200 = vrot.lane.b32.xlu0 %v4177, 96
    %v4201 = vpop.permute.xlu0 %4200
    %4202 = vrot.lane.b32.xlu0 %v4178, 96
    %v4203 = vpop.permute.xlu0 %4202
    %4204 = vrot.lane.b32.xlu0 %v4179, 96
    %v4205 = vpop.permute.xlu0 %4204
    %4206 = vrot.lane.b32.xlu0 %v4180, 96
    %v4207 = vpop.permute.xlu0 %4206
    %4208 = vrot.lane.b32.xlu0 %v4181, 96
    %v4209 = vpop.permute.xlu0 %4208
    %4210 = vrot.lane.b32.xlu0 %v4182, 96
    %v4211 = vpop.permute.xlu0 %4210
    %4212 = vrot.lane.b32.xlu0 %v4183, 96
    %v4213 = vpop.permute.xlu0 %4212
    %4214 = vrot.lane.b32.xlu0 %v4184, 96
    %v4215 = vpop.permute.xlu0 %4214
    %4216 = vrot.lane.b32.xlu0 %v4185, 96
    %v4217 = vpop.permute.xlu0 %4216
    %4234 = vst.msk [vmem:[#allocation3 + $0x8] sm:$0xff] %vm2472, %v4187
    %4235 = vst.msk [vmem:[#allocation3 + $0x20] sm:$0xff] %vm2472, %v4189
    %4236 = vst.msk [vmem:[#allocation3 + $0x38] sm:$0xff] %vm2472, %v4191
    %4237 = vst.msk [vmem:[#allocation3 + $0x50] sm:$0xff] %vm2472, %v4193
    %4238 = vst.msk [vmem:[#allocation3 + $0x68] sm:$0xff] %vm2472, %v4195
    %4239 = vst.msk [vmem:[#allocation3 + $0x80] sm:$0xff] %vm2472, %v4197
    %4240 = vst.msk [vmem:[#allocation3 + $0x98] sm:$0xff] %vm2472, %v4199
    %4241 = vst.msk [vmem:[#allocation3 + $0xb0] sm:$0xff] %vm2472, %v4201
    %4242 = vst.msk [vmem:[#allocation3 + $0xc8] sm:$0xff] %vm2472, %v4203
    %4243 = vst.msk [vmem:[#allocation3 + $0xe0] sm:$0xff] %vm2472, %v4205
    %4244 = vst.msk [vmem:[#allocation3 + $0xf8] sm:$0xff] %vm2472, %v4207
    %4245 = vst.msk [vmem:[#allocation3 + $0x110] sm:$0xff] %vm2472, %v4209
    %4246 = vst.msk [vmem:[#allocation3 + $0x128] sm:$0xff] %vm2472, %v4211
    %4247 = vst.msk [vmem:[#allocation3 + $0x140] sm:$0xff] %vm2472, %v4213
    %4248 = vst.msk [vmem:[#allocation3 + $0x158] sm:$0xff] %vm2472, %v4215
    %4249 = vst.msk [vmem:[#allocation3 + $0x170] sm:$0xff] %vm2472, %v4217
    %v4250 = vld [vmem:[%s3449] sm:$0xe]
    %v4251 = vld [vmem:[%s3449 + $0x4] sm:$0x1]
    %v4252 = vld [vmem:[%s3449 + $0x8] sm:$0xe]
    %v4253 = vld [vmem:[%s3449 + $0xc] sm:$0x1]
    %v4254 = vld [vmem:[%s3449 + $0x10] sm:$0xe]
    %v4255 = vld [vmem:[%s3449 + $0x14] sm:$0x1]
    %v4256 = vld [vmem:[%s3449 + $0x18] sm:$0xe]
    %v4257 = vld [vmem:[%s3449 + $0x1c] sm:$0x1]
    %v4258 = vld [vmem:[%s3449 + $0x20] sm:$0xe]
    %v4259 = vld [vmem:[%s3449 + $0x24] sm:$0x1]
    %v4260 = vld [vmem:[%s3449 + $0x28] sm:$0xe]
    %v4261 = vld [vmem:[%s3449 + $0x2c] sm:$0x1]
    %v4262 = vld [vmem:[%s3449 + $0x30] sm:$0xe]
    %v4263 = vld [vmem:[%s3449 + $0x34] sm:$0x1]
    %v4264 = vld [vmem:[%s3449 + $0x38] sm:$0xe]
    %v4265 = vld [vmem:[%s3449 + $0x3c] sm:$0x1]
    %v4266 = vld [vmem:[%s3449 + $0x50] sm:$0xe]
    %v4267 = vld [vmem:[%s3449 + $0x54] sm:$0x1]
    %v4268 = vld [vmem:[%s3449 + $0x58] sm:$0xe]
    %v4269 = vld [vmem:[%s3449 + $0x5c] sm:$0x1]
    %v4270 = vld [vmem:[%s3449 + $0x60] sm:$0xe]
    %v4271 = vld [vmem:[%s3449 + $0x64] sm:$0x1]
    %v4272 = vld [vmem:[%s3449 + $0x68] sm:$0xe]
    %v4273 = vld [vmem:[%s3449 + $0x6c] sm:$0x1]
    %v4274 = vld [vmem:[%s3449 + $0x70] sm:$0xe]
    %v4275 = vld [vmem:[%s3449 + $0x74] sm:$0x1]
    %v4276 = vld [vmem:[%s3449 + $0x78] sm:$0xe]
    %v4277 = vld [vmem:[%s3449 + $0x7c] sm:$0x1]
    %v4278 = vld [vmem:[%s3449 + $0x80] sm:$0xe]
    %v4279 = vld [vmem:[%s3449 + $0x84] sm:$0x1]
    %v4280 = vld [vmem:[%s3449 + $0x88] sm:$0xe]
    %v4281 = vld [vmem:[%s3449 + $0x8c] sm:$0x1]
    %v4282 = vld [vmem:[%s3449 + $0xa0] sm:$0xe]
    %v4283 = vld [vmem:[%s3449 + $0xa4] sm:$0x1]
    %v4284 = vld [vmem:[%s3449 + $0xa8] sm:$0xe]
    %v4285 = vld [vmem:[%s3449 + $0xac] sm:$0x1]
    %v4286 = vld [vmem:[%s3449 + $0xb0] sm:$0xe]
    %v4287 = vld [vmem:[%s3449 + $0xb4] sm:$0x1]
    %v4288 = vld [vmem:[%s3449 + $0xb8] sm:$0xe]
    %v4289 = vld [vmem:[%s3449 + $0xbc] sm:$0x1]
    %v4290 = vld [vmem:[%s3449 + $0xc0] sm:$0xe]
    %v4291 = vld [vmem:[%s3449 + $0xc4] sm:$0x1]
    %v4292 = vld [vmem:[%s3449 + $0xc8] sm:$0xe]
    %v4293 = vld [vmem:[%s3449 + $0xcc] sm:$0x1]
    %v4294 = vld [vmem:[%s3449 + $0xd0] sm:$0xe]
    %v4295 = vld [vmem:[%s3449 + $0xd4] sm:$0x1]
    %v4296 = vld [vmem:[%s3449 + $0xd8] sm:$0xe]
    %v4297 = vld [vmem:[%s3449 + $0xdc] sm:$0x1]
    %v4298 = vld [vmem:[%s3449 + $0xf0] sm:$0xe]
    %v4299 = vld [vmem:[%s3449 + $0xf4] sm:$0x1]
    %v4300 = vld [vmem:[%s3449 + $0xf8] sm:$0xe]
    %v4301 = vld [vmem:[%s3449 + $0xfc] sm:$0x1]
    %v4302 = vld [vmem:[%s3449 + $0x100] sm:$0xe]
    %v4303 = vld [vmem:[%s3449 + $0x104] sm:$0x1]
    %v4304 = vld [vmem:[%s3449 + $0x108] sm:$0xe]
    %v4305 = vld [vmem:[%s3449 + $0x10c] sm:$0x1]
    %v4306 = vld [vmem:[%s3449 + $0x110] sm:$0xe]
    %v4307 = vld [vmem:[%s3449 + $0x114] sm:$0x1]
    %v4308 = vld [vmem:[%s3449 + $0x118] sm:$0xe]
    %v4309 = vld [vmem:[%s3449 + $0x11c] sm:$0x1]
    %v4310 = vld [vmem:[%s3449 + $0x120] sm:$0xe]
    %v4311 = vld [vmem:[%s3449 + $0x124] sm:$0x1]
    %v4312 = vld [vmem:[%s3449 + $0x128] sm:$0xe]
    %v4313 = vld [vmem:[%s3449 + $0x12c] sm:$0x1]
    %v4378 = vrot.slane %v4250, 5
    %v4379 = vrot.slane %v4378, 4
    %v4380 = vrot.slane %v4251, 5
    %v4381 = vsel %vm2070, %v4379, %v4380
    %v4382 = vrot.slane %v4252, 5
    %v4383 = vrot.slane %v4382, 4
    %v4384 = vrot.slane %v4253, 5
    %v4385 = vsel %vm2070, %v4383, %v4384
    %v4386 = vrot.slane %v4254, 5
    %v4387 = vrot.slane %v4386, 4
    %v4388 = vrot.slane %v4255, 5
    %v4389 = vsel %vm2070, %v4387, %v4388
    %v4390 = vrot.slane %v4256, 5
    %v4391 = vrot.slane %v4390, 4
    %v4392 = vrot.slane %v4257, 5
    %v4393 = vsel %vm2070, %v4391, %v4392
    %v4394 = vrot.slane %v4258, 5
    %v4395 = vrot.slane %v4394, 4
    %v4396 = vrot.slane %v4259, 5
    %v4397 = vsel %vm2070, %v4395, %v4396
    %v4398 = vrot.slane %v4260, 5
    %v4399 = vrot.slane %v4398, 4
    %v4400 = vrot.slane %v4261, 5
    %v4401 = vsel %vm2070, %v4399, %v4400
    %v4402 = vrot.slane %v4262, 5
    %v4403 = vrot.slane %v4402, 4
    %v4404 = vrot.slane %v4263, 5
    %v4405 = vsel %vm2070, %v4403, %v4404
    %v4406 = vrot.slane %v4264, 5
    %v4407 = vrot.slane %v4406, 4
    %v4408 = vrot.slane %v4265, 5
    %v4409 = vsel %vm2070, %v4407, %v4408
    %v4410 = vrot.slane %v4266, 5
    %v4411 = vrot.slane %v4410, 4
    %v4412 = vrot.slane %v4267, 5
    %v4413 = vsel %vm2070, %v4411, %v4412
    %v4414 = vrot.slane %v4268, 5
    %v4415 = vrot.slane %v4414, 4
    %v4416 = vrot.slane %v4269, 5
    %v4417 = vsel %vm2070, %v4415, %v4416
    %v4418 = vrot.slane %v4270, 5
    %v4419 = vrot.slane %v4418, 4
    %v4420 = vrot.slane %v4271, 5
    %v4421 = vsel %vm2070, %v4419, %v4420
    %v4422 = vrot.slane %v4272, 5
    %v4423 = vrot.slane %v4422, 4
    %v4424 = vrot.slane %v4273, 5
    %v4425 = vsel %vm2070, %v4423, %v4424
    %v4426 = vrot.slane %v4274, 5
    %v4427 = vrot.slane %v4426, 4
    %v4428 = vrot.slane %v4275, 5
    %v4429 = vsel %vm2070, %v4427, %v4428
    %v4430 = vrot.slane %v4276, 5
    %v4431 = vrot.slane %v4430, 4
    %v4432 = vrot.slane %v4277, 5
    %v4433 = vsel %vm2070, %v4431, %v4432
    %v4434 = vrot.slane %v4278, 5
    %v4435 = vrot.slane %v4434, 4
    %v4436 = vrot.slane %v4279, 5
    %v4437 = vsel %vm2070, %v4435, %v4436
    %v4438 = vrot.slane %v4280, 5
    %v4439 = vrot.slane %v4438, 4
    %v4440 = vrot.slane %v4281, 5
    %v4441 = vsel %vm2070, %v4439, %v4440
    %v4442 = vrot.slane %v4282, 5
    %v4443 = vrot.slane %v4442, 4
    %v4444 = vrot.slane %v4283, 5
    %v4445 = vsel %vm2070, %v4443, %v4444
    %v4446 = vrot.slane %v4284, 5
    %v4447 = vrot.slane %v4446, 4
    %v4448 = vrot.slane %v4285, 5
    %v4449 = vsel %vm2070, %v4447, %v4448
    %v4450 = vrot.slane %v4286, 5
    %v4451 = vrot.slane %v4450, 4
    %v4452 = vrot.slane %v4287, 5
    %v4453 = vsel %vm2070, %v4451, %v4452
    %v4454 = vrot.slane %v4288, 5
    %v4455 = vrot.slane %v4454, 4
    %v4456 = vrot.slane %v4289, 5
    %v4457 = vsel %vm2070, %v4455, %v4456
    %v4458 = vrot.slane %v4290, 5
    %v4459 = vrot.slane %v4458, 4
    %v4460 = vrot.slane %v4291, 5
    %v4461 = vsel %vm2070, %v4459, %v4460
    %v4462 = vrot.slane %v4292, 5
    %v4463 = vrot.slane %v4462, 4
    %v4464 = vrot.slane %v4293, 5
    %v4465 = vsel %vm2070, %v4463, %v4464
    %v4466 = vrot.slane %v4294, 5
    %v4467 = vrot.slane %v4466, 4
    %v4468 = vrot.slane %v4295, 5
    %v4469 = vsel %vm2070, %v4467, %v4468
    %v4470 = vrot.slane %v4296, 5
    %v4471 = vrot.slane %v4470, 4
    %v4472 = vrot.slane %v4297, 5
    %v4473 = vsel %vm2070, %v4471, %v4472
    %v4474 = vrot.slane %v4298, 5
    %v4475 = vrot.slane %v4474, 4
    %v4476 = vrot.slane %v4299, 5
    %v4477 = vsel %vm2070, %v4475, %v4476
    %v4478 = vrot.slane %v4300, 5
    %v4479 = vrot.slane %v4478, 4
    %v4480 = vrot.slane %v4301, 5
    %v4481 = vsel %vm2070, %v4479, %v4480
    %v4482 = vrot.slane %v4302, 5
    %v4483 = vrot.slane %v4482, 4
    %v4484 = vrot.slane %v4303, 5
    %v4485 = vsel %vm2070, %v4483, %v4484
    %v4486 = vrot.slane %v4304, 5
    %v4487 = vrot.slane %v4486, 4
    %v4488 = vrot.slane %v4305, 5
    %v4489 = vsel %vm2070, %v4487, %v4488
    %v4490 = vrot.slane %v4306, 5
    %v4491 = vrot.slane %v4490, 4
    %v4492 = vrot.slane %v4307, 5
    %v4493 = vsel %vm2070, %v4491, %v4492
    %v4494 = vrot.slane %v4308, 5
    %v4495 = vrot.slane %v4494, 4
    %v4496 = vrot.slane %v4309, 5
    %v4497 = vsel %vm2070, %v4495, %v4496
    %v4498 = vrot.slane %v4310, 5
    %v4499 = vrot.slane %v4498, 4
    %v4500 = vrot.slane %v4311, 5
    %v4501 = vsel %vm2070, %v4499, %v4500
    %v4502 = vrot.slane %v4312, 5
    %v4503 = vrot.slane %v4502, 4
    %v4504 = vrot.slane %v4313, 5
    %v4505 = vsel %vm2070, %v4503, %v4504
    %v4506 = vunpack.c.l.b16 %v4381
    %v4507 = vunpack.c.l.b16 %v4385
    %v4508 = vunpack.c.l.b16 %v4389
    %v4509 = vunpack.c.l.b16 %v4393
    %v4510 = vunpack.c.l.b16 %v4397
    %v4511 = vunpack.c.l.b16 %v4401
    %v4512 = vunpack.c.l.b16 %v4405
    %v4513 = vunpack.c.l.b16 %v4409
    %v4514 = vunpack.c.l.b16 %v4413
    %v4515 = vunpack.c.l.b16 %v4417
    %v4516 = vunpack.c.l.b16 %v4421
    %v4517 = vunpack.c.l.b16 %v4425
    %v4518 = vunpack.c.l.b16 %v4429
    %v4519 = vunpack.c.l.b16 %v4433
    %v4520 = vunpack.c.l.b16 %v4437
    %v4521 = vunpack.c.l.b16 %v4441
    %v4522 = vunpack.c.l.b16 %v4445
    %v4523 = vunpack.c.l.b16 %v4449
    %v4524 = vunpack.c.l.b16 %v4453
    %v4525 = vunpack.c.l.b16 %v4457
    %v4526 = vunpack.c.l.b16 %v4461
    %v4527 = vunpack.c.l.b16 %v4465
    %v4528 = vunpack.c.l.b16 %v4469
    %v4529 = vunpack.c.l.b16 %v4473
    %v4530 = vunpack.c.l.b16 %v4477
    %v4531 = vunpack.c.l.b16 %v4481
    %v4532 = vunpack.c.l.b16 %v4485
    %v4533 = vunpack.c.l.b16 %v4489
    %v4534 = vunpack.c.l.b16 %v4493
    %v4535 = vunpack.c.l.b16 %v4497
    %v4536 = vunpack.c.l.b16 %v4501
    %v4537 = vunpack.c.l.b16 %v4505
    %v4538 = vpack.c.b16 %v4507, %v4506
    %v4539 = vpack.c.b16 %v4509, %v4508
    %v4540 = vpack.c.b16 %v4511, %v4510
    %v4541 = vpack.c.b16 %v4513, %v4512
    %v4542 = vpack.c.b16 %v4515, %v4514
    %v4543 = vpack.c.b16 %v4517, %v4516
    %v4544 = vpack.c.b16 %v4519, %v4518
    %v4545 = vpack.c.b16 %v4521, %v4520
    %v4546 = vpack.c.b16 %v4523, %v4522
    %v4547 = vpack.c.b16 %v4525, %v4524
    %v4548 = vpack.c.b16 %v4527, %v4526
    %v4549 = vpack.c.b16 %v4529, %v4528
    %v4550 = vpack.c.b16 %v4531, %v4530
    %v4551 = vpack.c.b16 %v4533, %v4532
    %v4552 = vpack.c.b16 %v4535, %v4534
    %v4553 = vpack.c.b16 %v4537, %v4536
    %4570 = vst.msk [vmem:[#allocation3 + $0x10] sm:$0xff] %vm1295, %v4538
    %4571 = vst.msk [vmem:[#allocation3 + $0x28] sm:$0xff] %vm1295, %v4539
    %4572 = vst.msk [vmem:[#allocation3 + $0x40] sm:$0xff] %vm1295, %v4540
    %4573 = vst.msk [vmem:[#allocation3 + $0x58] sm:$0xff] %vm1295, %v4541
    %4574 = vst.msk [vmem:[#allocation3 + $0x70] sm:$0xff] %vm1295, %v4542
    %4575 = vst.msk [vmem:[#allocation3 + $0x88] sm:$0xff] %vm1295, %v4543
    %4576 = vst.msk [vmem:[#allocation3 + $0xa0] sm:$0xff] %vm1295, %v4544
    %4577 = vst.msk [vmem:[#allocation3 + $0xb8] sm:$0xff] %vm1295, %v4545
    %4578 = vst.msk [vmem:[#allocation3 + $0xd0] sm:$0xff] %vm1295, %v4546
    %4579 = vst.msk [vmem:[#allocation3 + $0xe8] sm:$0xff] %vm1295, %v4547
    %4580 = vst.msk [vmem:[#allocation3 + $0x100] sm:$0xff] %vm1295, %v4548
    %4581 = vst.msk [vmem:[#allocation3 + $0x118] sm:$0xff] %vm1295, %v4549
    %4582 = vst.msk [vmem:[#allocation3 + $0x130] sm:$0xff] %vm1295, %v4550
    %4583 = vst.msk [vmem:[#allocation3 + $0x148] sm:$0xff] %vm1295, %v4551
    %4584 = vst.msk [vmem:[#allocation3 + $0x160] sm:$0xff] %vm1295, %v4552
    %4585 = vst.msk [vmem:[#allocation3 + $0x178] sm:$0xff] %vm1295, %v4553
    %v4586 = vld [vmem:[#allocation3] sm:$0xff]
    %v4587 = vld [vmem:[#allocation3 + $0x8] sm:$0xff]
    %v4588 = vld [vmem:[#allocation3 + $0x10] sm:$0xff]
    %v4589 = vld [vmem:[#allocation3 + $0x18] sm:$0xff]
    %v4590 = vld [vmem:[#allocation3 + $0x20] sm:$0xff]
    %v4591 = vld [vmem:[#allocation3 + $0x28] sm:$0xff]
    %v4592 = vld [vmem:[#allocation3 + $0x30] sm:$0xff]
    %v4593 = vld [vmem:[#allocation3 + $0x38] sm:$0xff]
    %v4594 = vld [vmem:[#allocation3 + $0x40] sm:$0xff]
    %v4595 = vld [vmem:[#allocation3 + $0x48] sm:$0xff]
    %v4596 = vld [vmem:[#allocation3 + $0x50] sm:$0xff]
    %v4597 = vld [vmem:[#allocation3 + $0x58] sm:$0xff]
    %v4598 = vld [vmem:[#allocation3 + $0x60] sm:$0xff]
    %v4599 = vld [vmem:[#allocation3 + $0x68] sm:$0xff]
    %v4600 = vld [vmem:[#allocation3 + $0x70] sm:$0xff]
    %v4601 = vld [vmem:[#allocation3 + $0x78] sm:$0xff]
    %v4602 = vld [vmem:[#allocation3 + $0x80] sm:$0xff]
    %v4603 = vld [vmem:[#allocation3 + $0x88] sm:$0xff]
    %v4604 = vld [vmem:[#allocation3 + $0x90] sm:$0xff]
    %v4605 = vld [vmem:[#allocation3 + $0x98] sm:$0xff]
    %v4606 = vld [vmem:[#allocation3 + $0xa0] sm:$0xff]
    %v4607 = vld [vmem:[#allocation3 + $0xa8] sm:$0xff]
    %v4608 = vld [vmem:[#allocation3 + $0xb0] sm:$0xff]
    %v4609 = vld [vmem:[#allocation3 + $0xb8] sm:$0xff]
    %v4610 = vld [vmem:[#allocation3 + $0xc0] sm:$0xff]
    %v4611 = vld [vmem:[#allocation3 + $0xc8] sm:$0xff]
    %v4612 = vld [vmem:[#allocation3 + $0xd0] sm:$0xff]
    %v4613 = vld [vmem:[#allocation3 + $0xd8] sm:$0xff]
    %v4614 = vld [vmem:[#allocation3 + $0xe0] sm:$0xff]
    %v4615 = vld [vmem:[#allocation3 + $0xe8] sm:$0xff]
    %v4616 = vld [vmem:[#allocation3 + $0xf0] sm:$0xff]
    %v4617 = vld [vmem:[#allocation3 + $0xf8] sm:$0xff]
    %v4618 = vld [vmem:[#allocation3 + $0x100] sm:$0xff]
    %v4619 = vld [vmem:[#allocation3 + $0x108] sm:$0xff]
    %v4620 = vld [vmem:[#allocation3 + $0x110] sm:$0xff]
    %v4621 = vld [vmem:[#allocation3 + $0x118] sm:$0xff]
    %v4622 = vld [vmem:[#allocation3 + $0x120] sm:$0xff]
    %v4623 = vld [vmem:[#allocation3 + $0x128] sm:$0xff]
    %v4624 = vld [vmem:[#allocation3 + $0x130] sm:$0xff]
    %v4625 = vld [vmem:[#allocation3 + $0x138] sm:$0xff]
    %v4626 = vld [vmem:[#allocation3 + $0x140] sm:$0xff]
    %v4627 = vld [vmem:[#allocation3 + $0x148] sm:$0xff]
    %v4628 = vld [vmem:[#allocation3 + $0x150] sm:$0xff]
    %v4629 = vld [vmem:[#allocation3 + $0x158] sm:$0xff]
    %v4630 = vld [vmem:[#allocation3 + $0x160] sm:$0xff]
    %v4631 = vld [vmem:[#allocation3 + $0x168] sm:$0xff]
    %v4632 = vld [vmem:[#allocation3 + $0x170] sm:$0xff]
    %v4633 = vld [vmem:[#allocation3 + $0x178] sm:$0xff]
    %v4634 = vld [vmem:[%s3] sm:$0xf]
    %v4635 = vld [vmem:[%s3 + $0x4] sm:$0xf]
    %v4636 = vld [vmem:[%s3 + $0x8] sm:$0xf]
    %v4637 = vld [vmem:[%s3 + $0xc] sm:$0xf]
    %v4638 = vld [vmem:[%s3 + $0x10] sm:$0xf]
    %v4639 = vld [vmem:[%s3 + $0x14] sm:$0xf]
    %v4640 = vld [vmem:[%s3 + $0x18] sm:$0xf]
    %v4641 = vld [vmem:[%s3 + $0x1c] sm:$0xf]
    %v4642 = vld [vmem:[%s3 + $0x20] sm:$0xf]
    %v4643 = vld [vmem:[%s3 + $0x24] sm:$0xf]
    %v4644 = vld [vmem:[%s3 + $0x28] sm:$0xf]
    %v4645 = vld [vmem:[%s3 + $0x2c] sm:$0xf]
    %v4646 = vld [vmem:[%s3 + $0x30] sm:$0xf]
    %v4647 = vld [vmem:[%s3 + $0x34] sm:$0xf]
    %v4648 = vld [vmem:[%s3 + $0x38] sm:$0xf]
    %v4649 = vld [vmem:[%s3 + $0x3c] sm:$0xf]
    %v4650 = vld [vmem:[%s3 + $0x40] sm:$0xf]
    %v4651 = vld [vmem:[%s3 + $0x44] sm:$0xf]
    %v4652 = vld [vmem:[%s3 + $0x48] sm:$0xf]
    %v4653 = vld [vmem:[%s3 + $0x4c] sm:$0xf]
    %v4654 = vld [vmem:[%s3 + $0x50] sm:$0xf]
    %v4655 = vld [vmem:[%s3 + $0x54] sm:$0xf]
    %v4656 = vld [vmem:[%s3 + $0x58] sm:$0xf]
    %v4657 = vld [vmem:[%s3 + $0x5c] sm:$0xf]
    %v4658 = vld [vmem:[%s3 + $0x60] sm:$0xf]
    %v4659 = vld [vmem:[%s3 + $0x64] sm:$0xf]
    %v4660 = vld [vmem:[%s3 + $0x68] sm:$0xf]
    %v4661 = vld [vmem:[%s3 + $0x6c] sm:$0xf]
    %v4662 = vld [vmem:[%s3 + $0x70] sm:$0xf]
    %v4663 = vld [vmem:[%s3 + $0x74] sm:$0xf]
    %v4664 = vld [vmem:[%s3 + $0x78] sm:$0xf]
    %v4665 = vld [vmem:[%s3 + $0x7c] sm:$0xf]
    %v4666 = vld [vmem:[%s3 + $0x80] sm:$0xf]
    %v4667 = vld [vmem:[%s3 + $0x84] sm:$0xf]
    %v4668 = vld [vmem:[%s3 + $0x88] sm:$0xf]
    %v4669 = vld [vmem:[%s3 + $0x8c] sm:$0xf]
    %v4670 = vld [vmem:[%s4] sm:$0x1]
    %v4672 = vlaneseq
    %v4673 = vshrl.u32 %v4672, 7
    %v4674 = vsub.s32 0, %v4673
    %v4675 = vrot.slane %v4670, %v4674
    %v4713 = vunpack.c.l.b16 %v4634
    %v4714 = vunpack.c.l.b16 %v4635
    %v4715 = vunpack.c.l.b16 %v4636
    %v4716 = vunpack.c.l.b16 %v4637
    %v4717 = vunpack.c.l.b16 %v4638
    %v4718 = vunpack.c.l.b16 %v4639
    %v4719 = vunpack.c.l.b16 %v4640
    %v4720 = vunpack.c.l.b16 %v4641
    %v4721 = vunpack.c.l.b16 %v4642
    %v4722 = vunpack.c.l.b16 %v4643
    %v4723 = vunpack.c.l.b16 %v4644
    %v4724 = vunpack.c.l.b16 %v4645
    %v4725 = vunpack.c.l.b16 %v4646
    %v4726 = vunpack.c.l.b16 %v4647
    %v4727 = vunpack.c.l.b16 %v4648
    %v4728 = vunpack.c.l.b16 %v4649
    %v4729 = vunpack.c.l.b16 %v4650
    %v4730 = vunpack.c.l.b16 %v4651
    %v4731 = vunpack.c.l.b16 %v4652
    %v4732 = vunpack.c.l.b16 %v4653
    %v4733 = vunpack.c.l.b16 %v4654
    %v4734 = vunpack.c.l.b16 %v4655
    %v4735 = vunpack.c.l.b16 %v4656
    %v4736 = vunpack.c.l.b16 %v4657
    %v4737 = vunpack.c.l.b16 %v4658
    %v4738 = vunpack.c.l.b16 %v4659
    %v4739 = vunpack.c.l.b16 %v4660
    %v4740 = vunpack.c.l.b16 %v4661
    %v4741 = vunpack.c.l.b16 %v4662
    %v4742 = vunpack.c.l.b16 %v4663
    %v4743 = vunpack.c.l.b16 %v4664
    %v4744 = vunpack.c.l.b16 %v4665
    %v4745 = vunpack.c.l.b16 %v4666
    %v4746 = vunpack.c.l.b16 %v4667
    %v4747 = vunpack.c.l.b16 %v4668
    %v4748 = vunpack.c.l.b16 %v4669
    %v4749 = vpack.c.b16 %v4714, %v4713
    %v4750 = vpack.c.b16 %v4716, %v4715
    %v4751 = vpack.c.b16 %v4718, %v4717
    %v4752 = vpack.c.b16 %v4720, %v4719
    %v4753 = vpack.c.b16 %v4722, %v4721
    %v4754 = vpack.c.b16 %v4724, %v4723
    %v4755 = vpack.c.b16 %v4726, %v4725
    %v4756 = vpack.c.b16 %v4728, %v4727
    %v4757 = vpack.c.b16 %v4730, %v4729
    %v4758 = vpack.c.b16 %v4732, %v4731
    %v4759 = vpack.c.b16 %v4734, %v4733
    %v4760 = vpack.c.b16 %v4736, %v4735
    %v4761 = vpack.c.b16 %v4738, %v4737
    %v4762 = vpack.c.b16 %v4740, %v4739
    %v4763 = vpack.c.b16 %v4742, %v4741
    %v4764 = vpack.c.b16 %v4744, %v4743
    %v4765 = vpack.c.b16 %v4746, %v4745
    %v4766 = vpack.c.b16 %v4748, %v4747
    %v4786 = vsel %vm1295, %v4588, 0
    %v4789 = vsel %vm1295, %v4591, 0
    %v4792 = vsel %vm1295, %v4594, 0
    %v4795 = vsel %vm1295, %v4597, 0
    %v4798 = vsel %vm1295, %v4600, 0
    %v4801 = vsel %vm1295, %v4603, 0
    %v4804 = vsel %vm1295, %v4606, 0
    %v4807 = vsel %vm1295, %v4609, 0
    %v4810 = vsel %vm1295, %v4612, 0
    %v4813 = vsel %vm1295, %v4615, 0
    %v4816 = vsel %vm1295, %v4618, 0
    %v4819 = vsel %vm1295, %v4621, 0
    %v4822 = vsel %vm1295, %v4624, 0
    %v4825 = vsel %vm1295, %v4627, 0
    %v4828 = vsel %vm1295, %v4630, 0
    %v4831 = vsel %vm1295, %v4633, 0
    %4833 = vmatprep.subr.bf16.mxu0 0
    %4834 = vmatpush1.bf16.msra.mxu0 %v4749
    %4835 = vmatprep.subr.bf16.mxu0 0
    %4836 = vmatpush1.bf16.msra.mxu0 %v4750
    %4837 = vmatprep.subr.bf16.mxu0 0
    %4838 = vmatpush1.bf16.msra.mxu0 %v4751
    %4839 = vmatprep.subr.bf16.mxu0 0
    %4840 = vmatpush1.bf16.msra.mxu0 %v4752
    %4841 = vmatprep.subr.bf16.mxu0 0
    %4842 = vmatpush1.bf16.msra.mxu0 %v4753
    %4843 = vmatprep.subr.bf16.mxu0 0
    %4844 = vmatpush1.bf16.msra.mxu0 %v4754
    %4845 = vmatprep.subr.bf16.mxu0 0
    %4846 = vmatpush1.bf16.msra.mxu0 %v4755
    %4847 = vmatprep.subr.bf16.mxu0 0
    %4848 = vmatpush1.bf16.msra.mxu0 %v4756
    %4849 = vmatprep.subr.bf16.mxu0 0
    %4850 = vmatpush1.bf16.msra.mxu0 %v4757
    %4851 = vmatprep.subr.bf16.mxu0 0
    %4852 = vmatpush1.bf16.msra.mxu0 %v4758
    %4853 = vmatprep.subr.bf16.mxu0 0
    %4854 = vmatpush1.bf16.msra.mxu0 %v4759
    %4855 = vmatprep.subr.bf16.mxu0 0
    %4856 = vmatpush1.bf16.msra.mxu0 %v4760
    %4857 = vmatprep.subr.bf16.mxu0 0
    %4858 = vmatpush1.bf16.msra.mxu0 %v4761
    %4859 = vmatprep.subr.bf16.mxu0 0
    %4860 = vmatpush1.bf16.msra.mxu0 %v4762
    %4861 = vmatprep.subr.bf16.mxu0 0
    %4862 = vmatpush1.bf16.msra.mxu0 %v4763
    %4863 = vmatprep.subr.bf16.mxu0 0
    %4864 = vmatpush1.bf16.msra.mxu0 %v4764
    %4865 = vmatprep.mubr.bf16.mxu0 %v4587
    %4866 = vmatmul.mubr.bf16.gmra.mrb[0].mxu0 %v4586
    %v4867 = vpop.f32.mrb[0].mxu0
    %v4868 = vadd.f32 %v4675, %v4867
    %v4869 = vpop.f32.mrb[0].mxu0
    %v4870 = vpop.f32.mrb[0].mxu0
    %v4871 = vadd.f32 %v4675, %v4870
    %v4872 = vpop.f32.mrb[0].mxu0
    %4873 = vmatprep.mubr.bf16.mxu0 %v4590
    %4874 = vmatmul.mubr.bf16.gmra.mrb[0].mxu0 %v4589
    %v4875 = vpop.f32.mrb[0].mxu0
    %v4876 = vadd.f32 %v4675, %v4875
    %v4877 = vpop.f32.mrb[0].mxu0
    %v4878 = vpop.f32.mrb[0].mxu0
    %v4879 = vadd.f32 %v4675, %v4878
    %v4880 = vpop.f32.mrb[0].mxu0
    %4881 = vmatprep.mubr.bf16.mxu0 %v4593
    %4882 = vmatmul.mubr.bf16.gmra.mrb[0].mxu0 %v4592
    %v4883 = vpop.f32.mrb[0].mxu0
    %v4884 = vadd.f32 %v4675, %v4883
    %v4885 = vpop.f32.mrb[0].mxu0
    %v4886 = vpop.f32.mrb[0].mxu0
    %v4887 = vadd.f32 %v4675, %v4886
    %v4888 = vpop.f32.mrb[0].mxu0
    %4889 = vmatprep.mubr.bf16.mxu0 %v4596
    %4890 = vmatmul.mubr.bf16.gmra.mrb[0].mxu0 %v4595
    %v4891 = vpop.f32.mrb[0].mxu0
    %v4892 = vadd.f32 %v4675, %v4891
    %v4893 = vpop.f32.mrb[0].mxu0
    %v4894 = vpop.f32.mrb[0].mxu0
    %v4895 = vadd.f32 %v4675, %v4894
    %v4896 = vpop.f32.mrb[0].mxu0
    %4897 = vmatprep.mubr.bf16.mxu0 %v4599
    %4898 = vmatmul.mubr.bf16.gmra.mrb[0].mxu0 %v4598
    %v4899 = vpop.f32.mrb[0].mxu0
    %v4900 = vadd.f32 %v4675, %v4899
    %v4901 = vpop.f32.mrb[0].mxu0
    %v4902 = vpop.f32.mrb[0].mxu0
    %v4903 = vadd.f32 %v4675, %v4902
    %v4904 = vpop.f32.mrb[0].mxu0
    %4905 = vmatprep.mubr.bf16.mxu0 %v4602
    %4906 = vmatmul.mubr.bf16.gmra.mrb[0].mxu0 %v4601
    %v4907 = vpop.f32.mrb[0].mxu0
    %v4908 = vadd.f32 %v4675, %v4907
    %v4909 = vpop.f32.mrb[0].mxu0
    %v4910 = vpop.f32.mrb[0].mxu0
    %v4911 = vadd.f32 %v4675, %v4910
    %v4912 = vpop.f32.mrb[0].mxu0
    %4913 = vmatprep.mubr.bf16.mxu0 %v4605
    %4914 = vmatmul.mubr.bf16.gmra.mrb[0].mxu0 %v4604
    %v4915 = vpop.f32.mrb[0].mxu0
    %v4916 = vadd.f32 %v4675, %v4915
    %v4917 = vpop.f32.mrb[0].mxu0
    %v4918 = vpop.f32.mrb[0].mxu0
    %v4919 = vadd.f32 %v4675, %v4918
    %v4920 = vpop.f32.mrb[0].mxu0
    %4921 = vmatprep.mubr.bf16.mxu0 %v4608
    %4922 = vmatmul.mubr.bf16.gmra.mrb[0].mxu0 %v4607
    %v4923 = vpop.f32.mrb[0].mxu0
    %v4924 = vadd.f32 %v4675, %v4923
    %v4925 = vpop.f32.mrb[0].mxu0
    %v4926 = vpop.f32.mrb[0].mxu0
    %v4927 = vadd.f32 %v4675, %v4926
    %v4928 = vpop.f32.mrb[0].mxu0
    %4929 = vmatprep.mubr.bf16.mxu0 %v4611
    %4930 = vmatmul.mubr.bf16.gmra.mrb[0].mxu0 %v4610
    %v4931 = vpop.f32.mrb[0].mxu0
    %v4932 = vadd.f32 %v4675, %v4931
    %v4933 = vpop.f32.mrb[0].mxu0
    %v4934 = vpop.f32.mrb[0].mxu0
    %v4935 = vadd.f32 %v4675, %v4934
    %v4936 = vpop.f32.mrb[0].mxu0
    %4937 = vmatprep.mubr.bf16.mxu0 %v4614
    %4938 = vmatmul.mubr.bf16.gmra.mrb[0].mxu0 %v4613
    %v4939 = vpop.f32.mrb[0].mxu0
    %v4940 = vadd.f32 %v4675, %v4939
    %v4941 = vpop.f32.mrb[0].mxu0
    %v4942 = vpop.f32.mrb[0].mxu0
    %v4943 = vadd.f32 %v4675, %v4942
    %v4944 = vpop.f32.mrb[0].mxu0
    %4945 = vmatprep.mubr.bf16.mxu0 %v4617
    %4946 = vmatmul.mubr.bf16.gmra.mrb[0].mxu0 %v4616
    %v4947 = vpop.f32.mrb[0].mxu0
    %v4948 = vadd.f32 %v4675, %v4947
    %v4949 = vpop.f32.mrb[0].mxu0
    %v4950 = vpop.f32.mrb[0].mxu0
    %v4951 = vadd.f32 %v4675, %v4950
    %v4952 = vpop.f32.mrb[0].mxu0
    %4953 = vmatprep.mubr.bf16.mxu0 %v4620
    %4954 = vmatmul.mubr.bf16.gmra.mrb[0].mxu0 %v4619
    %v4955 = vpop.f32.mrb[0].mxu0
    %v4956 = vadd.f32 %v4675, %v4955
    %v4957 = vpop.f32.mrb[0].mxu0
    %v4958 = vpop.f32.mrb[0].mxu0
    %v4959 = vadd.f32 %v4675, %v4958
    %v4960 = vpop.f32.mrb[0].mxu0
    %4961 = vmatprep.mubr.bf16.mxu0 %v4623
    %4962 = vmatmul.mubr.bf16.gmra.mrb[0].mxu0 %v4622
    %v4963 = vpop.f32.mrb[0].mxu0
    %v4964 = vadd.f32 %v4675, %v4963
    %v4965 = vpop.f32.mrb[0].mxu0
    %v4966 = vpop.f32.mrb[0].mxu0
    %v4967 = vadd.f32 %v4675, %v4966
    %v4968 = vpop.f32.mrb[0].mxu0
    %4969 = vmatprep.mubr.bf16.mxu0 %v4626
    %4970 = vmatmul.mubr.bf16.gmra.mrb[0].mxu0 %v4625
    %v4971 = vpop.f32.mrb[0].mxu0
    %v4972 = vadd.f32 %v4675, %v4971
    %v4973 = vpop.f32.mrb[0].mxu0
    %v4974 = vpop.f32.mrb[0].mxu0
    %v4975 = vadd.f32 %v4675, %v4974
    %v4976 = vpop.f32.mrb[0].mxu0
    %4977 = vmatprep.mubr.bf16.mxu0 %v4629
    %4978 = vmatmul.mubr.bf16.gmra.mrb[0].mxu0 %v4628
    %v4979 = vpop.f32.mrb[0].mxu0
    %v4980 = vadd.f32 %v4675, %v4979
    %v4981 = vpop.f32.mrb[0].mxu0
    %v4982 = vpop.f32.mrb[0].mxu0
    %v4983 = vadd.f32 %v4675, %v4982
    %v4984 = vpop.f32.mrb[0].mxu0
    %4985 = vmatprep.mubr.bf16.mxu0 %v4632
    %4986 = vmatmul.mubr.bf16.gmra.mrb[0].mxu0 %v4631
    %v4987 = vpop.f32.mrb[0].mxu0
    %v4988 = vadd.f32 %v4675, %v4987
    %v4989 = vpop.f32.mrb[0].mxu0
    %v4990 = vpop.f32.mrb[0].mxu0
    %v4991 = vadd.f32 %v4675, %v4990
    %v4992 = vpop.f32.mrb[0].mxu0
    %4993 = vdwg.mxu0
    %4994 = vmatprep.subr.bf16.mxu0 0
    %4995 = vmatpush1.bf16.msra.mxu0 %v4765
    %4996 = vmatprep.subr.bf16.mxu0 0
    %4997 = vmatpush1.bf16.msra.mxu0 %v4766
    %4998 = vmatprep.subr.bf16.mxu0 0
    %4999 = vmatpush1.bf16.msra.mxu0 0
    %5000 = vmatprep.subr.bf16.mxu0 0
    %5001 = vmatpush1.bf16.msra.mxu0 0
    %5002 = vmatprep.subr.bf16.mxu0 0
    %5003 = vmatpush1.bf16.msra.mxu0 0
    %5004 = vmatprep.subr.bf16.mxu0 0
    %5005 = vmatpush1.bf16.msra.mxu0 0
    %5006 = vmatprep.subr.bf16.mxu0 0
    %5007 = vmatpush1.bf16.msra.mxu0 0
    %5008 = vmatprep.subr.bf16.mxu0 0
    %5009 = vmatpush1.bf16.msra.mxu0 0
    %5010 = vmatprep.subr.bf16.mxu0 0
    %5011 = vmatpush1.bf16.msra.mxu0 0
    %5012 = vmatprep.subr.bf16.mxu0 0
    %5013 = vmatpush1.bf16.msra.mxu0 0
    %5014 = vmatprep.subr.bf16.mxu0 0
    %5015 = vmatpush1.bf16.msra.mxu0 0
    %5016 = vmatprep.subr.bf16.mxu0 0
    %5017 = vmatpush1.bf16.msra.mxu0 0
    %5018 = vmatprep.subr.bf16.mxu0 0
    %5019 = vmatpush1.bf16.msra.mxu0 0
    %5020 = vmatprep.subr.bf16.mxu0 0
    %5021 = vmatpush1.bf16.msra.mxu0 0
    %5022 = vmatprep.subr.bf16.mxu0 0
    %5023 = vmatpush1.bf16.msra.mxu0 0
    %5024 = vmatprep.subr.bf16.mxu0 0
    %5025 = vmatpush1.bf16.msra.mxu0 0
    %5026 = vmatprep.mubr.bf16.mxu0 0
    %5027 = vmatmul.mubr.bf16.gmra.mrb[0].mxu0 %v4786
    %v5028 = vpop.f32.mrb[0].mxu0
    %v5029 = vadd.f32 %v4868, %v5028
    %v5030 = vpop.f32.mrb[0].mxu0
    %v5031 = vpop.f32.mrb[0].mxu0
    %v5032 = vadd.f32 %v4871, %v5031
    %v5033 = vpop.f32.mrb[0].mxu0
    %5034 = vmatprep.mubr.bf16.mxu0 0
    %5035 = vmatmul.mubr.bf16.gmra.mrb[0].mxu0 %v4789
    %v5036 = vpop.f32.mrb[0].mxu0
    %v5037 = vadd.f32 %v4876, %v5036
    %v5038 = vpop.f32.mrb[0].mxu0
    %v5039 = vpop.f32.mrb[0].mxu0
    %v5040 = vadd.f32 %v4879, %v5039
    %v5041 = vpop.f32.mrb[0].mxu0
    %5042 = vmatprep.mubr.bf16.mxu0 0
    %5043 = vmatmul.mubr.bf16.gmra.mrb[0].mxu0 %v4792
    %v5044 = vpop.f32.mrb[0].mxu0
    %v5045 = vadd.f32 %v4884, %v5044
    %v5046 = vpop.f32.mrb[0].mxu0
    %v5047 = vpop.f32.mrb[0].mxu0
    %v5048 = vadd.f32 %v4887, %v5047
    %v5049 = vpop.f32.mrb[0].mxu0
    %5050 = vmatprep.mubr.bf16.mxu0 0
    %5051 = vmatmul.mubr.bf16.gmra.mrb[0].mxu0 %v4795
    %v5052 = vpop.f32.mrb[0].mxu0
    %v5053 = vadd.f32 %v4892, %v5052
    %v5054 = vpop.f32.mrb[0].mxu0
    %v5055 = vpop.f32.mrb[0].mxu0
    %v5056 = vadd.f32 %v4895, %v5055
    %v5057 = vpop.f32.mrb[0].mxu0
    %5058 = vmatprep.mubr.bf16.mxu0 0
    %5059 = vmatmul.mubr.bf16.gmra.mrb[0].mxu0 %v4798
    %v5060 = vpop.f32.mrb[0].mxu0
    %v5061 = vadd.f32 %v4900, %v5060
    %v5062 = vpop.f32.mrb[0].mxu0
    %v5063 = vpop.f32.mrb[0].mxu0
    %v5064 = vadd.f32 %v4903, %v5063
    %v5065 = vpop.f32.mrb[0].mxu0
    %5066 = vmatprep.mubr.bf16.mxu0 0
    %5067 = vmatmul.mubr.bf16.gmra.mrb[0].mxu0 %v4801
    %v5068 = vpop.f32.mrb[0].mxu0
    %v5069 = vadd.f32 %v4908, %v5068
    %v5070 = vpop.f32.mrb[0].mxu0
    %v5071 = vpop.f32.mrb[0].mxu0
    %v5072 = vadd.f32 %v4911, %v5071
    %v5073 = vpop.f32.mrb[0].mxu0
    %5074 = vmatprep.mubr.bf16.mxu0 0
    %5075 = vmatmul.mubr.bf16.gmra.mrb[0].mxu0 %v4804
    %v5076 = vpop.f32.mrb[0].mxu0
    %v5077 = vadd.f32 %v4916, %v5076
    %v5078 = vpop.f32.mrb[0].mxu0
    %v5079 = vpop.f32.mrb[0].mxu0
    %v5080 = vadd.f32 %v4919, %v5079
    %v5081 = vpop.f32.mrb[0].mxu0
    %5082 = vmatprep.mubr.bf16.mxu0 0
    %5083 = vmatmul.mubr.bf16.gmra.mrb[0].mxu0 %v4807
    %v5084 = vpop.f32.mrb[0].mxu0
    %v5085 = vadd.f32 %v4924, %v5084
    %v5086 = vpop.f32.mrb[0].mxu0
    %v5087 = vpop.f32.mrb[0].mxu0
    %v5088 = vadd.f32 %v4927, %v5087
    %v5089 = vpop.f32.mrb[0].mxu0
    %5090 = vmatprep.mubr.bf16.mxu0 0
    %5091 = vmatmul.mubr.bf16.gmra.mrb[0].mxu0 %v4810
    %v5092 = vpop.f32.mrb[0].mxu0
    %v5093 = vadd.f32 %v4932, %v5092
    %v5094 = vpop.f32.mrb[0].mxu0
    %v5095 = vpop.f32.mrb[0].mxu0
    %v5096 = vadd.f32 %v4935, %v5095
    %v5097 = vpop.f32.mrb[0].mxu0
    %5098 = vmatprep.mubr.bf16.mxu0 0
    %5099 = vmatmul.mubr.bf16.gmra.mrb[0].mxu0 %v4813
    %v5100 = vpop.f32.mrb[0].mxu0
    %v5101 = vadd.f32 %v4940, %v5100
    %v5102 = vpop.f32.mrb[0].mxu0
    %v5103 = vpop.f32.mrb[0].mxu0
    %v5104 = vadd.f32 %v4943, %v5103
    %v5105 = vpop.f32.mrb[0].mxu0
    %5106 = vmatprep.mubr.bf16.mxu0 0
    %5107 = vmatmul.mubr.bf16.gmra.mrb[0].mxu0 %v4816
    %v5108 = vpop.f32.mrb[0].mxu0
    %v5109 = vadd.f32 %v4948, %v5108
    %v5110 = vpop.f32.mrb[0].mxu0
    %v5111 = vpop.f32.mrb[0].mxu0
    %v5112 = vadd.f32 %v4951, %v5111
    %v5113 = vpop.f32.mrb[0].mxu0
    %5114 = vmatprep.mubr.bf16.mxu0 0
    %5115 = vmatmul.mubr.bf16.gmra.mrb[0].mxu0 %v4819
    %v5116 = vpop.f32.mrb[0].mxu0
    %v5117 = vadd.f32 %v4956, %v5116
    %v5118 = vpop.f32.mrb[0].mxu0
    %v5119 = vpop.f32.mrb[0].mxu0
    %v5120 = vadd.f32 %v4959, %v5119
    %v5121 = vpop.f32.mrb[0].mxu0
    %5122 = vmatprep.mubr.bf16.mxu0 0
    %5123 = vmatmul.mubr.bf16.gmra.mrb[0].mxu0 %v4822
    %v5124 = vpop.f32.mrb[0].mxu0
    %v5125 = vadd.f32 %v4964, %v5124
    %v5126 = vpop.f32.mrb[0].mxu0
    %v5127 = vpop.f32.mrb[0].mxu0
    %v5128 = vadd.f32 %v4967, %v5127
    %v5129 = vpop.f32.mrb[0].mxu0
    %5130 = vmatprep.mubr.bf16.mxu0 0
    %5131 = vmatmul.mubr.bf16.gmra.mrb[0].mxu0 %v4825
    %v5132 = vpop.f32.mrb[0].mxu0
    %v5133 = vadd.f32 %v4972, %v5132
    %v5134 = vpop.f32.mrb[0].mxu0
    %v5135 = vpop.f32.mrb[0].mxu0
    %v5136 = vadd.f32 %v4975, %v5135
    %v5137 = vpop.f32.mrb[0].mxu0
    %5138 = vmatprep.mubr.bf16.mxu0 0
    %5139 = vmatmul.mubr.bf16.gmra.mrb[0].mxu0 %v4828
    %v5140 = vpop.f32.mrb[0].mxu0
    %v5141 = vadd.f32 %v4980, %v5140
    %v5142 = vpop.f32.mrb[0].mxu0
    %v5143 = vpop.f32.mrb[0].mxu0
    %v5144 = vadd.f32 %v4983, %v5143
    %v5145 = vpop.f32.mrb[0].mxu0
    %5146 = vmatprep.mubr.bf16.mxu0 0
    %5147 = vmatmul.mubr.bf16.gmra.mrb[0].mxu0 %v4831
    %v5148 = vpop.f32.mrb[0].mxu0
    %v5149 = vadd.f32 %v4988, %v5148
    %v5150 = vpop.f32.mrb[0].mxu0
    %v5151 = vpop.f32.mrb[0].mxu0
    %v5152 = vadd.f32 %v4991, %v5151
    %v5153 = vpop.f32.mrb[0].mxu0
    %5154 = vdwg.mxu0
    %v5155 = vmax.f32 %v5029, 0.0
    %v5156 = vmax.f32 %v5032, 0.0
    %v5157 = vmax.f32 %v5037, 0.0
    %v5158 = vmax.f32 %v5040, 0.0
    %v5159 = vmax.f32 %v5045, 0.0
    %v5160 = vmax.f32 %v5048, 0.0
    %v5161 = vmax.f32 %v5053, 0.0
    %v5162 = vmax.f32 %v5056, 0.0
    %v5163 = vmax.f32 %v5061, 0.0
    %v5164 = vmax.f32 %v5064, 0.0
    %v5165 = vmax.f32 %v5069, 0.0
    %v5166 = vmax.f32 %v5072, 0.0
    %v5167 = vmax.f32 %v5077, 0.0
    %v5168 = vmax.f32 %v5080, 0.0
    %v5169 = vmax.f32 %v5085, 0.0
    %v5170 = vmax.f32 %v5088, 0.0
    %v5171 = vmax.f32 %v5093, 0.0
    %v5172 = vmax.f32 %v5096, 0.0
    %v5173 = vmax.f32 %v5101, 0.0
    %v5174 = vmax.f32 %v5104, 0.0
    %v5175 = vmax.f32 %v5109, 0.0
    %v5176 = vmax.f32 %v5112, 0.0
    %v5177 = vmax.f32 %v5117, 0.0
    %v5178 = vmax.f32 %v5120, 0.0
    %v5179 = vmax.f32 %v5125, 0.0
    %v5180 = vmax.f32 %v5128, 0.0
    %v5181 = vmax.f32 %v5133, 0.0
    %v5182 = vmax.f32 %v5136, 0.0
    %v5183 = vmax.f32 %v5141, 0.0
    %v5184 = vmax.f32 %v5144, 0.0
    %v5185 = vmax.f32 %v5149, 0.0
    %v5186 = vmax.f32 %v5152, 0.0
    %v5187 = vpack.c.bf16 %v5156, %v5155
    %v5188 = vpack.c.bf16 %v5158, %v5157
    %v5189 = vpack.c.bf16 %v5160, %v5159
    %v5190 = vpack.c.bf16 %v5162, %v5161
    %v5191 = vpack.c.bf16 %v5164, %v5163
    %v5192 = vpack.c.bf16 %v5166, %v5165
    %v5193 = vpack.c.bf16 %v5168, %v5167
    %v5194 = vpack.c.bf16 %v5170, %v5169
    %v5195 = vpack.c.bf16 %v5172, %v5171
    %v5196 = vpack.c.bf16 %v5174, %v5173
    %v5197 = vpack.c.bf16 %v5176, %v5175
    %v5198 = vpack.c.bf16 %v5178, %v5177
    %v5199 = vpack.c.bf16 %v5180, %v5179
    %v5200 = vpack.c.bf16 %v5182, %v5181
    %v5201 = vpack.c.bf16 %v5184, %v5183
    %v5202 = vpack.c.bf16 %v5186, %v5185
    %v5203 = vld [vmem:[%s5] sm:$0xf]
    %v5204 = vld [vmem:[%s5 + $0x4] sm:$0xf]
    %v5205 = vld [vmem:[%s5 + $0x8] sm:$0xf]
    %v5206 = vld [vmem:[%s5 + $0xc] sm:$0xf]
    %v5207 = vld [vmem:[%s0] sm:$0xff]
    %v5208 = vld [vmem:[%s0 + $0x8] sm:$0xff]
    %v5209 = vld [vmem:[%s0 + $0x10] sm:$0xff]
    %v5210 = vld [vmem:[%s0 + $0x18] sm:$0xff]
    %v5211 = vld [vmem:[%s0 + $0x20] sm:$0xff]
    %v5212 = vld [vmem:[%s0 + $0x28] sm:$0xff]
    %v5213 = vld [vmem:[%s0 + $0x30] sm:$0xff]
    %v5214 = vld [vmem:[%s0 + $0x38] sm:$0xff]
    %v5215 = vld [vmem:[%s0 + $0x40] sm:$0xff]
    %v5216 = vld [vmem:[%s0 + $0x48] sm:$0xff]
    %v5217 = vld [vmem:[%s0 + $0x50] sm:$0xff]
    %v5218 = vld [vmem:[%s0 + $0x58] sm:$0xff]
    %v5219 = vld [vmem:[%s0 + $0x60] sm:$0xff]
    %v5220 = vld [vmem:[%s0 + $0x68] sm:$0xff]
    %v5221 = vld [vmem:[%s0 + $0x70] sm:$0xff]
    %v5222 = vld [vmem:[%s0 + $0x78] sm:$0xff]
    %v5223 = vld [vmem:[%s0 + $0x80] sm:$0xff]
    %v5224 = vld [vmem:[%s0 + $0x88] sm:$0xff]
    %v5225 = vld [vmem:[%s0 + $0x90] sm:$0xff]
    %v5226 = vld [vmem:[%s0 + $0x98] sm:$0xff]
    %v5227 = vld [vmem:[%s0 + $0xa0] sm:$0xff]
    %v5228 = vld [vmem:[%s0 + $0xa8] sm:$0xff]
    %v5229 = vld [vmem:[%s0 + $0xb0] sm:$0xff]
    %v5230 = vld [vmem:[%s0 + $0xb8] sm:$0xff]
    %v5231 = vld [vmem:[%s0 + $0xc0] sm:$0xff]
    %v5232 = vld [vmem:[%s0 + $0xc8] sm:$0xff]
    %v5233 = vld [vmem:[%s0 + $0xd0] sm:$0xff]
    %v5234 = vld [vmem:[%s0 + $0xd8] sm:$0xff]
    %v5235 = vld [vmem:[%s0 + $0xe0] sm:$0xff]
    %v5236 = vld [vmem:[%s0 + $0xe8] sm:$0xff]
    %v5237 = vld [vmem:[%s0 + $0xf0] sm:$0xff]
    %v5238 = vld [vmem:[%s0 + $0xf8] sm:$0xff]
    %v5239 = vld [vmem:[%s6] sm:$0x1]
    %v5241 = vlaneseq
    %v5242 = vshrl.u32 %v5241, 7
    %v5243 = vsub.s32 0, %v5242
    %v5244 = vrot.slane %v5239, %v5243
    %v5250 = vunpack.c.l.b16 %v5203
    %v5251 = vunpack.c.l.b16 %v5204
    %v5252 = vunpack.c.l.b16 %v5205
    %v5253 = vunpack.c.l.b16 %v5206
    %v5254 = vpack.c.b16 %v5251, %v5250
    %v5255 = vpack.c.b16 %v5253, %v5252
    %v5259 = vsel %vm1295, %v5187, 0
    %v5262 = vsel %vm1295, %v5188, 0
    %v5265 = vsel %vm1295, %v5189, 0
    %v5268 = vsel %vm1295, %v5190, 0
    %v5271 = vsel %vm1295, %v5191, 0
    %v5274 = vsel %vm1295, %v5192, 0
    %v5277 = vsel %vm1295, %v5193, 0
    %v5280 = vsel %vm1295, %v5194, 0
    %v5283 = vsel %vm1295, %v5195, 0
    %v5286 = vsel %vm1295, %v5196, 0
    %v5289 = vsel %vm1295, %v5197, 0
    %v5292 = vsel %vm1295, %v5198, 0
    %v5295 = vsel %vm1295, %v5199, 0
    %v5298 = vsel %vm1295, %v5200, 0
    %v5301 = vsel %vm1295, %v5201, 0
    %v5304 = vsel %vm1295, %v5202, 0
    %5306 = vmatprep.subr.bf16.mxu0 0
    %5307 = vmatpush1.bf16.msra.mxu0 %v5254
    %5308 = vmatprep.subr.bf16.mxu0 0
    %5309 = vmatpush1.bf16.msra.mxu0 %v5255
    %5310 = vmatprep.subr.bf16.mxu0 0
    %5311 = vmatpush1.bf16.msra.mxu0 0
    %5312 = vmatprep.subr.bf16.mxu0 0
    %5313 = vmatpush1.bf16.msra.mxu0 0
    %5314 = vmatprep.subr.bf16.mxu0 0
    %5315 = vmatpush1.bf16.msra.mxu0 0
    %5316 = vmatprep.subr.bf16.mxu0 0
    %5317 = vmatpush1.bf16.msra.mxu0 0
    %5318 = vmatprep.subr.bf16.mxu0 0
    %5319 = vmatpush1.bf16.msra.mxu0 0
    %5320 = vmatprep.subr.bf16.mxu0 0
    %5321 = vmatpush1.bf16.msra.mxu0 0
    %5322 = vmatprep.subr.bf16.mxu0 0
    %5323 = vmatpush1.bf16.msra.mxu0 0
    %5324 = vmatprep.subr.bf16.mxu0 0
    %5325 = vmatpush1.bf16.msra.mxu0 0
    %5326 = vmatprep.subr.bf16.mxu0 0
    %5327 = vmatpush1.bf16.msra.mxu0 0
    %5328 = vmatprep.subr.bf16.mxu0 0
    %5329 = vmatpush1.bf16.msra.mxu0 0
    %5330 = vmatprep.subr.bf16.mxu0 0
    %5331 = vmatpush1.bf16.msra.mxu0 0
    %5332 = vmatprep.subr.bf16.mxu0 0
    %5333 = vmatpush1.bf16.msra.mxu0 0
    %5334 = vmatprep.subr.bf16.mxu0 0
    %5335 = vmatpush1.bf16.msra.mxu0 0
    %5336 = vmatprep.subr.bf16.mxu0 0
    %5337 = vmatpush1.bf16.msra.mxu0 0
    %5338 = vmatprep.mubr.bf16.mxu0 0
    %5339 = vmatmul.mubr.bf16.gmra.mrb[0].mxu0 %v5259
    %v5340 = vpop.f32.mrb[0].mxu0
    %v5341 = vadd.f32 %v5244, %v5340
    %v5342 = vpop.f32.mrb[0].mxu0
    %v5343 = vpop.f32.mrb[0].mxu0
    %v5344 = vadd.f32 %v5244, %v5343
    %v5345 = vpop.f32.mrb[0].mxu0
    %5346 = vmatprep.mubr.bf16.mxu0 0
    %5347 = vmatmul.mubr.bf16.gmra.mrb[0].mxu0 %v5262
    %v5348 = vpop.f32.mrb[0].mxu0
    %v5349 = vadd.f32 %v5244, %v5348
    %v5350 = vpop.f32.mrb[0].mxu0
    %v5351 = vpop.f32.mrb[0].mxu0
    %v5352 = vadd.f32 %v5244, %v5351
    %v5353 = vpop.f32.mrb[0].mxu0
    %5354 = vmatprep.mubr.bf16.mxu0 0
    %5355 = vmatmul.mubr.bf16.gmra.mrb[0].mxu0 %v5265
    %v5356 = vpop.f32.mrb[0].mxu0
    %v5357 = vadd.f32 %v5244, %v5356
    %v5358 = vpop.f32.mrb[0].mxu0
    %v5359 = vpop.f32.mrb[0].mxu0
    %v5360 = vadd.f32 %v5244, %v5359
    %v5361 = vpop.f32.mrb[0].mxu0
    %5362 = vmatprep.mubr.bf16.mxu0 0
    %5363 = vmatmul.mubr.bf16.gmra.mrb[0].mxu0 %v5268
    %v5364 = vpop.f32.mrb[0].mxu0
    %v5365 = vadd.f32 %v5244, %v5364
    %v5366 = vpop.f32.mrb[0].mxu0
    %v5367 = vpop.f32.mrb[0].mxu0
    %v5368 = vadd.f32 %v5244, %v5367
    %v5369 = vpop.f32.mrb[0].mxu0
    %5370 = vmatprep.mubr.bf16.mxu0 0
    %5371 = vmatmul.mubr.bf16.gmra.mrb[0].mxu0 %v5271
    %v5372 = vpop.f32.mrb[0].mxu0
    %v5373 = vadd.f32 %v5244, %v5372
    %v5374 = vpop.f32.mrb[0].mxu0
    %v5375 = vpop.f32.mrb[0].mxu0
    %v5376 = vadd.f32 %v5244, %v5375
    %v5377 = vpop.f32.mrb[0].mxu0
    %5378 = vmatprep.mubr.bf16.mxu0 0
    %5379 = vmatmul.mubr.bf16.gmra.mrb[0].mxu0 %v5274
    %v5380 = vpop.f32.mrb[0].mxu0
    %v5381 = vadd.f32 %v5244, %v5380
    %v5382 = vpop.f32.mrb[0].mxu0
    %v5383 = vpop.f32.mrb[0].mxu0
    %v5384 = vadd.f32 %v5244, %v5383
    %v5385 = vpop.f32.mrb[0].mxu0
    %5386 = vmatprep.mubr.bf16.mxu0 0
    %5387 = vmatmul.mubr.bf16.gmra.mrb[0].mxu0 %v5277
    %v5388 = vpop.f32.mrb[0].mxu0
    %v5389 = vadd.f32 %v5244, %v5388
    %v5390 = vpop.f32.mrb[0].mxu0
    %v5391 = vpop.f32.mrb[0].mxu0
    %v5392 = vadd.f32 %v5244, %v5391
    %v5393 = vpop.f32.mrb[0].mxu0
    %5394 = vmatprep.mubr.bf16.mxu0 0
    %5395 = vmatmul.mubr.bf16.gmra.mrb[0].mxu0 %v5280
    %v5396 = vpop.f32.mrb[0].mxu0
    %v5397 = vadd.f32 %v5244, %v5396
    %v5398 = vpop.f32.mrb[0].mxu0
    %v5399 = vpop.f32.mrb[0].mxu0
    %v5400 = vadd.f32 %v5244, %v5399
    %v5401 = vpop.f32.mrb[0].mxu0
    %5402 = vmatprep.mubr.bf16.mxu0 0
    %5403 = vmatmul.mubr.bf16.gmra.mrb[0].mxu0 %v5283
    %v5404 = vpop.f32.mrb[0].mxu0
    %v5405 = vadd.f32 %v5244, %v5404
    %v5406 = vpop.f32.mrb[0].mxu0
    %v5407 = vpop.f32.mrb[0].mxu0
    %v5408 = vadd.f32 %v5244, %v5407
    %v5409 = vpop.f32.mrb[0].mxu0
    %5410 = vmatprep.mubr.bf16.mxu0 0
    %5411 = vmatmul.mubr.bf16.gmra.mrb[0].mxu0 %v5286
    %v5412 = vpop.f32.mrb[0].mxu0
    %v5413 = vadd.f32 %v5244, %v5412
    %v5414 = vpop.f32.mrb[0].mxu0
    %v5415 = vpop.f32.mrb[0].mxu0
    %v5416 = vadd.f32 %v5244, %v5415
    %v5417 = vpop.f32.mrb[0].mxu0
    %5418 = vmatprep.mubr.bf16.mxu0 0
    %5419 = vmatmul.mubr.bf16.gmra.mrb[0].mxu0 %v5289
    %v5420 = vpop.f32.mrb[0].mxu0
    %v5421 = vadd.f32 %v5244, %v5420
    %v5422 = vpop.f32.mrb[0].mxu0
    %v5423 = vpop.f32.mrb[0].mxu0
    %v5424 = vadd.f32 %v5244, %v5423
    %v5425 = vpop.f32.mrb[0].mxu0
    %5426 = vmatprep.mubr.bf16.mxu0 0
    %5427 = vmatmul.mubr.bf16.gmra.mrb[0].mxu0 %v5292
    %v5428 = vpop.f32.mrb[0].mxu0
    %v5429 = vadd.f32 %v5244, %v5428
    %v5430 = vpop.f32.mrb[0].mxu0
    %v5431 = vpop.f32.mrb[0].mxu0
    %v5432 = vadd.f32 %v5244, %v5431
    %v5433 = vpop.f32.mrb[0].mxu0
    %5434 = vmatprep.mubr.bf16.mxu0 0
    %5435 = vmatmul.mubr.bf16.gmra.mrb[0].mxu0 %v5295
    %v5436 = vpop.f32.mrb[0].mxu0
    %v5437 = vadd.f32 %v5244, %v5436
    %v5438 = vpop.f32.mrb[0].mxu0
    %v5439 = vpop.f32.mrb[0].mxu0
    %v5440 = vadd.f32 %v5244, %v5439
    %v5441 = vpop.f32.mrb[0].mxu0
    %5442 = vmatprep.mubr.bf16.mxu0 0
    %5443 = vmatmul.mubr.bf16.gmra.mrb[0].mxu0 %v5298
    %v5444 = vpop.f32.mrb[0].mxu0
    %v5445 = vadd.f32 %v5244, %v5444
    %v5446 = vpop.f32.mrb[0].mxu0
    %v5447 = vpop.f32.mrb[0].mxu0
    %v5448 = vadd.f32 %v5244, %v5447
    %v5449 = vpop.f32.mrb[0].mxu0
    %5450 = vmatprep.mubr.bf16.mxu0 0
    %5451 = vmatmul.mubr.bf16.gmra.mrb[0].mxu0 %v5301
    %v5452 = vpop.f32.mrb[0].mxu0
    %v5453 = vadd.f32 %v5244, %v5452
    %v5454 = vpop.f32.mrb[0].mxu0
    %v5455 = vpop.f32.mrb[0].mxu0
    %v5456 = vadd.f32 %v5244, %v5455
    %v5457 = vpop.f32.mrb[0].mxu0
    %5458 = vmatprep.mubr.bf16.mxu0 0
    %5459 = vmatmul.mubr.bf16.gmra.mrb[0].mxu0 %v5304
    %v5460 = vpop.f32.mrb[0].mxu0
    %v5461 = vadd.f32 %v5244, %v5460
    %v5462 = vpop.f32.mrb[0].mxu0
    %v5463 = vpop.f32.mrb[0].mxu0
    %v5464 = vadd.f32 %v5244, %v5463
    %v5465 = vpop.f32.mrb[0].mxu0
    %5466 = vdwg.mxu0
    %v5467 = vadd.f32 %v5341, %v5207
    %v5468 = vadd.f32 %v5344, %v5208
    %v5469 = vadd.f32 %v5349, %v5209
    %v5470 = vadd.f32 %v5352, %v5210
    %v5471 = vadd.f32 %v5357, %v5211
    %v5472 = vadd.f32 %v5360, %v5212
    %v5473 = vadd.f32 %v5365, %v5213
    %v5474 = vadd.f32 %v5368, %v5214
    %v5475 = vadd.f32 %v5373, %v5215
    %v5476 = vadd.f32 %v5376, %v5216
    %v5477 = vadd.f32 %v5381, %v5217
    %v5478 = vadd.f32 %v5384, %v5218
    %v5479 = vadd.f32 %v5389, %v5219
    %v5480 = vadd.f32 %v5392, %v5220
    %v5481 = vadd.f32 %v5397, %v5221
    %v5482 = vadd.f32 %v5400, %v5222
    %v5483 = vadd.f32 %v5405, %v5223
    %v5484 = vadd.f32 %v5408, %v5224
    %v5485 = vadd.f32 %v5413, %v5225
    %v5486 = vadd.f32 %v5416, %v5226
    %v5487 = vadd.f32 %v5421, %v5227
    %v5488 = vadd.f32 %v5424, %v5228
    %v5489 = vadd.f32 %v5429, %v5229
    %v5490 = vadd.f32 %v5432, %v5230
    %v5491 = vadd.f32 %v5437, %v5231
    %v5492 = vadd.f32 %v5440, %v5232
    %v5493 = vadd.f32 %v5445, %v5233
    %v5494 = vadd.f32 %v5448, %v5234
    %v5495 = vadd.f32 %v5453, %v5235
    %v5496 = vadd.f32 %v5456, %v5236
    %v5497 = vadd.f32 %v5461, %v5237
    %v5498 = vadd.f32 %v5464, %v5238
    %v5499 = vmax.f32 %v5467, 0.0
    %v5500 = vmax.f32 %v5468, 0.0
    %v5501 = vmax.f32 %v5469, 0.0
    %v5502 = vmax.f32 %v5470, 0.0
    %v5503 = vmax.f32 %v5471, 0.0
    %v5504 = vmax.f32 %v5472, 0.0
    %v5505 = vmax.f32 %v5473, 0.0
    %v5506 = vmax.f32 %v5474, 0.0
    %v5507 = vmax.f32 %v5475, 0.0
    %v5508 = vmax.f32 %v5476, 0.0
    %v5509 = vmax.f32 %v5477, 0.0
    %v5510 = vmax.f32 %v5478, 0.0
    %v5511 = vmax.f32 %v5479, 0.0
    %v5512 = vmax.f32 %v5480, 0.0
    %v5513 = vmax.f32 %v5481, 0.0
    %v5514 = vmax.f32 %v5482, 0.0
    %v5515 = vmax.f32 %v5483, 0.0
    %v5516 = vmax.f32 %v5484, 0.0
    %v5517 = vmax.f32 %v5485, 0.0
    %v5518 = vmax.f32 %v5486, 0.0
    %v5519 = vmax.f32 %v5487, 0.0
    %v5520 = vmax.f32 %v5488, 0.0
    %v5521 = vmax.f32 %v5489, 0.0
    %v5522 = vmax.f32 %v5490, 0.0
    %v5523 = vmax.f32 %v5491, 0.0
    %v5524 = vmax.f32 %v5492, 0.0
    %v5525 = vmax.f32 %v5493, 0.0
    %v5526 = vmax.f32 %v5494, 0.0
    %v5527 = vmax.f32 %v5495, 0.0
    %v5528 = vmax.f32 %v5496, 0.0
    %v5529 = vmax.f32 %v5497, 0.0
    %v5530 = vmax.f32 %v5498, 0.0
    %5531 = vst [vmem:[#allocation4] sm:$0xff] %v5499
    %5532 = vst [vmem:[#allocation4 + $0x8] sm:$0xff] %v5500
    %5533 = vst [vmem:[#allocation4 + $0x10] sm:$0xff] %v5501
    %5534 = vst [vmem:[#allocation4 + $0x18] sm:$0xff] %v5502
    %5535 = vst [vmem:[#allocation4 + $0x20] sm:$0xff] %v5503
    %5536 = vst [vmem:[#allocation4 + $0x28] sm:$0xff] %v5504
    %5537 = vst [vmem:[#allocation4 + $0x30] sm:$0xff] %v5505
    %5538 = vst [vmem:[#allocation4 + $0x38] sm:$0xff] %v5506
    %5539 = vst [vmem:[#allocation4 + $0x40] sm:$0xff] %v5507
    %5540 = vst [vmem:[#allocation4 + $0x48] sm:$0xff] %v5508
    %5541 = vst [vmem:[#allocation4 + $0x50] sm:$0xff] %v5509
    %5542 = vst [vmem:[#allocation4 + $0x58] sm:$0xff] %v5510
    %5543 = vst [vmem:[#allocation4 + $0x60] sm:$0xff] %v5511
    %5544 = vst [vmem:[#allocation4 + $0x68] sm:$0xff] %v5512
    %5545 = vst [vmem:[#allocation4 + $0x70] sm:$0xff] %v5513
    %5546 = vst [vmem:[#allocation4 + $0x78] sm:$0xff] %v5514
    %5547 = vst [vmem:[#allocation4 + $0x80] sm:$0xff] %v5515
    %5548 = vst [vmem:[#allocation4 + $0x88] sm:$0xff] %v5516
    %5549 = vst [vmem:[#allocation4 + $0x90] sm:$0xff] %v5517
    %5550 = vst [vmem:[#allocation4 + $0x98] sm:$0xff] %v5518
    %5551 = vst [vmem:[#allocation4 + $0xa0] sm:$0xff] %v5519
    %5552 = vst [vmem:[#allocation4 + $0xa8] sm:$0xff] %v5520
    %5553 = vst [vmem:[#allocation4 + $0xb0] sm:$0xff] %v5521
    %5554 = vst [vmem:[#allocation4 + $0xb8] sm:$0xff] %v5522
    %5555 = vst [vmem:[#allocation4 + $0xc0] sm:$0xff] %v5523
    %5556 = vst [vmem:[#allocation4 + $0xc8] sm:$0xff] %v5524
    %5557 = vst [vmem:[#allocation4 + $0xd0] sm:$0xff] %v5525
    %5558 = vst [vmem:[#allocation4 + $0xd8] sm:$0xff] %v5526
    %5559 = vst [vmem:[#allocation4 + $0xe0] sm:$0xff] %v5527
    %5560 = vst [vmem:[#allocation4 + $0xe8] sm:$0xff] %v5528
    %5561 = vst [vmem:[#allocation4 + $0xf0] sm:$0xff] %v5529
    %5562 = vst [vmem:[#allocation4 + $0xf8] sm:$0xff] %v5530
    // Predicated region
    $region30: #{bottleneck_forward.1} parent=1 // pred_check
      _
    $region31: #{bottleneck_forward.1} parent=1 // pred_check_branch
      %5564 = sbr.rel (0) target = $region33
    $region32: #{bottleneck_forward.1} parent=1 // pred_region
      %s5566 = ssub.s32 4096, 4096
      %5567 = vsyncadd [#allocation5], %s5566
      %s5568 = sshll.u32 [#allocation4], 4
      %s5569 = int_to_ptr.vmem [resolvable:$true] %s5568
      %5574 = dma.vmem_to_hbm [thread:$0]  %s5569, 4096, %s7, [#allocation5], 128, 128, 8
    $region33: #{bottleneck_forward.1} parent=1 // pred_fallthru
      _
    // Predicated region
    $region34: #{bottleneck_forward.1} parent=1 // pred_check
      _
    $region35: #{bottleneck_forward.1} parent=1 // pred_check_branch
      %5576 = sbr.rel (0) target = $region37
    $region36: #{bottleneck_forward.1} parent=1 // pred_region
      %5577 = dma.done [#allocation5], 4096
    $region37: #{bottleneck_forward.1} parent=1 // pred_fallthru
      _
    %5578 = vsyncpa [#allocation5], 1

</llo_original>
